<compile_context>
chip_gen: v5e
topology: v5e:2x2
jax: 0.10.0
libtpu: 0.0.40
codegen_flags: <defaults>
</compile_context>

<pallas_src>
import numpy as np
import jax
import jax.numpy as jnp
from jax.experimental import pallas as pl
from jax.experimental.pallas import tpu as pltpu

# ---------------- model configuration (synthetic "Longformer") -------------
VOCAB      = 128
SEQ        = 16
HIDDEN     = 128          # lane-dense (multiple of 128)
N_HEADS    = 2
HEAD_DIM   = HIDDEN // N_HEADS
FFN        = 256
N_LAYERS   = 2
SEP_ID     = 2
LN_EPS     = 1e-5
SCALE      = 1.0 / float(np.sqrt(HEAD_DIM))


def _layernorm(x, gamma, beta):
    mu = jnp.mean(x, axis=-1, keepdims=True)
    var = jnp.mean((x - mu) ** 2, axis=-1, keepdims=True)
    return (x - mu) * jax.lax.rsqrt(var + LN_EPS) * gamma + beta


def encoder_kernel(x_ref, bias_ref,
                   wq_ref, wk_ref, wv_ref, bq_ref, bk_ref, bv_ref,
                   wo_ref, bo_ref, g1_ref, b1n_ref,
                   w1_ref, b1_ref, w2_ref, b2_ref, g2_ref, b2n_ref,
                   out_ref):
    # x_ref: (block_b, SEQ, HIDDEN) f32; bias_ref: (block_b, 1, SEQ) f32
    Bt = x_ref.shape[0]
    M = Bt * SEQ
    x = x_ref[...].reshape(M, HIDDEN)                      # f32 residual stream

    # hoisted mask broadcast (reused across all layers & heads, stays f32)
    bias = jnp.broadcast_to(bias_ref[...], (Bt, SEQ, SEQ))

    for l in range(N_LAYERS):
        xb = x.astype(jnp.bfloat16)                        # matmul operand only
        attn = jnp.zeros((M, HIDDEN), dtype=jnp.float32)

        # ---- self attention (per-head weights; no activation lane slicing) ----
        for h in range(N_HEADS):
            q = jnp.dot(xb, wq_ref[l, h],
                        preferred_element_type=jnp.float32) + bq_ref[l, h]
            k = jnp.dot(xb, wk_ref[l, h],
                        preferred_element_type=jnp.float32) + bk_ref[l, h]
            v = jnp.dot(xb, wv_ref[l, h],
                        preferred_element_type=jnp.float32) + bv_ref[l, h]

            q3 = q.reshape(Bt, SEQ, HEAD_DIM).astype(jnp.bfloat16)
            k3 = k.reshape(Bt, SEQ, HEAD_DIM).astype(jnp.bfloat16)
            v3 = v.reshape(Bt, SEQ, HEAD_DIM).astype(jnp.bfloat16)

            s = jnp.einsum('bqd,bkd->bqk', q3, k3,
                           preferred_element_type=jnp.float32) * SCALE
            s = s + bias                                   # mask padded keys (f32)
            s = s - jnp.max(s, axis=-1, keepdims=True)
            p = jnp.exp(s)
            p = p * pl.reciprocal(jnp.sum(p, axis=-1, keepdims=True), approx=True)

            ctx = jnp.einsum('bqk,bkd->bqd', p.astype(jnp.bfloat16), v3,
                             preferred_element_type=jnp.float32)
            ctx2 = ctx.reshape(M, HEAD_DIM).astype(jnp.bfloat16)
            # head concat folded into the output projection
            attn = attn + jnp.dot(ctx2, wo_ref[l, h],
                                  preferred_element_type=jnp.float32)

        attn = attn + bo_ref[l]
        x = _layernorm(x + attn, g1_ref[l], b1n_ref[l])

        # ---- feed-forward ----
        h1 = jnp.dot(x.astype(jnp.bfloat16), w1_ref[l],
                     preferred_element_type=jnp.float32)
        h1 = jax.nn.gelu(h1 + b1_ref[l], approximate=True)
        h2 = jnp.dot(h1.astype(jnp.bfloat16), w2_ref[l],
                     preferred_element_type=jnp.float32)
        h2 = h2 + b2_ref[l]
        x = _layernorm(x + h2, g2_ref[l], b2n_ref[l])

    out_ref[...] = x.reshape(Bt, SEQ, HIDDEN)


def run_encoder(x_emb, mask_bias, params, block_b=None):
    """x_emb: (B, SEQ, HIDDEN) f32; mask_bias: (B, 1, SEQ) f32."""
    B = x_emb.shape[0]
    if block_b is None:
        # fold several batch rows into each step (M = block_b*SEQ) while keeping
        # >= 2 grid blocks when possible so both v7x TensorCores stay busy.
        block_b = max(1, B // 2)
    n_blocks = pl.cdiv(B, block_b)
    Bp = n_blocks * block_b
    if Bp != B:
        x_emb = jnp.pad(x_emb, ((0, Bp - B), (0, 0), (0, 0)))
        mask_bias = jnp.pad(mask_bias, ((0, Bp - B), (0, 0), (0, 0)))

    def full_spec(shape):
        nd = len(shape)
        # constant block index => weight slab stays resident across grid steps
        return pl.BlockSpec(shape, lambda b, _nd=nd: (0,) * _nd)

    in_specs = [
        pl.BlockSpec((block_b, SEQ, HIDDEN), lambda b: (b, 0, 0)),   # x_emb
        pl.BlockSpec((block_b, 1, SEQ),      lambda b: (b, 0, 0)),   # mask bias
    ] + [full_spec(p.shape) for p in params]

    out_spec = pl.BlockSpec((block_b, SEQ, HIDDEN), lambda b: (b, 0, 0))

    out = pl.pallas_call(
        encoder_kernel,
        out_shape=jax.ShapeDtypeStruct((Bp, SEQ, HIDDEN), jnp.float32),
        grid_spec=pltpu.PrefetchScalarGridSpec(
            num_scalar_prefetch=0,
            grid=(n_blocks,),
            in_specs=in_specs,
            out_specs=out_spec,
        ),
        compiler_params=pltpu.CompilerParams(
            dimension_semantics=("parallel",)),
    )(x_emb, mask_bias, *params)
    return out[:B]


def init_params(key):
    ks = jax.random.split(key, 8)
    std = 0.02

    def nrm(k, shape):
        return jax.random.normal(k, shape, jnp.float32) * std

    # head-major attention weights, bf16 for MXU operands
    wq = nrm(ks[0], (N_LAYERS, N_HEADS, HIDDEN, HEAD_DIM)).astype(jnp.bfloat16)
    wk = nrm(ks[1], (N_LAYERS, N_HEADS, HIDDEN, HEAD_DIM)).astype(jnp.bfloat16)
    wv = nrm(ks[2], (N_LAYERS, N_HEADS, HIDDEN, HEAD_DIM)).astype(jnp.bfloat16)
    bq = jnp.zeros((N_LAYERS, N_HEADS, 1, HEAD_DIM), jnp.float32)
    bk = jnp.zeros((N_LAYERS, N_HEADS, 1, HEAD_DIM), jnp.float32)
    bv = jnp.zeros((N_LAYERS, N_HEADS, 1, HEAD_DIM), jnp.float32)
    wo = nrm(ks[3], (N_LAYERS, N_HEADS, HEAD_DIM, HIDDEN)).astype(jnp.bfloat16)
    bo = jnp.zeros((N_LAYERS, 1, HIDDEN), jnp.float32)
    g1 = jnp.ones((N_LAYERS, 1, HIDDEN), jnp.float32)
    b1n = jnp.zeros((N_LAYERS, 1, HIDDEN), jnp.float32)
    w1 = nrm(ks[4], (N_LAYERS, HIDDEN, FFN)).astype(jnp.bfloat16)
    b1 = jnp.zeros((N_LAYERS, 1, FFN), jnp.float32)
    w2 = nrm(ks[5], (N_LAYERS, FFN, HIDDEN)).astype(jnp.bfloat16)
    b2 = jnp.zeros((N_LAYERS, 1, HIDDEN), jnp.float32)
    g2 = jnp.ones((N_LAYERS, 1, HIDDEN), jnp.float32)
    b2n = jnp.zeros((N_LAYERS, 1, HIDDEN), jnp.float32)
    word_emb = nrm(ks[6], (VOCAB, HIDDEN))
    pos_emb = nrm(ks[7], (SEQ, HIDDEN))

    layer_params = (wq, wk, wv, bq, bk, bv, wo, bo,
                    g1, b1n, w1, b1, w2, b2, g2, b2n)
    return layer_params, word_emb, pos_emb


def dfcsc_sep_forward(input_ids, attention_mask, layer_params, word_emb, pos_emb):
    """Mirrors DFCSC_SEP_LongformerEncoder.forward."""
    # global_attention_mask is built by the reference module but never used.
    global_attention_mask = jnp.zeros(input_ids.shape, dtype=jnp.int32)
    global_attention_mask = global_attention_mask.at[:, 0].set(1)
    global_attention_mask = jnp.where(input_ids == SEP_ID, 1, global_attention_mask)
    del global_attention_mask  # (unused downstream, as in the PyTorch code)

    # embedding lookup (glue)
    x_emb = word_emb[input_ids] + pos_emb[None, :, :]            # (B, SEQ, HIDDEN)
    # additive key mask stays f32 (never cast to bf16 -> no -inf overflow)
    mask_bias = ((1.0 - attention_mask.astype(jnp.float32)) * -1e9)
    mask_bias = mask_bias.reshape(input_ids.shape[0], 1, SEQ)    # (B, 1, SEQ)

    hidden_state = run_encoder(x_emb.astype(jnp.float32), mask_bias, layer_params)

    # sep gather: indices derived from host-side input_ids (no sync on the
    # encoder output); the gather itself runs on device and stays asynchronous.
    ids_np = np.asarray(input_ids)
    rows, cols = [], []
    for i in range(ids_np.shape[0]):
        idx_seps = np.nonzero(ids_np[i] == SEP_ID)[0]
        idx_core_sep = idx_seps[1:-1]                # drop first & last </s>
        rows.append(np.full(idx_core_sep.shape[0], i, dtype=np.int32))
        cols.append(idx_core_sep.astype(np.int32))
    rows = np.concatenate(rows) if rows else np.zeros((0,), np.int32)
    cols = np.concatenate(cols) if cols else np.zeros((0,), np.int32)
    core_embeddings = hidden_state[jnp.asarray(rows), jnp.asarray(cols), :]
    return core_embeddings, hidden_state


if __name__ == "__main__":
    key = jax.random.PRNGKey(0)
    layer_params, word_emb, pos_emb = init_params(key)

    B = 4
    # deterministic token ids in [3, VOCAB); place </s> (id=2) tokens by hand
    tok_key = jax.random.PRNGKey(0)
    ids = jax.random.randint(tok_key, (B, SEQ), 3, VOCAB).astype(jnp.int32)
    ids = ids.at[:, 0].set(0)                                    # <s> / CLS
    ids = ids.at[0, jnp.array([2, 5, 9, 15])].set(SEP_ID)        # 2 core seps
    ids = ids.at[1, jnp.array([3, 7, 11, 15])].set(SEP_ID)       # 2 core seps
    ids = ids.at[2, jnp.array([1, 6, 10, 14])].set(SEP_ID)       # 2 core seps
    ids = ids.at[3, jnp.array([4, 8, 12, 15])].set(SEP_ID)       # 2 core seps
    attention_mask = jnp.ones((B, SEQ), dtype=jnp.int32)

    core_embeddings, hidden_state = dfcsc_sep_forward(
        ids, attention_mask, layer_params, word_emb, pos_emb)
    core_embeddings = jax.block_until_ready(core_embeddings)
    hidden_state = jax.block_until_ready(hidden_state)

    assert hidden_state.shape == (B, SEQ, HIDDEN)
    assert core_embeddings.shape == (2 * B, HIDDEN)              # 2 core seps per row
    assert bool(jnp.all(jnp.isfinite(core_embeddings)))
    assert bool(jnp.all(jnp.isfinite(hidden_state)))
    print("KERNEL_OK")
</pallas_src>

<mosaic_0001>
module attributes {stable_mosaic.version = 11 : i64} {
  func.func @encoder_kernel(%arg0: i32, %arg1: memref<2x16x128xf32, #tpu.memory_space<vmem>>, %arg2: memref<2x1x16xf32, #tpu.memory_space<vmem>>, %arg3: memref<2x2x128x64xbf16, #tpu.memory_space<vmem>>, %arg4: memref<2x2x128x64xbf16, #tpu.memory_space<vmem>>, %arg5: memref<2x2x128x64xbf16, #tpu.memory_space<vmem>>, %arg6: memref<2x2x1x64xf32, #tpu.memory_space<vmem>>, %arg7: memref<2x2x1x64xf32, #tpu.memory_space<vmem>>, %arg8: memref<2x2x1x64xf32, #tpu.memory_space<vmem>>, %arg9: memref<2x2x64x128xbf16, #tpu.memory_space<vmem>>, %arg10: memref<2x1x128xf32, #tpu.memory_space<vmem>>, %arg11: memref<2x1x128xf32, #tpu.memory_space<vmem>>, %arg12: memref<2x1x128xf32, #tpu.memory_space<vmem>>, %arg13: memref<2x128x256xbf16, #tpu.memory_space<vmem>>, %arg14: memref<2x1x256xf32, #tpu.memory_space<vmem>>, %arg15: memref<2x256x128xbf16, #tpu.memory_space<vmem>>, %arg16: memref<2x1x128xf32, #tpu.memory_space<vmem>>, %arg17: memref<2x1x128xf32, #tpu.memory_space<vmem>>, %arg18: memref<2x1x128xf32, #tpu.memory_space<vmem>>, %arg19: memref<2x16x128xf32, #tpu.memory_space<vmem>>) attributes {dimension_semantics = [#tpu.dimension_semantics<parallel>], iteration_bounds = array<i64: 2>, scalar_prefetch = 0 : i64, scratch_operands = 0 : i64, tpu.core_type = #tpu.core_type<tc>, window_params = [{transform_indices = @transform_0, window_bounds = array<i64: 2, 16, 128>}, {transform_indices = @transform_1, window_bounds = array<i64: 2, 1, 16>}, {pipeline_mode = #tpu.pipeline_mode<synchronous>, transform_indices = @transform_2, window_bounds = array<i64: 2, 2, 128, 64>}, {pipeline_mode = #tpu.pipeline_mode<synchronous>, transform_indices = @transform_3, window_bounds = array<i64: 2, 2, 128, 64>}, {pipeline_mode = #tpu.pipeline_mode<synchronous>, transform_indices = @transform_4, window_bounds = array<i64: 2, 2, 128, 64>}, {pipeline_mode = #tpu.pipeline_mode<synchronous>, transform_indices = @transform_5, window_bounds = array<i64: 2, 2, 1, 64>}, {pipeline_mode = #tpu.pipeline_mode<synchronous>, transform_indices = @transform_6, window_bounds = array<i64: 2, 2, 1, 64>}, {pipeline_mode = #tpu.pipeline_mode<synchronous>, transform_indices = @transform_7, window_bounds = array<i64: 2, 2, 1, 64>}, {pipeline_mode = #tpu.pipeline_mode<synchronous>, transform_indices = @transform_8, window_bounds = array<i64: 2, 2, 64, 128>}, {pipeline_mode = #tpu.pipeline_mode<synchronous>, transform_indices = @transform_9, window_bounds = array<i64: 2, 1, 128>}, {pipeline_mode = #tpu.pipeline_mode<synchronous>, transform_indices = @transform_10, window_bounds = array<i64: 2, 1, 128>}, {pipeline_mode = #tpu.pipeline_mode<synchronous>, transform_indices = @transform_11, window_bounds = array<i64: 2, 1, 128>}, {pipeline_mode = #tpu.pipeline_mode<synchronous>, transform_indices = @transform_12, window_bounds = array<i64: 2, 128, 256>}, {pipeline_mode = #tpu.pipeline_mode<synchronous>, transform_indices = @transform_13, window_bounds = array<i64: 2, 1, 256>}, {pipeline_mode = #tpu.pipeline_mode<synchronous>, transform_indices = @transform_14, window_bounds = array<i64: 2, 256, 128>}, {pipeline_mode = #tpu.pipeline_mode<synchronous>, transform_indices = @transform_15, window_bounds = array<i64: 2, 1, 128>}, {pipeline_mode = #tpu.pipeline_mode<synchronous>, transform_indices = @transform_16, window_bounds = array<i64: 2, 1, 128>}, {pipeline_mode = #tpu.pipeline_mode<synchronous>, transform_indices = @transform_17, window_bounds = array<i64: 2, 1, 128>}, {transform_indices = @transform_18, window_bounds = array<i64: 2, 16, 128>}]} {
    %c0 = arith.constant 0 : index
    %c0_0 = arith.constant 0 : index
    %c0_1 = arith.constant 0 : index
    %0 = vector.load %arg1[%c0, %c0_0, %c0_1] : memref<2x16x128xf32, #tpu.memory_space<vmem>>, vector<2x16x128xf32>
    %1 = vector.shape_cast %0 : vector<2x16x128xf32> to vector<32x128xf32>
    %c0_2 = arith.constant 0 : index
    %c0_3 = arith.constant 0 : index
    %c0_4 = arith.constant 0 : index
    %2 = vector.load %arg2[%c0_2, %c0_3, %c0_4] : memref<2x1x16xf32, #tpu.memory_space<vmem>>, vector<2x1x16xf32>
    %3 = vector.shape_cast %2 : vector<2x1x16xf32> to vector<2x1x16xf32>
    %4 = vector.broadcast %3 : vector<2x1x16xf32> to vector<2x16x16xf32>
    %5 = arith.truncf %1 : vector<32x128xf32> to vector<32x128xbf16>
    %cst = arith.constant 0.000000e+00 : f32
    %6 = vector.broadcast %cst : f32 to vector<32x128xf32>
    %c0_5 = arith.constant 0 : index
    %c0_6 = arith.constant 0 : index
    %c0_7 = arith.constant 0 : index
    %c0_8 = arith.constant 0 : index
    %7 = vector.load %arg3[%c0_5, %c0_6, %c0_7, %c0_8] : memref<2x2x128x64xbf16, #tpu.memory_space<vmem>>, vector<1x1x128x64xbf16>
    %8 = vector.shape_cast %7 : vector<1x1x128x64xbf16> to vector<128x64xbf16>
    %cst_9 = arith.constant dense<0.000000e+00> : vector<32x64xf32>
    %9 = tpu.matmul %5, %8, %cst_9 {dimension_numbers = #tpu.dot_dimension_numbers<[1], [0], [0], [1], [0, 0, 1, 1], [], []>} : vector<32x128xbf16>, vector<128x64xbf16>, vector<32x64xf32> -> vector<32x64xf32>
    %c0_10 = arith.constant 0 : index
    %c0_11 = arith.constant 0 : index
    %c0_12 = arith.constant 0 : index
    %c0_13 = arith.constant 0 : index
    %10 = vector.load %arg6[%c0_10, %c0_11, %c0_12, %c0_13] : memref<2x2x1x64xf32, #tpu.memory_space<vmem>>, vector<1x1x1x64xf32>
    %11 = vector.shape_cast %10 : vector<1x1x1x64xf32> to vector<1x64xf32>
    %12 = vector.broadcast %11 : vector<1x64xf32> to vector<32x64xf32>
    %13 = arith.addf %9, %12 : vector<32x64xf32>
    %c0_14 = arith.constant 0 : index
    %c0_15 = arith.constant 0 : index
    %c0_16 = arith.constant 0 : index
    %c0_17 = arith.constant 0 : index
    %14 = vector.load %arg4[%c0_14, %c0_15, %c0_16, %c0_17] : memref<2x2x128x64xbf16, #tpu.memory_space<vmem>>, vector<1x1x128x64xbf16>
    %15 = vector.shape_cast %14 : vector<1x1x128x64xbf16> to vector<128x64xbf16>
    %cst_18 = arith.constant dense<0.000000e+00> : vector<32x64xf32>
    %16 = tpu.matmul %5, %15, %cst_18 {dimension_numbers = #tpu.dot_dimension_numbers<[1], [0], [0], [1], [0, 0, 1, 1], [], []>} : vector<32x128xbf16>, vector<128x64xbf16>, vector<32x64xf32> -> vector<32x64xf32>
    %c0_19 = arith.constant 0 : index
    %c0_20 = arith.constant 0 : index
    %c0_21 = arith.constant 0 : index
    %c0_22 = arith.constant 0 : index
    %17 = vector.load %arg7[%c0_19, %c0_20, %c0_21, %c0_22] : memref<2x2x1x64xf32, #tpu.memory_space<vmem>>, vector<1x1x1x64xf32>
    %18 = vector.shape_cast %17 : vector<1x1x1x64xf32> to vector<1x64xf32>
    %19 = vector.broadcast %18 : vector<1x64xf32> to vector<32x64xf32>
    %20 = arith.addf %16, %19 : vector<32x64xf32>
    %c0_23 = arith.constant 0 : index
    %c0_24 = arith.constant 0 : index
    %c0_25 = arith.constant 0 : index
    %c0_26 = arith.constant 0 : index
    %21 = vector.load %arg5[%c0_23, %c0_24, %c0_25, %c0_26] : memref<2x2x128x64xbf16, #tpu.memory_space<vmem>>, vector<1x1x128x64xbf16>
    %22 = vector.shape_cast %21 : vector<1x1x128x64xbf16> to vector<128x64xbf16>
    %cst_27 = arith.constant dense<0.000000e+00> : vector<32x64xf32>
    %23 = tpu.matmul %5, %22, %cst_27 {dimension_numbers = #tpu.dot_dimension_numbers<[1], [0], [0], [1], [0, 0, 1, 1], [], []>} : vector<32x128xbf16>, vector<128x64xbf16>, vector<32x64xf32> -> vector<32x64xf32>
    %c0_28 = arith.constant 0 : index
    %c0_29 = arith.constant 0 : index
    %c0_30 = arith.constant 0 : index
    %c0_31 = arith.constant 0 : index
    %24 = vector.load %arg8[%c0_28, %c0_29, %c0_30, %c0_31] : memref<2x2x1x64xf32, #tpu.memory_space<vmem>>, vector<1x1x1x64xf32>
    %25 = vector.shape_cast %24 : vector<1x1x1x64xf32> to vector<1x64xf32>
    %26 = vector.broadcast %25 : vector<1x64xf32> to vector<32x64xf32>
    %27 = arith.addf %23, %26 : vector<32x64xf32>
    %28 = vector.shape_cast %13 : vector<32x64xf32> to vector<2x16x64xf32>
    %29 = arith.truncf %28 : vector<2x16x64xf32> to vector<2x16x64xbf16>
    %30 = vector.shape_cast %20 : vector<32x64xf32> to vector<2x16x64xf32>
    %31 = arith.truncf %30 : vector<2x16x64xf32> to vector<2x16x64xbf16>
    %32 = vector.shape_cast %27 : vector<32x64xf32> to vector<2x16x64xf32>
    %33 = arith.truncf %32 : vector<2x16x64xf32> to vector<2x16x64xbf16>
    "tpu.trace_start"() <{level = 10 : i32, message = "bqd,bkd->bqk"}> : () -> ()
    %cst_32 = arith.constant dense<0.000000e+00> : vector<2x16x16xf32>
    %34 = tpu.matmul %29, %31, %cst_32 {dimension_numbers = #tpu.dot_dimension_numbers<[2], [2], [1], [1], [0, 0, 0, 1, 1, 1], [0], [0]>} : vector<2x16x64xbf16>, vector<2x16x64xbf16>, vector<2x16x16xf32> -> vector<2x16x16xf32>
    "tpu.trace_stop"() : () -> ()
    %cst_33 = arith.constant 1.250000e-01 : f32
    %35 = vector.broadcast %cst_33 : f32 to vector<2x16x16xf32>
    %36 = arith.mulf %34, %35 : vector<2x16x16xf32>
    %37 = arith.addf %36, %4 : vector<2x16x16xf32>
    %cst_34 = arith.constant dense<0xFF800000> : vector<2x16xf32>
    %38 = vector.multi_reduction <maximumf>, %37, %cst_34 [2] : vector<2x16x16xf32> to vector<2x16xf32>
    %39 = vector.shape_cast %38 : vector<2x16xf32> to vector<2x16x1xf32>
    %40 = vector.broadcast %39 : vector<2x16x1xf32> to vector<2x16x16xf32>
    %41 = arith.subf %37, %40 : vector<2x16x16xf32>
    %42 = math.exp %41 : vector<2x16x16xf32>
    %cst_35 = arith.constant dense<0.000000e+00> : vector<2x16xf32>
    %43 = vector.multi_reduction <add>, %42, %cst_35 [2] : vector<2x16x16xf32> to vector<2x16xf32>
    %44 = vector.shape_cast %43 : vector<2x16xf32> to vector<2x16x1xf32>
    %45 = tpu.reciprocal %44 {approx = true} : vector<2x16x1xf32> -> vector<2x16x1xf32>
    %46 = vector.broadcast %45 : vector<2x16x1xf32> to vector<2x16x16xf32>
    %47 = arith.mulf %42, %46 : vector<2x16x16xf32>
    %48 = arith.truncf %47 : vector<2x16x16xf32> to vector<2x16x16xbf16>
    "tpu.trace_start"() <{level = 10 : i32, message = "bqk,bkd->bqd"}> : () -> ()
    %cst_36 = arith.constant dense<0.000000e+00> : vector<2x16x64xf32>
    %49 = tpu.matmul %48, %33, %cst_36 {dimension_numbers = #tpu.dot_dimension_numbers<[2], [1], [1], [2], [0, 0, 0, 1, 1, 2], [0], [0]>} : vector<2x16x16xbf16>, vector<2x16x64xbf16>, vector<2x16x64xf32> -> vector<2x16x64xf32>
    "tpu.trace_stop"() : () -> ()
    %50 = vector.shape_cast %49 : vector<2x16x64xf32> to vector<32x64xf32>
    %51 = arith.truncf %50 : vector<32x64xf32> to vector<32x64xbf16>
    %c0_37 = arith.constant 0 : index
    %c0_38 = arith.constant 0 : index
    %c0_39 = arith.constant 0 : index
    %c0_40 = arith.constant 0 : index
    %52 = vector.load %arg9[%c0_37, %c0_38, %c0_39, %c0_40] : memref<2x2x64x128xbf16, #tpu.memory_space<vmem>>, vector<1x1x64x128xbf16>
    %53 = vector.shape_cast %52 : vector<1x1x64x128xbf16> to vector<64x128xbf16>
    %cst_41 = arith.constant dense<0.000000e+00> : vector<32x128xf32>
    %54 = tpu.matmul %51, %53, %cst_41 {dimension_numbers = #tpu.dot_dimension_numbers<[1], [0], [0], [1], [0, 0, 1, 1], [], []>} : vector<32x64xbf16>, vector<64x128xbf16>, vector<32x128xf32> -> vector<32x128xf32>
    %55 = arith.addf %6, %54 : vector<32x128xf32>
    %c0_42 = arith.constant 0 : index
    %c1 = arith.constant 1 : index
    %c0_43 = arith.constant 0 : index
    %c0_44 = arith.constant 0 : index
    %56 = vector.load %arg3[%c0_42, %c1, %c0_43, %c0_44] : memref<2x2x128x64xbf16, #tpu.memory_space<vmem>>, vector<1x1x128x64xbf16>
    %57 = vector.shape_cast %56 : vector<1x1x128x64xbf16> to vector<128x64xbf16>
    %cst_45 = arith.constant dense<0.000000e+00> : vector<32x64xf32>
    %58 = tpu.matmul %5, %57, %cst_45 {dimension_numbers = #tpu.dot_dimension_numbers<[1], [0], [0], [1], [0, 0, 1, 1], [], []>} : vector<32x128xbf16>, vector<128x64xbf16>, vector<32x64xf32> -> vector<32x64xf32>
    %c0_46 = arith.constant 0 : index
    %c1_47 = arith.constant 1 : index
    %c0_48 = arith.constant 0 : index
    %c0_49 = arith.constant 0 : index
    %59 = vector.load %arg6[%c0_46, %c1_47, %c0_48, %c0_49] : memref<2x2x1x64xf32, #tpu.memory_space<vmem>>, vector<1x1x1x64xf32>
    %60 = vector.shape_cast %59 : vector<1x1x1x64xf32> to vector<1x64xf32>
    %61 = vector.broadcast %60 : vector<1x64xf32> to vector<32x64xf32>
    %62 = arith.addf %58, %61 : vector<32x64xf32>
    %c0_50 = arith.constant 0 : index
    %c1_51 = arith.constant 1 : index
    %c0_52 = arith.constant 0 : index
    %c0_53 = arith.constant 0 : index
    %63 = vector.load %arg4[%c0_50, %c1_51, %c0_52, %c0_53] : memref<2x2x128x64xbf16, #tpu.memory_space<vmem>>, vector<1x1x128x64xbf16>
    %64 = vector.shape_cast %63 : vector<1x1x128x64xbf16> to vector<128x64xbf16>
    %cst_54 = arith.constant dense<0.000000e+00> : vector<32x64xf32>
    %65 = tpu.matmul %5, %64, %cst_54 {dimension_numbers = #tpu.dot_dimension_numbers<[1], [0], [0], [1], [0, 0, 1, 1], [], []>} : vector<32x128xbf16>, vector<128x64xbf16>, vector<32x64xf32> -> vector<32x64xf32>
    %c0_55 = arith.constant 0 : index
    %c1_56 = arith.constant 1 : index
    %c0_57 = arith.constant 0 : index
    %c0_58 = arith.constant 0 : index
    %66 = vector.load %arg7[%c0_55, %c1_56, %c0_57, %c0_58] : memref<2x2x1x64xf32, #tpu.memory_space<vmem>>, vector<1x1x1x64xf32>
    %67 = vector.shape_cast %66 : vector<1x1x1x64xf32> to vector<1x64xf32>
    %68 = vector.broadcast %67 : vector<1x64xf32> to vector<32x64xf32>
    %69 = arith.addf %65, %68 : vector<32x64xf32>
    %c0_59 = arith.constant 0 : index
    %c1_60 = arith.constant 1 : index
    %c0_61 = arith.constant 0 : index
    %c0_62 = arith.constant 0 : index
    %70 = vector.load %arg5[%c0_59, %c1_60, %c0_61, %c0_62] : memref<2x2x128x64xbf16, #tpu.memory_space<vmem>>, vector<1x1x128x64xbf16>
    %71 = vector.shape_cast %70 : vector<1x1x128x64xbf16> to vector<128x64xbf16>
    %cst_63 = arith.constant dense<0.000000e+00> : vector<32x64xf32>
    %72 = tpu.matmul %5, %71, %cst_63 {dimension_numbers = #tpu.dot_dimension_numbers<[1], [0], [0], [1], [0, 0, 1, 1], [], []>} : vector<32x128xbf16>, vector<128x64xbf16>, vector<32x64xf32> -> vector<32x64xf32>
    %c0_64 = arith.constant 0 : index
    %c1_65 = arith.constant 1 : index
    %c0_66 = arith.constant 0 : index
    %c0_67 = arith.constant 0 : index
    %73 = vector.load %arg8[%c0_64, %c1_65, %c0_66, %c0_67] : memref<2x2x1x64xf32, #tpu.memory_space<vmem>>, vector<1x1x1x64xf32>
    %74 = vector.shape_cast %73 : vector<1x1x1x64xf32> to vector<1x64xf32>
    %75 = vector.broadcast %74 : vector<1x64xf32> to vector<32x64xf32>
    %76 = arith.addf %72, %75 : vector<32x64xf32>
    %77 = vector.shape_cast %62 : vector<32x64xf32> to vector<2x16x64xf32>
    %78 = arith.truncf %77 : vector<2x16x64xf32> to vector<2x16x64xbf16>
    %79 = vector.shape_cast %69 : vector<32x64xf32> to vector<2x16x64xf32>
    %80 = arith.truncf %79 : vector<2x16x64xf32> to vector<2x16x64xbf16>
    %81 = vector.shape_cast %76 : vector<32x64xf32> to vector<2x16x64xf32>
    %82 = arith.truncf %81 : vector<2x16x64xf32> to vector<2x16x64xbf16>
    "tpu.trace_start"() <{level = 10 : i32, message = "bqd,bkd->bqk"}> : () -> ()
    %cst_68 = arith.constant dense<0.000000e+00> : vector<2x16x16xf32>
    %83 = tpu.matmul %78, %80, %cst_68 {dimension_numbers = #tpu.dot_dimension_numbers<[2], [2], [1], [1], [0, 0, 0, 1, 1, 1], [0], [0]>} : vector<2x16x64xbf16>, vector<2x16x64xbf16>, vector<2x16x16xf32> -> vector<2x16x16xf32>
    "tpu.trace_stop"() : () -> ()
    %cst_69 = arith.constant 1.250000e-01 : f32
    %84 = vector.broadcast %cst_69 : f32 to vector<2x16x16xf32>
    %85 = arith.mulf %83, %84 : vector<2x16x16xf32>
    %86 = arith.addf %85, %4 : vector<2x16x16xf32>
    %cst_70 = arith.constant dense<0xFF800000> : vector<2x16xf32>
    %87 = vector.multi_reduction <maximumf>, %86, %cst_70 [2] : vector<2x16x16xf32> to vector<2x16xf32>
    %88 = vector.shape_cast %87 : vector<2x16xf32> to vector<2x16x1xf32>
    %89 = vector.broadcast %88 : vector<2x16x1xf32> to vector<2x16x16xf32>
    %90 = arith.subf %86, %89 : vector<2x16x16xf32>
    %91 = math.exp %90 : vector<2x16x16xf32>
    %cst_71 = arith.constant dense<0.000000e+00> : vector<2x16xf32>
    %92 = vector.multi_reduction <add>, %91, %cst_71 [2] : vector<2x16x16xf32> to vector<2x16xf32>
    %93 = vector.shape_cast %92 : vector<2x16xf32> to vector<2x16x1xf32>
    %94 = tpu.reciprocal %93 {approx = true} : vector<2x16x1xf32> -> vector<2x16x1xf32>
    %95 = vector.broadcast %94 : vector<2x16x1xf32> to vector<2x16x16xf32>
    %96 = arith.mulf %91, %95 : vector<2x16x16xf32>
    %97 = arith.truncf %96 : vector<2x16x16xf32> to vector<2x16x16xbf16>
    "tpu.trace_start"() <{level = 10 : i32, message = "bqk,bkd->bqd"}> : () -> ()
    %cst_72 = arith.constant dense<0.000000e+00> : vector<2x16x64xf32>
    %98 = tpu.matmul %97, %82, %cst_72 {dimension_numbers = #tpu.dot_dimension_numbers<[2], [1], [1], [2], [0, 0, 0, 1, 1, 2], [0], [0]>} : vector<2x16x16xbf16>, vector<2x16x64xbf16>, vector<2x16x64xf32> -> vector<2x16x64xf32>
    "tpu.trace_stop"() : () -> ()
    %99 = vector.shape_cast %98 : vector<2x16x64xf32> to vector<32x64xf32>
    %100 = arith.truncf %99 : vector<32x64xf32> to vector<32x64xbf16>
    %c0_73 = arith.constant 0 : index
    %c1_74 = arith.constant 1 : index
    %c0_75 = arith.constant 0 : index
    %c0_76 = arith.constant 0 : index
    %101 = vector.load %arg9[%c0_73, %c1_74, %c0_75, %c0_76] : memref<2x2x64x128xbf16, #tpu.memory_space<vmem>>, vector<1x1x64x128xbf16>
    %102 = vector.shape_cast %101 : vector<1x1x64x128xbf16> to vector<64x128xbf16>
    %cst_77 = arith.constant dense<0.000000e+00> : vector<32x128xf32>
    %103 = tpu.matmul %100, %102, %cst_77 {dimension_numbers = #tpu.dot_dimension_numbers<[1], [0], [0], [1], [0, 0, 1, 1], [], []>} : vector<32x64xbf16>, vector<64x128xbf16>, vector<32x128xf32> -> vector<32x128xf32>
    %104 = arith.addf %55, %103 : vector<32x128xf32>
    %c0_78 = arith.constant 0 : index
    %c0_79 = arith.constant 0 : index
    %c0_80 = arith.constant 0 : index
    %105 = vector.load %arg10[%c0_78, %c0_79, %c0_80] : memref<2x1x128xf32, #tpu.memory_space<vmem>>, vector<1x1x128xf32>
    %106 = vector.shape_cast %105 : vector<1x1x128xf32> to vector<1x128xf32>
    %107 = vector.broadcast %106 : vector<1x128xf32> to vector<32x128xf32>
    %108 = arith.addf %104, %107 : vector<32x128xf32>
    %109 = arith.addf %1, %108 : vector<32x128xf32>
    %c0_81 = arith.constant 0 : index
    %c0_82 = arith.constant 0 : index
    %c0_83 = arith.constant 0 : index
    %110 = vector.load %arg11[%c0_81, %c0_82, %c0_83] : memref<2x1x128xf32, #tpu.memory_space<vmem>>, vector<1x1x128xf32>
    %111 = vector.shape_cast %110 : vector<1x1x128xf32> to vector<1x128xf32>
    %c0_84 = arith.constant 0 : index
    %c0_85 = arith.constant 0 : index
    %c0_86 = arith.constant 0 : index
    %112 = vector.load %arg12[%c0_84, %c0_85, %c0_86] : memref<2x1x128xf32, #tpu.memory_space<vmem>>, vector<1x1x128xf32>
    %113 = vector.shape_cast %112 : vector<1x1x128xf32> to vector<1x128xf32>
    %cst_87 = arith.constant dense<0.000000e+00> : vector<32xf32>
    %114 = vector.multi_reduction <add>, %109, %cst_87 [1] : vector<32x128xf32> to vector<32xf32>
    %115 = vector.shape_cast %114 : vector<32xf32> to vector<32x1xf32>
    %cst_88 = arith.constant 1.280000e+02 : f32
    %116 = vector.broadcast %cst_88 : f32 to vector<32x1xf32>
    %117 = arith.divf %115, %116 : vector<32x1xf32>
    %118 = vector.broadcast %117 : vector<32x1xf32> to vector<32x128xf32>
    %119 = arith.subf %109, %118 : vector<32x128xf32>
    %120 = arith.mulf %119, %119 : vector<32x128xf32>
    %cst_89 = arith.constant dense<0.000000e+00> : vector<32xf32>
    %121 = vector.multi_reduction <add>, %120, %cst_89 [1] : vector<32x128xf32> to vector<32xf32>
    %122 = vector.shape_cast %121 : vector<32xf32> to vector<32x1xf32>
    %cst_90 = arith.constant 1.280000e+02 : f32
    %123 = vector.broadcast %cst_90 : f32 to vector<32x1xf32>
    %124 = arith.divf %122, %123 : vector<32x1xf32>
    %125 = vector.broadcast %117 : vector<32x1xf32> to vector<32x128xf32>
    %126 = arith.subf %109, %125 : vector<32x128xf32>
    %cst_91 = arith.constant 9.99999974E-6 : f32
    %127 = vector.broadcast %cst_91 : f32 to vector<32x1xf32>
    %128 = arith.addf %124, %127 : vector<32x1xf32>
    %129 = math.rsqrt %128 : vector<32x1xf32>
    %130 = vector.broadcast %129 : vector<32x1xf32> to vector<32x128xf32>
    %131 = arith.mulf %126, %130 : vector<32x128xf32>
    %132 = vector.broadcast %111 : vector<1x128xf32> to vector<32x128xf32>
    %133 = arith.mulf %131, %132 : vector<32x128xf32>
    %134 = vector.broadcast %113 : vector<1x128xf32> to vector<32x128xf32>
    %135 = arith.addf %133, %134 : vector<32x128xf32>
    %136 = arith.truncf %135 : vector<32x128xf32> to vector<32x128xbf16>
    %c0_92 = arith.constant 0 : index
    %c0_93 = arith.constant 0 : index
    %c0_94 = arith.constant 0 : index
    %137 = vector.load %arg13[%c0_92, %c0_93, %c0_94] : memref<2x128x256xbf16, #tpu.memory_space<vmem>>, vector<1x128x256xbf16>
    %138 = vector.shape_cast %137 : vector<1x128x256xbf16> to vector<128x256xbf16>
    %cst_95 = arith.constant dense<0.000000e+00> : vector<32x256xf32>
    %139 = tpu.matmul %136, %138, %cst_95 {dimension_numbers = #tpu.dot_dimension_numbers<[1], [0], [0], [1], [0, 0, 1, 1], [], []>} : vector<32x128xbf16>, vector<128x256xbf16>, vector<32x256xf32> -> vector<32x256xf32>
    %c0_96 = arith.constant 0 : index
    %c0_97 = arith.constant 0 : index
    %c0_98 = arith.constant 0 : index
    %140 = vector.load %arg14[%c0_96, %c0_97, %c0_98] : memref<2x1x256xf32, #tpu.memory_space<vmem>>, vector<1x1x256xf32>
    %141 = vector.shape_cast %140 : vector<1x1x256xf32> to vector<1x256xf32>
    %142 = vector.broadcast %141 : vector<1x256xf32> to vector<32x256xf32>
    %143 = arith.addf %139, %142 : vector<32x256xf32>
    %144 = arith.mulf %143, %143 : vector<32x256xf32>
    %145 = arith.mulf %143, %144 : vector<32x256xf32>
    %cst_99 = arith.constant 4.471500e-02 : f32
    %146 = vector.broadcast %cst_99 : f32 to vector<32x256xf32>
    %147 = arith.mulf %146, %145 : vector<32x256xf32>
    %148 = arith.addf %143, %147 : vector<32x256xf32>
    %cst_100 = arith.constant 0.797884583 : f32
    %149 = vector.broadcast %cst_100 : f32 to vector<32x256xf32>
    %150 = arith.mulf %149, %148 : vector<32x256xf32>
    %151 = math.tanh %150 : vector<32x256xf32>
    %cst_101 = arith.constant 1.000000e+00 : f32
    %152 = vector.broadcast %cst_101 : f32 to vector<32x256xf32>
    %153 = arith.addf %152, %151 : vector<32x256xf32>
    %cst_102 = arith.constant 5.000000e-01 : f32
    %154 = vector.broadcast %cst_102 : f32 to vector<32x256xf32>
    %155 = arith.mulf %154, %153 : vector<32x256xf32>
    %156 = arith.mulf %143, %155 : vector<32x256xf32>
    %157 = arith.truncf %156 : vector<32x256xf32> to vector<32x256xbf16>
    %c0_103 = arith.constant 0 : index
    %c0_104 = arith.constant 0 : index
    %c0_105 = arith.constant 0 : index
    %158 = vector.load %arg15[%c0_103, %c0_104, %c0_105] : memref<2x256x128xbf16, #tpu.memory_space<vmem>>, vector<1x256x128xbf16>
    %159 = vector.shape_cast %158 : vector<1x256x128xbf16> to vector<256x128xbf16>
    %cst_106 = arith.constant dense<0.000000e+00> : vector<32x128xf32>
    %160 = tpu.matmul %157, %159, %cst_106 {dimension_numbers = #tpu.dot_dimension_numbers<[1], [0], [0], [1], [0, 0, 1, 1], [], []>} : vector<32x256xbf16>, vector<256x128xbf16>, vector<32x128xf32> -> vector<32x128xf32>
    %c0_107 = arith.constant 0 : index
    %c0_108 = arith.constant 0 : index
    %c0_109 = arith.constant 0 : index
    %161 = vector.load %arg16[%c0_107, %c0_108, %c0_109] : memref<2x1x128xf32, #tpu.memory_space<vmem>>, vector<1x1x128xf32>
    %162 = vector.shape_cast %161 : vector<1x1x128xf32> to vector<1x128xf32>
    %163 = vector.broadcast %162 : vector<1x128xf32> to vector<32x128xf32>
    %164 = arith.addf %160, %163 : vector<32x128xf32>
    %165 = arith.addf %135, %164 : vector<32x128xf32>
    %c0_110 = arith.constant 0 : index
    %c0_111 = arith.constant 0 : index
    %c0_112 = arith.constant 0 : index
    %166 = vector.load %arg17[%c0_110, %c0_111, %c0_112] : memref<2x1x128xf32, #tpu.memory_space<vmem>>, vector<1x1x128xf32>
    %167 = vector.shape_cast %166 : vector<1x1x128xf32> to vector<1x128xf32>
    %c0_113 = arith.constant 0 : index
    %c0_114 = arith.constant 0 : index
    %c0_115 = arith.constant 0 : index
    %168 = vector.load %arg18[%c0_113, %c0_114, %c0_115] : memref<2x1x128xf32, #tpu.memory_space<vmem>>, vector<1x1x128xf32>
    %169 = vector.shape_cast %168 : vector<1x1x128xf32> to vector<1x128xf32>
    %cst_116 = arith.constant dense<0.000000e+00> : vector<32xf32>
    %170 = vector.multi_reduction <add>, %165, %cst_116 [1] : vector<32x128xf32> to vector<32xf32>
    %171 = vector.shape_cast %170 : vector<32xf32> to vector<32x1xf32>
    %cst_117 = arith.constant 1.280000e+02 : f32
    %172 = vector.broadcast %cst_117 : f32 to vector<32x1xf32>
    %173 = arith.divf %171, %172 : vector<32x1xf32>
    %174 = vector.broadcast %173 : vector<32x1xf32> to vector<32x128xf32>
    %175 = arith.subf %165, %174 : vector<32x128xf32>
    %176 = arith.mulf %175, %175 : vector<32x128xf32>
    %cst_118 = arith.constant dense<0.000000e+00> : vector<32xf32>
    %177 = vector.multi_reduction <add>, %176, %cst_118 [1] : vector<32x128xf32> to vector<32xf32>
    %178 = vector.shape_cast %177 : vector<32xf32> to vector<32x1xf32>
    %cst_119 = arith.constant 1.280000e+02 : f32
    %179 = vector.broadcast %cst_119 : f32 to vector<32x1xf32>
    %180 = arith.divf %178, %179 : vector<32x1xf32>
    %181 = vector.broadcast %173 : vector<32x1xf32> to vector<32x128xf32>
    %182 = arith.subf %165, %181 : vector<32x128xf32>
    %cst_120 = arith.constant 9.99999974E-6 : f32
    %183 = vector.broadcast %cst_120 : f32 to vector<32x1xf32>
    %184 = arith.addf %180, %183 : vector<32x1xf32>
    %185 = math.rsqrt %184 : vector<32x1xf32>
    %186 = vector.broadcast %185 : vector<32x1xf32> to vector<32x128xf32>
    %187 = arith.mulf %182, %186 : vector<32x128xf32>
    %188 = vector.broadcast %167 : vector<1x128xf32> to vector<32x128xf32>
    %189 = arith.mulf %187, %188 : vector<32x128xf32>
    %190 = vector.broadcast %169 : vector<1x128xf32> to vector<32x128xf32>
    %191 = arith.addf %189, %190 : vector<32x128xf32>
    %192 = arith.truncf %191 : vector<32x128xf32> to vector<32x128xbf16>
    %cst_121 = arith.constant 0.000000e+00 : f32
    %193 = vector.broadcast %cst_121 : f32 to vector<32x128xf32>
    %c1_122 = arith.constant 1 : index
    %c0_123 = arith.constant 0 : index
    %c0_124 = arith.constant 0 : index
    %c0_125 = arith.constant 0 : index
    %194 = vector.load %arg3[%c1_122, %c0_123, %c0_124, %c0_125] : memref<2x2x128x64xbf16, #tpu.memory_space<vmem>>, vector<1x1x128x64xbf16>
    %195 = vector.shape_cast %194 : vector<1x1x128x64xbf16> to vector<128x64xbf16>
    %cst_126 = arith.constant dense<0.000000e+00> : vector<32x64xf32>
    %196 = tpu.matmul %192, %195, %cst_126 {dimension_numbers = #tpu.dot_dimension_numbers<[1], [0], [0], [1], [0, 0, 1, 1], [], []>} : vector<32x128xbf16>, vector<128x64xbf16>, vector<32x64xf32> -> vector<32x64xf32>
    %c1_127 = arith.constant 1 : index
    %c0_128 = arith.constant 0 : index
    %c0_129 = arith.constant 0 : index
    %c0_130 = arith.constant 0 : index
    %197 = vector.load %arg6[%c1_127, %c0_128, %c0_129, %c0_130] : memref<2x2x1x64xf32, #tpu.memory_space<vmem>>, vector<1x1x1x64xf32>
    %198 = vector.shape_cast %197 : vector<1x1x1x64xf32> to vector<1x64xf32>
    %199 = vector.broadcast %198 : vector<1x64xf32> to vector<32x64xf32>
    %200 = arith.addf %196, %199 : vector<32x64xf32>
    %c1_131 = arith.constant 1 : index
    %c0_132 = arith.constant 0 : index
    %c0_133 = arith.constant 0 : index
    %c0_134 = arith.constant 0 : index
    %201 = vector.load %arg4[%c1_131, %c0_132, %c0_133, %c0_134] : memref<2x2x128x64xbf16, #tpu.memory_space<vmem>>, vector<1x1x128x64xbf16>
    %202 = vector.shape_cast %201 : vector<1x1x128x64xbf16> to vector<128x64xbf16>
    %cst_135 = arith.constant dense<0.000000e+00> : vector<32x64xf32>
    %203 = tpu.matmul %192, %202, %cst_135 {dimension_numbers = #tpu.dot_dimension_numbers<[1], [0], [0], [1], [0, 0, 1, 1], [], []>} : vector<32x128xbf16>, vector<128x64xbf16>, vector<32x64xf32> -> vector<32x64xf32>
    %c1_136 = arith.constant 1 : index
    %c0_137 = arith.constant 0 : index
    %c0_138 = arith.constant 0 : index
    %c0_139 = arith.constant 0 : index
    %204 = vector.load %arg7[%c1_136, %c0_137, %c0_138, %c0_139] : memref<2x2x1x64xf32, #tpu.memory_space<vmem>>, vector<1x1x1x64xf32>
    %205 = vector.shape_cast %204 : vector<1x1x1x64xf32> to vector<1x64xf32>
    %206 = vector.broadcast %205 : vector<1x64xf32> to vector<32x64xf32>
    %207 = arith.addf %203, %206 : vector<32x64xf32>
    %c1_140 = arith.constant 1 : index
    %c0_141 = arith.constant 0 : index
    %c0_142 = arith.constant 0 : index
    %c0_143 = arith.constant 0 : index
    %208 = vector.load %arg5[%c1_140, %c0_141, %c0_142, %c0_143] : memref<2x2x128x64xbf16, #tpu.memory_space<vmem>>, vector<1x1x128x64xbf16>
    %209 = vector.shape_cast %208 : vector<1x1x128x64xbf16> to vector<128x64xbf16>
    %cst_144 = arith.constant dense<0.000000e+00> : vector<32x64xf32>
    %210 = tpu.matmul %192, %209, %cst_144 {dimension_numbers = #tpu.dot_dimension_numbers<[1], [0], [0], [1], [0, 0, 1, 1], [], []>} : vector<32x128xbf16>, vector<128x64xbf16>, vector<32x64xf32> -> vector<32x64xf32>
    %c1_145 = arith.constant 1 : index
    %c0_146 = arith.constant 0 : index
    %c0_147 = arith.constant 0 : index
    %c0_148 = arith.constant 0 : index
    %211 = vector.load %arg8[%c1_145, %c0_146, %c0_147, %c0_148] : memref<2x2x1x64xf32, #tpu.memory_space<vmem>>, vector<1x1x1x64xf32>
    %212 = vector.shape_cast %211 : vector<1x1x1x64xf32> to vector<1x64xf32>
    %213 = vector.broadcast %212 : vector<1x64xf32> to vector<32x64xf32>
    %214 = arith.addf %210, %213 : vector<32x64xf32>
    %215 = vector.shape_cast %200 : vector<32x64xf32> to vector<2x16x64xf32>
    %216 = arith.truncf %215 : vector<2x16x64xf32> to vector<2x16x64xbf16>
    %217 = vector.shape_cast %207 : vector<32x64xf32> to vector<2x16x64xf32>
    %218 = arith.truncf %217 : vector<2x16x64xf32> to vector<2x16x64xbf16>
    %219 = vector.shape_cast %214 : vector<32x64xf32> to vector<2x16x64xf32>
    %220 = arith.truncf %219 : vector<2x16x64xf32> to vector<2x16x64xbf16>
    "tpu.trace_start"() <{level = 10 : i32, message = "bqd,bkd->bqk"}> : () -> ()
    %cst_149 = arith.constant dense<0.000000e+00> : vector<2x16x16xf32>
    %221 = tpu.matmul %216, %218, %cst_149 {dimension_numbers = #tpu.dot_dimension_numbers<[2], [2], [1], [1], [0, 0, 0, 1, 1, 1], [0], [0]>} : vector<2x16x64xbf16>, vector<2x16x64xbf16>, vector<2x16x16xf32> -> vector<2x16x16xf32>
    "tpu.trace_stop"() : () -> ()
    %cst_150 = arith.constant 1.250000e-01 : f32
    %222 = vector.broadcast %cst_150 : f32 to vector<2x16x16xf32>
    %223 = arith.mulf %221, %222 : vector<2x16x16xf32>
    %224 = arith.addf %223, %4 : vector<2x16x16xf32>
    %cst_151 = arith.constant dense<0xFF800000> : vector<2x16xf32>
    %225 = vector.multi_reduction <maximumf>, %224, %cst_151 [2] : vector<2x16x16xf32> to vector<2x16xf32>
    %226 = vector.shape_cast %225 : vector<2x16xf32> to vector<2x16x1xf32>
    %227 = vector.broadcast %226 : vector<2x16x1xf32> to vector<2x16x16xf32>
    %228 = arith.subf %224, %227 : vector<2x16x16xf32>
    %229 = math.exp %228 : vector<2x16x16xf32>
    %cst_152 = arith.constant dense<0.000000e+00> : vector<2x16xf32>
    %230 = vector.multi_reduction <add>, %229, %cst_152 [2] : vector<2x16x16xf32> to vector<2x16xf32>
    %231 = vector.shape_cast %230 : vector<2x16xf32> to vector<2x16x1xf32>
    %232 = tpu.reciprocal %231 {approx = true} : vector<2x16x1xf32> -> vector<2x16x1xf32>
    %233 = vector.broadcast %232 : vector<2x16x1xf32> to vector<2x16x16xf32>
    %234 = arith.mulf %229, %233 : vector<2x16x16xf32>
    %235 = arith.truncf %234 : vector<2x16x16xf32> to vector<2x16x16xbf16>
    "tpu.trace_start"() <{level = 10 : i32, message = "bqk,bkd->bqd"}> : () -> ()
    %cst_153 = arith.constant dense<0.000000e+00> : vector<2x16x64xf32>
    %236 = tpu.matmul %235, %220, %cst_153 {dimension_numbers = #tpu.dot_dimension_numbers<[2], [1], [1], [2], [0, 0, 0, 1, 1, 2], [0], [0]>} : vector<2x16x16xbf16>, vector<2x16x64xbf16>, vector<2x16x64xf32> -> vector<2x16x64xf32>
    "tpu.trace_stop"() : () -> ()
    %237 = vector.shape_cast %236 : vector<2x16x64xf32> to vector<32x64xf32>
    %238 = arith.truncf %237 : vector<32x64xf32> to vector<32x64xbf16>
    %c1_154 = arith.constant 1 : index
    %c0_155 = arith.constant 0 : index
    %c0_156 = arith.constant 0 : index
    %c0_157 = arith.constant 0 : index
    %239 = vector.load %arg9[%c1_154, %c0_155, %c0_156, %c0_157] : memref<2x2x64x128xbf16, #tpu.memory_space<vmem>>, vector<1x1x64x128xbf16>
    %240 = vector.shape_cast %239 : vector<1x1x64x128xbf16> to vector<64x128xbf16>
    %cst_158 = arith.constant dense<0.000000e+00> : vector<32x128xf32>
    %241 = tpu.matmul %238, %240, %cst_158 {dimension_numbers = #tpu.dot_dimension_numbers<[1], [0], [0], [1], [0, 0, 1, 1], [], []>} : vector<32x64xbf16>, vector<64x128xbf16>, vector<32x128xf32> -> vector<32x128xf32>
    %242 = arith.addf %193, %241 : vector<32x128xf32>
    %c1_159 = arith.constant 1 : index
    %c1_160 = arith.constant 1 : index
    %c0_161 = arith.constant 0 : index
    %c0_162 = arith.constant 0 : index
    %243 = vector.load %arg3[%c1_159, %c1_160, %c0_161, %c0_162] : memref<2x2x128x64xbf16, #tpu.memory_space<vmem>>, vector<1x1x128x64xbf16>
    %244 = vector.shape_cast %243 : vector<1x1x128x64xbf16> to vector<128x64xbf16>
    %cst_163 = arith.constant dense<0.000000e+00> : vector<32x64xf32>
    %245 = tpu.matmul %192, %244, %cst_163 {dimension_numbers = #tpu.dot_dimension_numbers<[1], [0], [0], [1], [0, 0, 1, 1], [], []>} : vector<32x128xbf16>, vector<128x64xbf16>, vector<32x64xf32> -> vector<32x64xf32>
    %c1_164 = arith.constant 1 : index
    %c1_165 = arith.constant 1 : index
    %c0_166 = arith.constant 0 : index
    %c0_167 = arith.constant 0 : index
    %246 = vector.load %arg6[%c1_164, %c1_165, %c0_166, %c0_167] : memref<2x2x1x64xf32, #tpu.memory_space<vmem>>, vector<1x1x1x64xf32>
    %247 = vector.shape_cast %246 : vector<1x1x1x64xf32> to vector<1x64xf32>
    %248 = vector.broadcast %247 : vector<1x64xf32> to vector<32x64xf32>
    %249 = arith.addf %245, %248 : vector<32x64xf32>
    %c1_168 = arith.constant 1 : index
    %c1_169 = arith.constant 1 : index
    %c0_170 = arith.constant 0 : index
    %c0_171 = arith.constant 0 : index
    %250 = vector.load %arg4[%c1_168, %c1_169, %c0_170, %c0_171] : memref<2x2x128x64xbf16, #tpu.memory_space<vmem>>, vector<1x1x128x64xbf16>
    %251 = vector.shape_cast %250 : vector<1x1x128x64xbf16> to vector<128x64xbf16>
    %cst_172 = arith.constant dense<0.000000e+00> : vector<32x64xf32>
    %252 = tpu.matmul %192, %251, %cst_172 {dimension_numbers = #tpu.dot_dimension_numbers<[1], [0], [0], [1], [0, 0, 1, 1], [], []>} : vector<32x128xbf16>, vector<128x64xbf16>, vector<32x64xf32> -> vector<32x64xf32>
    %c1_173 = arith.constant 1 : index
    %c1_174 = arith.constant 1 : index
    %c0_175 = arith.constant 0 : index
    %c0_176 = arith.constant 0 : index
    %253 = vector.load %arg7[%c1_173, %c1_174, %c0_175, %c0_176] : memref<2x2x1x64xf32, #tpu.memory_space<vmem>>, vector<1x1x1x64xf32>
    %254 = vector.shape_cast %253 : vector<1x1x1x64xf32> to vector<1x64xf32>
    %255 = vector.broadcast %254 : vector<1x64xf32> to vector<32x64xf32>
    %256 = arith.addf %252, %255 : vector<32x64xf32>
    %c1_177 = arith.constant 1 : index
    %c1_178 = arith.constant 1 : index
    %c0_179 = arith.constant 0 : index
    %c0_180 = arith.constant 0 : index
    %257 = vector.load %arg5[%c1_177, %c1_178, %c0_179, %c0_180] : memref<2x2x128x64xbf16, #tpu.memory_space<vmem>>, vector<1x1x128x64xbf16>
    %258 = vector.shape_cast %257 : vector<1x1x128x64xbf16> to vector<128x64xbf16>
    %cst_181 = arith.constant dense<0.000000e+00> : vector<32x64xf32>
    %259 = tpu.matmul %192, %258, %cst_181 {dimension_numbers = #tpu.dot_dimension_numbers<[1], [0], [0], [1], [0, 0, 1, 1], [], []>} : vector<32x128xbf16>, vector<128x64xbf16>, vector<32x64xf32> -> vector<32x64xf32>
    %c1_182 = arith.constant 1 : index
    %c1_183 = arith.constant 1 : index
    %c0_184 = arith.constant 0 : index
    %c0_185 = arith.constant 0 : index
    %260 = vector.load %arg8[%c1_182, %c1_183, %c0_184, %c0_185] : memref<2x2x1x64xf32, #tpu.memory_space<vmem>>, vector<1x1x1x64xf32>
    %261 = vector.shape_cast %260 : vector<1x1x1x64xf32> to vector<1x64xf32>
    %262 = vector.broadcast %261 : vector<1x64xf32> to vector<32x64xf32>
    %263 = arith.addf %259, %262 : vector<32x64xf32>
    %264 = vector.shape_cast %249 : vector<32x64xf32> to vector<2x16x64xf32>
    %265 = arith.truncf %264 : vector<2x16x64xf32> to vector<2x16x64xbf16>
    %266 = vector.shape_cast %256 : vector<32x64xf32> to vector<2x16x64xf32>
    %267 = arith.truncf %266 : vector<2x16x64xf32> to vector<2x16x64xbf16>
    %268 = vector.shape_cast %263 : vector<32x64xf32> to vector<2x16x64xf32>
    %269 = arith.truncf %268 : vector<2x16x64xf32> to vector<2x16x64xbf16>
    "tpu.trace_start"() <{level = 10 : i32, message = "bqd,bkd->bqk"}> : () -> ()
    %cst_186 = arith.constant dense<0.000000e+00> : vector<2x16x16xf32>
    %270 = tpu.matmul %265, %267, %cst_186 {dimension_numbers = #tpu.dot_dimension_numbers<[2], [2], [1], [1], [0, 0, 0, 1, 1, 1], [0], [0]>} : vector<2x16x64xbf16>, vector<2x16x64xbf16>, vector<2x16x16xf32> -> vector<2x16x16xf32>
    "tpu.trace_stop"() : () -> ()
    %cst_187 = arith.constant 1.250000e-01 : f32
    %271 = vector.broadcast %cst_187 : f32 to vector<2x16x16xf32>
    %272 = arith.mulf %270, %271 : vector<2x16x16xf32>
    %273 = arith.addf %272, %4 : vector<2x16x16xf32>
    %cst_188 = arith.constant dense<0xFF800000> : vector<2x16xf32>
    %274 = vector.multi_reduction <maximumf>, %273, %cst_188 [2] : vector<2x16x16xf32> to vector<2x16xf32>
    %275 = vector.shape_cast %274 : vector<2x16xf32> to vector<2x16x1xf32>
    %276 = vector.broadcast %275 : vector<2x16x1xf32> to vector<2x16x16xf32>
    %277 = arith.subf %273, %276 : vector<2x16x16xf32>
    %278 = math.exp %277 : vector<2x16x16xf32>
    %cst_189 = arith.constant dense<0.000000e+00> : vector<2x16xf32>
    %279 = vector.multi_reduction <add>, %278, %cst_189 [2] : vector<2x16x16xf32> to vector<2x16xf32>
    %280 = vector.shape_cast %279 : vector<2x16xf32> to vector<2x16x1xf32>
    %281 = tpu.reciprocal %280 {approx = true} : vector<2x16x1xf32> -> vector<2x16x1xf32>
    %282 = vector.broadcast %281 : vector<2x16x1xf32> to vector<2x16x16xf32>
    %283 = arith.mulf %278, %282 : vector<2x16x16xf32>
    %284 = arith.truncf %283 : vector<2x16x16xf32> to vector<2x16x16xbf16>
    "tpu.trace_start"() <{level = 10 : i32, message = "bqk,bkd->bqd"}> : () -> ()
    %cst_190 = arith.constant dense<0.000000e+00> : vector<2x16x64xf32>
    %285 = tpu.matmul %284, %269, %cst_190 {dimension_numbers = #tpu.dot_dimension_numbers<[2], [1], [1], [2], [0, 0, 0, 1, 1, 2], [0], [0]>} : vector<2x16x16xbf16>, vector<2x16x64xbf16>, vector<2x16x64xf32> -> vector<2x16x64xf32>
    "tpu.trace_stop"() : () -> ()
    %286 = vector.shape_cast %285 : vector<2x16x64xf32> to vector<32x64xf32>
    %287 = arith.truncf %286 : vector<32x64xf32> to vector<32x64xbf16>
    %c1_191 = arith.constant 1 : index
    %c1_192 = arith.constant 1 : index
    %c0_193 = arith.constant 0 : index
    %c0_194 = arith.constant 0 : index
    %288 = vector.load %arg9[%c1_191, %c1_192, %c0_193, %c0_194] : memref<2x2x64x128xbf16, #tpu.memory_space<vmem>>, vector<1x1x64x128xbf16>
    %289 = vector.shape_cast %288 : vector<1x1x64x128xbf16> to vector<64x128xbf16>
    %cst_195 = arith.constant dense<0.000000e+00> : vector<32x128xf32>
    %290 = tpu.matmul %287, %289, %cst_195 {dimension_numbers = #tpu.dot_dimension_numbers<[1], [0], [0], [1], [0, 0, 1, 1], [], []>} : vector<32x64xbf16>, vector<64x128xbf16>, vector<32x128xf32> -> vector<32x128xf32>
    %291 = arith.addf %242, %290 : vector<32x128xf32>
    %c1_196 = arith.constant 1 : index
    %c0_197 = arith.constant 0 : index
    %c0_198 = arith.constant 0 : index
    %292 = vector.load %arg10[%c1_196, %c0_197, %c0_198] : memref<2x1x128xf32, #tpu.memory_space<vmem>>, vector<1x1x128xf32>
    %293 = vector.shape_cast %292 : vector<1x1x128xf32> to vector<1x128xf32>
    %294 = vector.broadcast %293 : vector<1x128xf32> to vector<32x128xf32>
    %295 = arith.addf %291, %294 : vector<32x128xf32>
    %296 = arith.addf %191, %295 : vector<32x128xf32>
    %c1_199 = arith.constant 1 : index
    %c0_200 = arith.constant 0 : index
    %c0_201 = arith.constant 0 : index
    %297 = vector.load %arg11[%c1_199, %c0_200, %c0_201] : memref<2x1x128xf32, #tpu.memory_space<vmem>>, vector<1x1x128xf32>
    %298 = vector.shape_cast %297 : vector<1x1x128xf32> to vector<1x128xf32>
    %c1_202 = arith.constant 1 : index
    %c0_203 = arith.constant 0 : index
    %c0_204 = arith.constant 0 : index
    %299 = vector.load %arg12[%c1_202, %c0_203, %c0_204] : memref<2x1x128xf32, #tpu.memory_space<vmem>>, vector<1x1x128xf32>
    %300 = vector.shape_cast %299 : vector<1x1x128xf32> to vector<1x128xf32>
    %cst_205 = arith.constant dense<0.000000e+00> : vector<32xf32>
    %301 = vector.multi_reduction <add>, %296, %cst_205 [1] : vector<32x128xf32> to vector<32xf32>
    %302 = vector.shape_cast %301 : vector<32xf32> to vector<32x1xf32>
    %cst_206 = arith.constant 1.280000e+02 : f32
    %303 = vector.broadcast %cst_206 : f32 to vector<32x1xf32>
    %304 = arith.divf %302, %303 : vector<32x1xf32>
    %305 = vector.broadcast %304 : vector<32x1xf32> to vector<32x128xf32>
    %306 = arith.subf %296, %305 : vector<32x128xf32>
    %307 = arith.mulf %306, %306 : vector<32x128xf32>
    %cst_207 = arith.constant dense<0.000000e+00> : vector<32xf32>
    %308 = vector.multi_reduction <add>, %307, %cst_207 [1] : vector<32x128xf32> to vector<32xf32>
    %309 = vector.shape_cast %308 : vector<32xf32> to vector<32x1xf32>
    %cst_208 = arith.constant 1.280000e+02 : f32
    %310 = vector.broadcast %cst_208 : f32 to vector<32x1xf32>
    %311 = arith.divf %309, %310 : vector<32x1xf32>
    %312 = vector.broadcast %304 : vector<32x1xf32> to vector<32x128xf32>
    %313 = arith.subf %296, %312 : vector<32x128xf32>
    %cst_209 = arith.constant 9.99999974E-6 : f32
    %314 = vector.broadcast %cst_209 : f32 to vector<32x1xf32>
    %315 = arith.addf %311, %314 : vector<32x1xf32>
    %316 = math.rsqrt %315 : vector<32x1xf32>
    %317 = vector.broadcast %316 : vector<32x1xf32> to vector<32x128xf32>
    %318 = arith.mulf %313, %317 : vector<32x128xf32>
    %319 = vector.broadcast %298 : vector<1x128xf32> to vector<32x128xf32>
    %320 = arith.mulf %318, %319 : vector<32x128xf32>
    %321 = vector.broadcast %300 : vector<1x128xf32> to vector<32x128xf32>
    %322 = arith.addf %320, %321 : vector<32x128xf32>
    %323 = arith.truncf %322 : vector<32x128xf32> to vector<32x128xbf16>
    %c1_210 = arith.constant 1 : index
    %c0_211 = arith.constant 0 : index
    %c0_212 = arith.constant 0 : index
    %324 = vector.load %arg13[%c1_210, %c0_211, %c0_212] : memref<2x128x256xbf16, #tpu.memory_space<vmem>>, vector<1x128x256xbf16>
    %325 = vector.shape_cast %324 : vector<1x128x256xbf16> to vector<128x256xbf16>
    %cst_213 = arith.constant dense<0.000000e+00> : vector<32x256xf32>
    %326 = tpu.matmul %323, %325, %cst_213 {dimension_numbers = #tpu.dot_dimension_numbers<[1], [0], [0], [1], [0, 0, 1, 1], [], []>} : vector<32x128xbf16>, vector<128x256xbf16>, vector<32x256xf32> -> vector<32x256xf32>
    %c1_214 = arith.constant 1 : index
    %c0_215 = arith.constant 0 : index
    %c0_216 = arith.constant 0 : index
    %327 = vector.load %arg14[%c1_214, %c0_215, %c0_216] : memref<2x1x256xf32, #tpu.memory_space<vmem>>, vector<1x1x256xf32>
    %328 = vector.shape_cast %327 : vector<1x1x256xf32> to vector<1x256xf32>
    %329 = vector.broadcast %328 : vector<1x256xf32> to vector<32x256xf32>
    %330 = arith.addf %326, %329 : vector<32x256xf32>
    %331 = arith.mulf %330, %330 : vector<32x256xf32>
    %332 = arith.mulf %330, %331 : vector<32x256xf32>
    %cst_217 = arith.constant 4.471500e-02 : f32
    %333 = vector.broadcast %cst_217 : f32 to vector<32x256xf32>
    %334 = arith.mulf %333, %332 : vector<32x256xf32>
    %335 = arith.addf %330, %334 : vector<32x256xf32>
    %cst_218 = arith.constant 0.797884583 : f32
    %336 = vector.broadcast %cst_218 : f32 to vector<32x256xf32>
    %337 = arith.mulf %336, %335 : vector<32x256xf32>
    %338 = math.tanh %337 : vector<32x256xf32>
    %cst_219 = arith.constant 1.000000e+00 : f32
    %339 = vector.broadcast %cst_219 : f32 to vector<32x256xf32>
    %340 = arith.addf %339, %338 : vector<32x256xf32>
    %cst_220 = arith.constant 5.000000e-01 : f32
    %341 = vector.broadcast %cst_220 : f32 to vector<32x256xf32>
    %342 = arith.mulf %341, %340 : vector<32x256xf32>
    %343 = arith.mulf %330, %342 : vector<32x256xf32>
    %344 = arith.truncf %343 : vector<32x256xf32> to vector<32x256xbf16>
    %c1_221 = arith.constant 1 : index
    %c0_222 = arith.constant 0 : index
    %c0_223 = arith.constant 0 : index
    %345 = vector.load %arg15[%c1_221, %c0_222, %c0_223] : memref<2x256x128xbf16, #tpu.memory_space<vmem>>, vector<1x256x128xbf16>
    %346 = vector.shape_cast %345 : vector<1x256x128xbf16> to vector<256x128xbf16>
    %cst_224 = arith.constant dense<0.000000e+00> : vector<32x128xf32>
    %347 = tpu.matmul %344, %346, %cst_224 {dimension_numbers = #tpu.dot_dimension_numbers<[1], [0], [0], [1], [0, 0, 1, 1], [], []>} : vector<32x256xbf16>, vector<256x128xbf16>, vector<32x128xf32> -> vector<32x128xf32>
    %c1_225 = arith.constant 1 : index
    %c0_226 = arith.constant 0 : index
    %c0_227 = arith.constant 0 : index
    %348 = vector.load %arg16[%c1_225, %c0_226, %c0_227] : memref<2x1x128xf32, #tpu.memory_space<vmem>>, vector<1x1x128xf32>
    %349 = vector.shape_cast %348 : vector<1x1x128xf32> to vector<1x128xf32>
    %350 = vector.broadcast %349 : vector<1x128xf32> to vector<32x128xf32>
    %351 = arith.addf %347, %350 : vector<32x128xf32>
    %352 = arith.addf %322, %351 : vector<32x128xf32>
    %c1_228 = arith.constant 1 : index
    %c0_229 = arith.constant 0 : index
    %c0_230 = arith.constant 0 : index
    %353 = vector.load %arg17[%c1_228, %c0_229, %c0_230] : memref<2x1x128xf32, #tpu.memory_space<vmem>>, vector<1x1x128xf32>
    %354 = vector.shape_cast %353 : vector<1x1x128xf32> to vector<1x128xf32>
    %c1_231 = arith.constant 1 : index
    %c0_232 = arith.constant 0 : index
    %c0_233 = arith.constant 0 : index
    %355 = vector.load %arg18[%c1_231, %c0_232, %c0_233] : memref<2x1x128xf32, #tpu.memory_space<vmem>>, vector<1x1x128xf32>
    %356 = vector.shape_cast %355 : vector<1x1x128xf32> to vector<1x128xf32>
    %cst_234 = arith.constant dense<0.000000e+00> : vector<32xf32>
    %357 = vector.multi_reduction <add>, %352, %cst_234 [1] : vector<32x128xf32> to vector<32xf32>
    %358 = vector.shape_cast %357 : vector<32xf32> to vector<32x1xf32>
    %cst_235 = arith.constant 1.280000e+02 : f32
    %359 = vector.broadcast %cst_235 : f32 to vector<32x1xf32>
    %360 = arith.divf %358, %359 : vector<32x1xf32>
    %361 = vector.broadcast %360 : vector<32x1xf32> to vector<32x128xf32>
    %362 = arith.subf %352, %361 : vector<32x128xf32>
    %363 = arith.mulf %362, %362 : vector<32x128xf32>
    %cst_236 = arith.constant dense<0.000000e+00> : vector<32xf32>
    %364 = vector.multi_reduction <add>, %363, %cst_236 [1] : vector<32x128xf32> to vector<32xf32>
    %365 = vector.shape_cast %364 : vector<32xf32> to vector<32x1xf32>
    %cst_237 = arith.constant 1.280000e+02 : f32
    %366 = vector.broadcast %cst_237 : f32 to vector<32x1xf32>
    %367 = arith.divf %365, %366 : vector<32x1xf32>
    %368 = vector.broadcast %360 : vector<32x1xf32> to vector<32x128xf32>
    %369 = arith.subf %352, %368 : vector<32x128xf32>
    %cst_238 = arith.constant 9.99999974E-6 : f32
    %370 = vector.broadcast %cst_238 : f32 to vector<32x1xf32>
    %371 = arith.addf %367, %370 : vector<32x1xf32>
    %372 = math.rsqrt %371 : vector<32x1xf32>
    %373 = vector.broadcast %372 : vector<32x1xf32> to vector<32x128xf32>
    %374 = arith.mulf %369, %373 : vector<32x128xf32>
    %375 = vector.broadcast %354 : vector<1x128xf32> to vector<32x128xf32>
    %376 = arith.mulf %374, %375 : vector<32x128xf32>
    %377 = vector.broadcast %356 : vector<1x128xf32> to vector<32x128xf32>
    %378 = arith.addf %376, %377 : vector<32x128xf32>
    %379 = vector.shape_cast %378 : vector<32x128xf32> to vector<2x16x128xf32>
    %c0_239 = arith.constant 0 : index
    %c0_240 = arith.constant 0 : index
    %c0_241 = arith.constant 0 : index
    %380 = vector.load %arg19[%c0_239, %c0_240, %c0_241] : memref<2x16x128xf32, #tpu.memory_space<vmem>>, vector<2x16x128xf32>
    tpu.vector_store %arg19[%c0_239, %c0_240, %c0_241], %379 {strides = array<i32>} : memref<2x16x128xf32, #tpu.memory_space<vmem>>, vector<2x16x128xf32>,
    return
  }
  func.func @transform_0(%arg0: i32) -> (i32, i32, i32) {
    %c0_i32 = arith.constant 0 : i32
    %c0_i32_0 = arith.constant 0 : i32
    %c0_i32_1 = arith.constant 0 : i32
    return %arg0, %c0_i32, %c0_i32_0 : i32, i32, i32
  }
  func.func @transform_1(%arg0: i32) -> (i32, i32, i32) {
    %c0_i32 = arith.constant 0 : i32
    %c0_i32_0 = arith.constant 0 : i32
    %c0_i32_1 = arith.constant 0 : i32
    return %arg0, %c0_i32, %c0_i32_0 : i32, i32, i32
  }
  func.func @transform_2(%arg0: i32) -> (i32, i32, i32, i32) {
    %c0_i32 = arith.constant 0 : i32
    %c0_i32_0 = arith.constant 0 : i32
    %c0_i32_1 = arith.constant 0 : i32
    %c0_i32_2 = arith.constant 0 : i32
    %c0_i32_3 = arith.constant 0 : i32
    return %c0_i32, %c0_i32_0, %c0_i32_1, %c0_i32_2 : i32, i32, i32, i32
  }
  func.func @transform_3(%arg0: i32) -> (i32, i32, i32, i32) {
    %c0_i32 = arith.constant 0 : i32
    %c0_i32_0 = arith.constant 0 : i32
    %c0_i32_1 = arith.constant 0 : i32
    %c0_i32_2 = arith.constant 0 : i32
    %c0_i32_3 = arith.constant 0 : i32
    return %c0_i32, %c0_i32_0, %c0_i32_1, %c0_i32_2 : i32, i32, i32, i32
  }
  func.func @transform_4(%arg0: i32) -> (i32, i32, i32, i32) {
    %c0_i32 = arith.constant 0 : i32
    %c0_i32_0 = arith.constant 0 : i32
    %c0_i32_1 = arith.constant 0 : i32
    %c0_i32_2 = arith.constant 0 : i32
    %c0_i32_3 = arith.constant 0 : i32
    return %c0_i32, %c0_i32_0, %c0_i32_1, %c0_i32_2 : i32, i32, i32, i32
  }
  func.func @transform_5(%arg0: i32) -> (i32, i32, i32, i32) {
    %c0_i32 = arith.constant 0 : i32
    %c0_i32_0 = arith.constant 0 : i32
    %c0_i32_1 = arith.constant 0 : i32
    %c0_i32_2 = arith.constant 0 : i32
    %c0_i32_3 = arith.constant 0 : i32
    return %c0_i32, %c0_i32_0, %c0_i32_1, %c0_i32_2 : i32, i32, i32, i32
  }
  func.func @transform_6(%arg0: i32) -> (i32, i32, i32, i32) {
    %c0_i32 = arith.constant 0 : i32
    %c0_i32_0 = arith.constant 0 : i32
    %c0_i32_1 = arith.constant 0 : i32
    %c0_i32_2 = arith.constant 0 : i32
    %c0_i32_3 = arith.constant 0 : i32
    return %c0_i32, %c0_i32_0, %c0_i32_1, %c0_i32_2 : i32, i32, i32, i32
  }
  func.func @transform_7(%arg0: i32) -> (i32, i32, i32, i32) {
    %c0_i32 = arith.constant 0 : i32
    %c0_i32_0 = arith.constant 0 : i32
    %c0_i32_1 = arith.constant 0 : i32
    %c0_i32_2 = arith.constant 0 : i32
    %c0_i32_3 = arith.constant 0 : i32
    return %c0_i32, %c0_i32_0, %c0_i32_1, %c0_i32_2 : i32, i32, i32, i32
  }
  func.func @transform_8(%arg0: i32) -> (i32, i32, i32, i32) {
    %c0_i32 = arith.constant 0 : i32
    %c0_i32_0 = arith.constant 0 : i32
    %c0_i32_1 = arith.constant 0 : i32
    %c0_i32_2 = arith.constant 0 : i32
    %c0_i32_3 = arith.constant 0 : i32
    return %c0_i32, %c0_i32_0, %c0_i32_1, %c0_i32_2 : i32, i32, i32, i32
  }
  func.func @transform_9(%arg0: i32) -> (i32, i32, i32) {
    %c0_i32 = arith.constant 0 : i32
    %c0_i32_0 = arith.constant 0 : i32
    %c0_i32_1 = arith.constant 0 : i32
    %c0_i32_2 = arith.constant 0 : i32
    return %c0_i32, %c0_i32_0, %c0_i32_1 : i32, i32, i32
  }
  func.func @transform_10(%arg0: i32) -> (i32, i32, i32) {
    %c0_i32 = arith.constant 0 : i32
    %c0_i32_0 = arith.constant 0 : i32
    %c0_i32_1 = arith.constant 0 : i32
    %c0_i32_2 = arith.constant 0 : i32
    return %c0_i32, %c0_i32_0, %c0_i32_1 : i32, i32, i32
  }
  func.func @transform_11(%arg0: i32) -> (i32, i32, i32) {
    %c0_i32 = arith.constant 0 : i32
    %c0_i32_0 = arith.constant 0 : i32
    %c0_i32_1 = arith.constant 0 : i32
    %c0_i32_2 = arith.constant 0 : i32
    return %c0_i32, %c0_i32_0, %c0_i32_1 : i32, i32, i32
  }
  func.func @transform_12(%arg0: i32) -> (i32, i32, i32) {
    %c0_i32 = arith.constant 0 : i32
    %c0_i32_0 = arith.constant 0 : i32
    %c0_i32_1 = arith.constant 0 : i32
    %c0_i32_2 = arith.constant 0 : i32
    return %c0_i32, %c0_i32_0, %c0_i32_1 : i32, i32, i32
  }
  func.func @transform_13(%arg0: i32) -> (i32, i32, i32) {
    %c0_i32 = arith.constant 0 : i32
    %c0_i32_0 = arith.constant 0 : i32
    %c0_i32_1 = arith.constant 0 : i32
    %c0_i32_2 = arith.constant 0 : i32
    return %c0_i32, %c0_i32_0, %c0_i32_1 : i32, i32, i32
  }
  func.func @transform_14(%arg0: i32) -> (i32, i32, i32) {
    %c0_i32 = arith.constant 0 : i32
    %c0_i32_0 = arith.constant 0 : i32
    %c0_i32_1 = arith.constant 0 : i32
    %c0_i32_2 = arith.constant 0 : i32
    return %c0_i32, %c0_i32_0, %c0_i32_1 : i32, i32, i32
  }
  func.func @transform_15(%arg0: i32) -> (i32, i32, i32) {
    %c0_i32 = arith.constant 0 : i32
    %c0_i32_0 = arith.constant 0 : i32
    %c0_i32_1 = arith.constant 0 : i32
    %c0_i32_2 = arith.constant 0 : i32
    return %c0_i32, %c0_i32_0, %c0_i32_1 : i32, i32, i32
  }
  func.func @transform_16(%arg0: i32) -> (i32, i32, i32) {
    %c0_i32 = arith.constant 0 : i32
    %c0_i32_0 = arith.constant 0 : i32
    %c0_i32_1 = arith.constant 0 : i32
    %c0_i32_2 = arith.constant 0 : i32
    return %c0_i32, %c0_i32_0, %c0_i32_1 : i32, i32, i32
  }
  func.func @transform_17(%arg0: i32) -> (i32, i32, i32) {
    %c0_i32 = arith.constant 0 : i32
    %c0_i32_0 = arith.constant 0 : i32
    %c0_i32_1 = arith.constant 0 : i32
    %c0_i32_2 = arith.constant 0 : i32
    return %c0_i32, %c0_i32_0, %c0_i32_1 : i32, i32, i32
  }
  func.func @transform_18(%arg0: i32) -> (i32, i32, i32) {
    %c0_i32 = arith.constant 0 : i32
    %c0_i32_0 = arith.constant 0 : i32
    %c0_i32_1 = arith.constant 0 : i32
    return %arg0, %c0_i32, %c0_i32_0 : i32, i32, i32
  }
}

</mosaic_0001>

<llo_original>
// kernel: tpu_custom_call.1
$region0: #{tpu_custom_call.1}
  #allocation0 [shape = 'u32[]', space=smem, size = 0x4, offset = 0x4, fixed_abs, tag = 'smem constant byte address 0x4 - core index']
  #allocation1 [shape = 'u32[72,128]{1,0:T(1,128)}', space=vmem, size = 0x9000, scoped, tag = 'internal scratch']
  %s0 = inlined_call_operand.vmem [shape: f32[4,16,128], index: 0, kind: input, shape index: {}]
  %s1 = inlined_call_operand.vmem [shape: f32[4,1,16], index: 1, kind: input, shape index: {}]
  %s2 = inlined_call_operand.vmem [shape: bf16[2,2,128,64], index: 2, kind: input, shape index: {}]
  %s3 = inlined_call_operand.vmem [shape: bf16[2,2,128,64], index: 3, kind: input, shape index: {}]
  %s4 = inlined_call_operand.vmem [shape: bf16[2,2,128,64], index: 4, kind: input, shape index: {}]
  %s5 = inlined_call_operand.vmem [shape: f32[2,2,1,64], index: 5, kind: input, shape index: {}]
  %s6 = inlined_call_operand.vmem [shape: f32[2,2,1,64], index: 6, kind: input, shape index: {}]
  %s7 = inlined_call_operand.vmem [shape: f32[2,2,1,64], index: 7, kind: input, shape index: {}]
  %s8 = inlined_call_operand.vmem [shape: bf16[2,2,64,128], index: 8, kind: input, shape index: {}]
  %s9 = inlined_call_operand.vmem [shape: f32[2,1,128], index: 9, kind: input, shape index: {}]
  %s10 = inlined_call_operand.vmem [shape: f32[2,1,128], index: 10, kind: input, shape index: {}]
  %s11 = inlined_call_operand.vmem [shape: f32[2,1,128], index: 11, kind: input, shape index: {}]
  %s12 = inlined_call_operand.vmem [shape: bf16[2,128,256], index: 12, kind: input, shape index: {}]
  %s13 = inlined_call_operand.vmem [shape: f32[2,1,256], index: 13, kind: input, shape index: {}]
  %s14 = inlined_call_operand.vmem [shape: bf16[2,256,128], index: 14, kind: input, shape index: {}]
  %s15 = inlined_call_operand.vmem [shape: f32[2,1,128], index: 15, kind: input, shape index: {}]
  %s16 = inlined_call_operand.vmem [shape: f32[2,1,128], index: 16, kind: input, shape index: {}]
  %s17 = inlined_call_operand.vmem [shape: f32[2,1,128], index: 17, kind: input, shape index: {}]
  %s18 = inlined_call_operand.hbm [shape: f32[4,16,128], index: 18, kind: output, shape index: {}]
  %s19 = sld [smem:[#allocation0]]
  $region105: #{tpu_custom_call.1} parent=0
    _
  %s21 = ssub.s32 1, %s19
  %s22 = scalar_select 0, %s21, %s19
  $region1: #{tpu_custom_call.1} parent=0
    #allocation2 [shape = 'u8[32768]{0}', space=vmem, size = 0x8000, scoped, tag = 'output window, operand 0']
    #allocation3 [shape = 's32[2]{0}', space=sflag, size = 0x8, scoped, tag = 'scoped memory for tpu_custom_call.1']
    %23 = vsyncpa [#allocation3], 0
    %s24 = scalar_lea.sflag [#allocation3], 1
    %25 = vsyncpa %s24, 0
    loop: start=0, step=1, limit=4
    $region2: #{tpu_custom_call.1} parent=1 // loop_pre_header
      _
    $region3: #{tpu_custom_call.1} parent=1 // loop_header
      %s27 = sphi 0, %s31
      %p28 = scmp.ge.s32.totalorder %s27, 4
      %s37 = sphi 0, %s39
      %s40 = sphi 0, %s37
      %s41 = sphi 0, %s40
      %s57 = sphi 0, %s41
      %s63 = sphi 0, %s65
      %s66 = sphi 0, %s63
      %s67 = sphi 0, %s66
      %s83 = sphi 0, %s67
      %s87 = sphi 0, %s87
      %s89 = sphi 0, %s87
      %s90 = sphi 0, %s89
      %s104 = sphi 0, %s90
      %s108 = sphi 0, %s108
      %s110 = sphi 0, %s108
      %s111 = sphi 0, %s110
      %s125 = sphi 0, %s111
      %s129 = sphi 0, %s129
      %s131 = sphi 0, %s129
      %s132 = sphi 0, %s131
      %s146 = sphi 0, %s132
      %s150 = sphi 0, %s150
      %s152 = sphi 0, %s150
      %s153 = sphi 0, %s152
      %s167 = sphi 0, %s153
      %s171 = sphi 0, %s171
      %s173 = sphi 0, %s171
      %s174 = sphi 0, %s173
      %s188 = sphi 0, %s174
      %s192 = sphi 0, %s192
      %s194 = sphi 0, %s192
      %s195 = sphi 0, %s194
      %s209 = sphi 0, %s195
      %s213 = sphi 0, %s213
      %s215 = sphi 0, %s213
      %s216 = sphi 0, %s215
      %s230 = sphi 0, %s216
      %s234 = sphi 0, %s234
      %s236 = sphi 0, %s234
      %s237 = sphi 0, %s236
      %s251 = sphi 0, %s237
      %s255 = sphi 0, %s255
      %s257 = sphi 0, %s255
      %s258 = sphi 0, %s257
      %s272 = sphi 0, %s258
      %s276 = sphi 0, %s276
      %s278 = sphi 0, %s276
      %s279 = sphi 0, %s278
      %s293 = sphi 0, %s279
      %s297 = sphi 0, %s297
      %s299 = sphi 0, %s297
      %s300 = sphi 0, %s299
      %s314 = sphi 0, %s300
      %s318 = sphi 0, %s318
      %s320 = sphi 0, %s318
      %s321 = sphi 0, %s320
      %s335 = sphi 0, %s321
      %s339 = sphi 0, %s339
      %s341 = sphi 0, %s339
      %s342 = sphi 0, %s341
      %s356 = sphi 0, %s342
      %s360 = sphi 0, %s360
      %s362 = sphi 0, %s360
      %s363 = sphi 0, %s362
      %s377 = sphi 0, %s363
      %s381 = sphi 0, %s381
      %s383 = sphi 0, %s381
      %s384 = sphi 0, %s383
      %s398 = sphi 0, %s384
      %s402 = sphi 0, %s402
      %s404 = sphi 0, %s402
      %s405 = sphi 0, %s404
      %s419 = sphi 0, %s405
      %s425 = sphi 0, %s427
      %s428 = sphi 0, %s425
      %s429 = sphi 0, %s428
      %s445 = sphi 0, %s429
    $region4: #{tpu_custom_call.1} parent=1 // loop_header_branch
      %30 = sbr.rel (%p28) target = $region8
    $region5: #{tpu_custom_call.1} parent=1 // loop_body
      %s32 = ssub.s32 %s27, 1
      %s33 = ssub.s32 %s27, 2
      %s34 = sadd.s32 %s27, 1
      %s35 = ssub.s32 %s27, %s34
      %p36 = scmp.eq.s32.totalorder %s35, 0
      %s38 = sadd.s32 %s37, 1
      %s39 = scalar_select %p36, %s37, %s38
      %p42 = pneg %p36
      %p43 = scmp.eq.s32.totalorder %s27, 1
      %p44 = por %p42, %p43
      %p45 = scmp.ne.s32.totalorder %s37, %s40
      %p46 = scmp.eq.s32.totalorder %s27, 0
      %p47 = por %p45, %p46
      %p48 = scmp.ne.s32.totalorder %s37, %s40
      %p49 = scmp.eq.s32.totalorder %s32, 1
      %p50 = por %p48, %p49
      %p51 = scmp.ne.s32.totalorder %s40, %s41
      %p52 = scmp.eq.s32.totalorder %s32, 0
      %p53 = por %p51, %p52
      %p54 = scmp.ne.s32.totalorder %s40, %s41
      %p55 = scmp.eq.s32.totalorder %s33, 1
      %p56 = por %p54, %p55
      %p58 = scmp.ne.s32.totalorder %s41, %s57
      %p59 = scmp.eq.s32.totalorder %s33, 0
      %p60 = por %p58, %p59
      %s61 = ssub.s32 %s27, %s34
      %p62 = scmp.eq.s32.totalorder %s61, 0
      %s64 = sadd.s32 %s63, 1
      %s65 = scalar_select %p62, %s63, %s64
      %p68 = pneg %p62
      %p69 = scmp.eq.s32.totalorder %s27, 1
      %p70 = por %p68, %p69
      %p71 = scmp.ne.s32.totalorder %s63, %s66
      %p72 = scmp.eq.s32.totalorder %s27, 0
      %p73 = por %p71, %p72
      %p74 = scmp.ne.s32.totalorder %s63, %s66
      %p75 = scmp.eq.s32.totalorder %s32, 1
      %p76 = por %p74, %p75
      %p77 = scmp.ne.s32.totalorder %s66, %s67
      %p78 = scmp.eq.s32.totalorder %s32, 0
      %p79 = por %p77, %p78
      %p80 = scmp.ne.s32.totalorder %s66, %s67
      %p81 = scmp.eq.s32.totalorder %s33, 1
      %p82 = por %p80, %p81
      %p84 = scmp.ne.s32.totalorder %s67, %s83
      %p85 = scmp.eq.s32.totalorder %s33, 0
      %p86 = por %p84, %p85
      %s88 = sadd.s32 %s87, 1
      %p91 = scmp.eq.s32.totalorder %s27, 1
      %p92 = scmp.ne.s32.totalorder %s87, %s89
      %p93 = scmp.eq.s32.totalorder %s27, 0
      %p94 = por %p92, %p93
      %p95 = scmp.ne.s32.totalorder %s87, %s89
      %p96 = scmp.eq.s32.totalorder %s32, 1
      %p97 = por %p95, %p96
      %p98 = scmp.ne.s32.totalorder %s89, %s90
      %p99 = scmp.eq.s32.totalorder %s32, 0
      %p100 = por %p98, %p99
      %p101 = scmp.ne.s32.totalorder %s89, %s90
      %p102 = scmp.eq.s32.totalorder %s33, 1
      %p103 = por %p101, %p102
      %p105 = scmp.ne.s32.totalorder %s90, %s104
      %p106 = scmp.eq.s32.totalorder %s33, 0
      %p107 = por %p105, %p106
      %s109 = sadd.s32 %s108, 1
      %p112 = scmp.eq.s32.totalorder %s27, 1
      %p113 = scmp.ne.s32.totalorder %s108, %s110
      %p114 = scmp.eq.s32.totalorder %s27, 0
      %p115 = por %p113, %p114
      %p116 = scmp.ne.s32.totalorder %s108, %s110
      %p117 = scmp.eq.s32.totalorder %s32, 1
      %p118 = por %p116, %p117
      %p119 = scmp.ne.s32.totalorder %s110, %s111
      %p120 = scmp.eq.s32.totalorder %s32, 0
      %p121 = por %p119, %p120
      %p122 = scmp.ne.s32.totalorder %s110, %s111
      %p123 = scmp.eq.s32.totalorder %s33, 1
      %p124 = por %p122, %p123
      %p126 = scmp.ne.s32.totalorder %s111, %s125
      %p127 = scmp.eq.s32.totalorder %s33, 0
      %p128 = por %p126, %p127
      %s130 = sadd.s32 %s129, 1
      %p133 = scmp.eq.s32.totalorder %s27, 1
      %p134 = scmp.ne.s32.totalorder %s129, %s131
      %p135 = scmp.eq.s32.totalorder %s27, 0
      %p136 = por %p134, %p135
      %p137 = scmp.ne.s32.totalorder %s129, %s131
      %p138 = scmp.eq.s32.totalorder %s32, 1
      %p139 = por %p137, %p138
      %p140 = scmp.ne.s32.totalorder %s131, %s132
      %p141 = scmp.eq.s32.totalorder %s32, 0
      %p142 = por %p140, %p141
      %p143 = scmp.ne.s32.totalorder %s131, %s132
      %p144 = scmp.eq.s32.totalorder %s33, 1
      %p145 = por %p143, %p144
      %p147 = scmp.ne.s32.totalorder %s132, %s146
      %p148 = scmp.eq.s32.totalorder %s33, 0
      %p149 = por %p147, %p148
      %s151 = sadd.s32 %s150, 1
      %p154 = scmp.eq.s32.totalorder %s27, 1
      %p155 = scmp.ne.s32.totalorder %s150, %s152
      %p156 = scmp.eq.s32.totalorder %s27, 0
      %p157 = por %p155, %p156
      %p158 = scmp.ne.s32.totalorder %s150, %s152
      %p159 = scmp.eq.s32.totalorder %s32, 1
      %p160 = por %p158, %p159
      %p161 = scmp.ne.s32.totalorder %s152, %s153
      %p162 = scmp.eq.s32.totalorder %s32, 0
      %p163 = por %p161, %p162
      %p164 = scmp.ne.s32.totalorder %s152, %s153
      %p165 = scmp.eq.s32.totalorder %s33, 1
      %p166 = por %p164, %p165
      %p168 = scmp.ne.s32.totalorder %s153, %s167
      %p169 = scmp.eq.s32.totalorder %s33, 0
      %p170 = por %p168, %p169
      %s172 = sadd.s32 %s171, 1
      %p175 = scmp.eq.s32.totalorder %s27, 1
      %p176 = scmp.ne.s32.totalorder %s171, %s173
      %p177 = scmp.eq.s32.totalorder %s27, 0
      %p178 = por %p176, %p177
      %p179 = scmp.ne.s32.totalorder %s171, %s173
      %p180 = scmp.eq.s32.totalorder %s32, 1
      %p181 = por %p179, %p180
      %p182 = scmp.ne.s32.totalorder %s173, %s174
      %p183 = scmp.eq.s32.totalorder %s32, 0
      %p184 = por %p182, %p183
      %p185 = scmp.ne.s32.totalorder %s173, %s174
      %p186 = scmp.eq.s32.totalorder %s33, 1
      %p187 = por %p185, %p186
      %p189 = scmp.ne.s32.totalorder %s174, %s188
      %p190 = scmp.eq.s32.totalorder %s33, 0
      %p191 = por %p189, %p190
      %s193 = sadd.s32 %s192, 1
      %p196 = scmp.eq.s32.totalorder %s27, 1
      %p197 = scmp.ne.s32.totalorder %s192, %s194
      %p198 = scmp.eq.s32.totalorder %s27, 0
      %p199 = por %p197, %p198
      %p200 = scmp.ne.s32.totalorder %s192, %s194
      %p201 = scmp.eq.s32.totalorder %s32, 1
      %p202 = por %p200, %p201
      %p203 = scmp.ne.s32.totalorder %s194, %s195
      %p204 = scmp.eq.s32.totalorder %s32, 0
      %p205 = por %p203, %p204
      %p206 = scmp.ne.s32.totalorder %s194, %s195
      %p207 = scmp.eq.s32.totalorder %s33, 1
      %p208 = por %p206, %p207
      %p210 = scmp.ne.s32.totalorder %s195, %s209
      %p211 = scmp.eq.s32.totalorder %s33, 0
      %p212 = por %p210, %p211
      %s214 = sadd.s32 %s213, 1
      %p217 = scmp.eq.s32.totalorder %s27, 1
      %p218 = scmp.ne.s32.totalorder %s213, %s215
      %p219 = scmp.eq.s32.totalorder %s27, 0
      %p220 = por %p218, %p219
      %p221 = scmp.ne.s32.totalorder %s213, %s215
      %p222 = scmp.eq.s32.totalorder %s32, 1
      %p223 = por %p221, %p222
      %p224 = scmp.ne.s32.totalorder %s215, %s216
      %p225 = scmp.eq.s32.totalorder %s32, 0
      %p226 = por %p224, %p225
      %p227 = scmp.ne.s32.totalorder %s215, %s216
      %p228 = scmp.eq.s32.totalorder %s33, 1
      %p229 = por %p227, %p228
      %p231 = scmp.ne.s32.totalorder %s216, %s230
      %p232 = scmp.eq.s32.totalorder %s33, 0
      %p233 = por %p231, %p232
      %s235 = sadd.s32 %s234, 1
      %p238 = scmp.eq.s32.totalorder %s27, 1
      %p239 = scmp.ne.s32.totalorder %s234, %s236
      %p240 = scmp.eq.s32.totalorder %s27, 0
      %p241 = por %p239, %p240
      %p242 = scmp.ne.s32.totalorder %s234, %s236
      %p243 = scmp.eq.s32.totalorder %s32, 1
      %p244 = por %p242, %p243
      %p245 = scmp.ne.s32.totalorder %s236, %s237
      %p246 = scmp.eq.s32.totalorder %s32, 0
      %p247 = por %p245, %p246
      %p248 = scmp.ne.s32.totalorder %s236, %s237
      %p249 = scmp.eq.s32.totalorder %s33, 1
      %p250 = por %p248, %p249
      %p252 = scmp.ne.s32.totalorder %s237, %s251
      %p253 = scmp.eq.s32.totalorder %s33, 0
      %p254 = por %p252, %p253
      %s256 = sadd.s32 %s255, 1
      %p259 = scmp.eq.s32.totalorder %s27, 1
      %p260 = scmp.ne.s32.totalorder %s255, %s257
      %p261 = scmp.eq.s32.totalorder %s27, 0
      %p262 = por %p260, %p261
      %p263 = scmp.ne.s32.totalorder %s255, %s257
      %p264 = scmp.eq.s32.totalorder %s32, 1
      %p265 = por %p263, %p264
      %p266 = scmp.ne.s32.totalorder %s257, %s258
      %p267 = scmp.eq.s32.totalorder %s32, 0
      %p268 = por %p266, %p267
      %p269 = scmp.ne.s32.totalorder %s257, %s258
      %p270 = scmp.eq.s32.totalorder %s33, 1
      %p271 = por %p269, %p270
      %p273 = scmp.ne.s32.totalorder %s258, %s272
      %p274 = scmp.eq.s32.totalorder %s33, 0
      %p275 = por %p273, %p274
      %s277 = sadd.s32 %s276, 1
      %p280 = scmp.eq.s32.totalorder %s27, 1
      %p281 = scmp.ne.s32.totalorder %s276, %s278
      %p282 = scmp.eq.s32.totalorder %s27, 0
      %p283 = por %p281, %p282
      %p284 = scmp.ne.s32.totalorder %s276, %s278
      %p285 = scmp.eq.s32.totalorder %s32, 1
      %p286 = por %p284, %p285
      %p287 = scmp.ne.s32.totalorder %s278, %s279
      %p288 = scmp.eq.s32.totalorder %s32, 0
      %p289 = por %p287, %p288
      %p290 = scmp.ne.s32.totalorder %s278, %s279
      %p291 = scmp.eq.s32.totalorder %s33, 1
      %p292 = por %p290, %p291
      %p294 = scmp.ne.s32.totalorder %s279, %s293
      %p295 = scmp.eq.s32.totalorder %s33, 0
      %p296 = por %p294, %p295
      %s298 = sadd.s32 %s297, 1
      %p301 = scmp.eq.s32.totalorder %s27, 1
      %p302 = scmp.ne.s32.totalorder %s297, %s299
      %p303 = scmp.eq.s32.totalorder %s27, 0
      %p304 = por %p302, %p303
      %p305 = scmp.ne.s32.totalorder %s297, %s299
      %p306 = scmp.eq.s32.totalorder %s32, 1
      %p307 = por %p305, %p306
      %p308 = scmp.ne.s32.totalorder %s299, %s300
      %p309 = scmp.eq.s32.totalorder %s32, 0
      %p310 = por %p308, %p309
      %p311 = scmp.ne.s32.totalorder %s299, %s300
      %p312 = scmp.eq.s32.totalorder %s33, 1
      %p313 = por %p311, %p312
      %p315 = scmp.ne.s32.totalorder %s300, %s314
      %p316 = scmp.eq.s32.totalorder %s33, 0
      %p317 = por %p315, %p316
      %s319 = sadd.s32 %s318, 1
      %p322 = scmp.eq.s32.totalorder %s27, 1
      %p323 = scmp.ne.s32.totalorder %s318, %s320
      %p324 = scmp.eq.s32.totalorder %s27, 0
      %p325 = por %p323, %p324
      %p326 = scmp.ne.s32.totalorder %s318, %s320
      %p327 = scmp.eq.s32.totalorder %s32, 1
      %p328 = por %p326, %p327
      %p329 = scmp.ne.s32.totalorder %s320, %s321
      %p330 = scmp.eq.s32.totalorder %s32, 0
      %p331 = por %p329, %p330
      %p332 = scmp.ne.s32.totalorder %s320, %s321
      %p333 = scmp.eq.s32.totalorder %s33, 1
      %p334 = por %p332, %p333
      %p336 = scmp.ne.s32.totalorder %s321, %s335
      %p337 = scmp.eq.s32.totalorder %s33, 0
      %p338 = por %p336, %p337
      %s340 = sadd.s32 %s339, 1
      %p343 = scmp.eq.s32.totalorder %s27, 1
      %p344 = scmp.ne.s32.totalorder %s339, %s341
      %p345 = scmp.eq.s32.totalorder %s27, 0
      %p346 = por %p344, %p345
      %p347 = scmp.ne.s32.totalorder %s339, %s341
      %p348 = scmp.eq.s32.totalorder %s32, 1
      %p349 = por %p347, %p348
      %p350 = scmp.ne.s32.totalorder %s341, %s342
      %p351 = scmp.eq.s32.totalorder %s32, 0
      %p352 = por %p350, %p351
      %p353 = scmp.ne.s32.totalorder %s341, %s342
      %p354 = scmp.eq.s32.totalorder %s33, 1
      %p355 = por %p353, %p354
      %p357 = scmp.ne.s32.totalorder %s342, %s356
      %p358 = scmp.eq.s32.totalorder %s33, 0
      %p359 = por %p357, %p358
      %s361 = sadd.s32 %s360, 1
      %p364 = scmp.eq.s32.totalorder %s27, 1
      %p365 = scmp.ne.s32.totalorder %s360, %s362
      %p366 = scmp.eq.s32.totalorder %s27, 0
      %p367 = por %p365, %p366
      %p368 = scmp.ne.s32.totalorder %s360, %s362
      %p369 = scmp.eq.s32.totalorder %s32, 1
      %p370 = por %p368, %p369
      %p371 = scmp.ne.s32.totalorder %s362, %s363
      %p372 = scmp.eq.s32.totalorder %s32, 0
      %p373 = por %p371, %p372
      %p374 = scmp.ne.s32.totalorder %s362, %s363
      %p375 = scmp.eq.s32.totalorder %s33, 1
      %p376 = por %p374, %p375
      %p378 = scmp.ne.s32.totalorder %s363, %s377
      %p379 = scmp.eq.s32.totalorder %s33, 0
      %p380 = por %p378, %p379
      %s382 = sadd.s32 %s381, 1
      %p385 = scmp.eq.s32.totalorder %s27, 1
      %p386 = scmp.ne.s32.totalorder %s381, %s383
      %p387 = scmp.eq.s32.totalorder %s27, 0
      %p388 = por %p386, %p387
      %p389 = scmp.ne.s32.totalorder %s381, %s383
      %p390 = scmp.eq.s32.totalorder %s32, 1
      %p391 = por %p389, %p390
      %p392 = scmp.ne.s32.totalorder %s383, %s384
      %p393 = scmp.eq.s32.totalorder %s32, 0
      %p394 = por %p392, %p393
      %p395 = scmp.ne.s32.totalorder %s383, %s384
      %p396 = scmp.eq.s32.totalorder %s33, 1
      %p397 = por %p395, %p396
      %p399 = scmp.ne.s32.totalorder %s384, %s398
      %p400 = scmp.eq.s32.totalorder %s33, 0
      %p401 = por %p399, %p400
      %s403 = sadd.s32 %s402, 1
      %p406 = scmp.eq.s32.totalorder %s27, 1
      %p407 = scmp.ne.s32.totalorder %s402, %s404
      %p408 = scmp.eq.s32.totalorder %s27, 0
      %p409 = por %p407, %p408
      %p410 = scmp.ne.s32.totalorder %s402, %s404
      %p411 = scmp.eq.s32.totalorder %s32, 1
      %p412 = por %p410, %p411
      %p413 = scmp.ne.s32.totalorder %s404, %s405
      %p414 = scmp.eq.s32.totalorder %s32, 0
      %p415 = por %p413, %p414
      %p416 = scmp.ne.s32.totalorder %s404, %s405
      %p417 = scmp.eq.s32.totalorder %s33, 1
      %p418 = por %p416, %p417
      %p420 = scmp.ne.s32.totalorder %s405, %s419
      %p421 = scmp.eq.s32.totalorder %s33, 0
      %p422 = por %p420, %p421
      %s423 = ssub.s32 %s27, %s34
      %p424 = scmp.eq.s32.totalorder %s423, 0
      %s426 = sadd.s32 %s425, 1
      %s427 = scalar_select %p424, %s425, %s426
      %p430 = pneg %p424
      %p431 = scmp.eq.s32.totalorder %s27, 1
      %p432 = por %p430, %p431
      %p433 = scmp.ne.s32.totalorder %s425, %s428
      %p434 = scmp.eq.s32.totalorder %s27, 0
      %p435 = por %p433, %p434
      %p436 = scmp.ne.s32.totalorder %s425, %s428
      %p437 = scmp.eq.s32.totalorder %s32, 1
      %p438 = por %p436, %p437
      %p439 = scmp.ne.s32.totalorder %s428, %s429
      %p440 = scmp.eq.s32.totalorder %s32, 0
      %p441 = por %p439, %p440
      %p442 = scmp.ne.s32.totalorder %s428, %s429
      %p443 = scmp.eq.s32.totalorder %s33, 1
      %p444 = por %p442, %p443
      %p446 = scmp.ne.s32.totalorder %s429, %s445
      %p447 = scmp.eq.s32.totalorder %s33, 0
      %p448 = por %p446, %p447
      %p449 = scmp.le.s32.totalorder 1, %s27
      %p450 = scmp.lt.s32.totalorder %s27, 3
      %p451 = pnand %p449, %p450
      %p452 = pneg %p451
      // Predicated region
      $region9: #{tpu_custom_call.1} parent=5 // pred_check
        _
      $region10: #{tpu_custom_call.1} parent=5 // pred_check_branch
        %454 = sbr.rel (%p451) target = $region12
      $region11: #{tpu_custom_call.1} parent=5 // pred_region
        %s455 = ssub.s32 %s27, 1
        // Predicated region
        $region13: #{tpu_custom_call.1} parent=11 // pred_check
          %p456 = pneg %p100
        $region14: #{tpu_custom_call.1} parent=11 // pred_check_branch
          %458 = sbr.rel (%p456) target = $region16
        $region15: #{tpu_custom_call.1} parent=11 // pred_region
          _
        $region16: #{tpu_custom_call.1} parent=11 // pred_fallthru
          _
        // Predicated region
        $region17: #{tpu_custom_call.1} parent=11 // pred_check
          %p459 = pneg %p121
        $region18: #{tpu_custom_call.1} parent=11 // pred_check_branch
          %461 = sbr.rel (%p459) target = $region20
        $region19: #{tpu_custom_call.1} parent=11 // pred_region
          _
        $region20: #{tpu_custom_call.1} parent=11 // pred_fallthru
          _
        // Predicated region
        $region21: #{tpu_custom_call.1} parent=11 // pred_check
          %p462 = pneg %p142
        $region22: #{tpu_custom_call.1} parent=11 // pred_check_branch
          %464 = sbr.rel (%p462) target = $region24
        $region23: #{tpu_custom_call.1} parent=11 // pred_region
          _
        $region24: #{tpu_custom_call.1} parent=11 // pred_fallthru
          _
        // Predicated region
        $region25: #{tpu_custom_call.1} parent=11 // pred_check
          %p465 = pneg %p163
        $region26: #{tpu_custom_call.1} parent=11 // pred_check_branch
          %467 = sbr.rel (%p465) target = $region28
        $region27: #{tpu_custom_call.1} parent=11 // pred_region
          _
        $region28: #{tpu_custom_call.1} parent=11 // pred_fallthru
          _
        // Predicated region
        $region29: #{tpu_custom_call.1} parent=11 // pred_check
          %p468 = pneg %p184
        $region30: #{tpu_custom_call.1} parent=11 // pred_check_branch
          %470 = sbr.rel (%p468) target = $region32
        $region31: #{tpu_custom_call.1} parent=11 // pred_region
          _
        $region32: #{tpu_custom_call.1} parent=11 // pred_fallthru
          _
        // Predicated region
        $region33: #{tpu_custom_call.1} parent=11 // pred_check
          %p471 = pneg %p205
        $region34: #{tpu_custom_call.1} parent=11 // pred_check_branch
          %473 = sbr.rel (%p471) target = $region36
        $region35: #{tpu_custom_call.1} parent=11 // pred_region
          _
        $region36: #{tpu_custom_call.1} parent=11 // pred_fallthru
          _
        // Predicated region
        $region37: #{tpu_custom_call.1} parent=11 // pred_check
          %p474 = pneg %p226
        $region38: #{tpu_custom_call.1} parent=11 // pred_check_branch
          %476 = sbr.rel (%p474) target = $region40
        $region39: #{tpu_custom_call.1} parent=11 // pred_region
          _
        $region40: #{tpu_custom_call.1} parent=11 // pred_fallthru
          _
        // Predicated region
        $region41: #{tpu_custom_call.1} parent=11 // pred_check
          %p477 = pneg %p247
        $region42: #{tpu_custom_call.1} parent=11 // pred_check_branch
          %479 = sbr.rel (%p477) target = $region44
        $region43: #{tpu_custom_call.1} parent=11 // pred_region
          _
        $region44: #{tpu_custom_call.1} parent=11 // pred_fallthru
          _
        // Predicated region
        $region45: #{tpu_custom_call.1} parent=11 // pred_check
          %p480 = pneg %p268
        $region46: #{tpu_custom_call.1} parent=11 // pred_check_branch
          %482 = sbr.rel (%p480) target = $region48
        $region47: #{tpu_custom_call.1} parent=11 // pred_region
          _
        $region48: #{tpu_custom_call.1} parent=11 // pred_fallthru
          _
        // Predicated region
        $region49: #{tpu_custom_call.1} parent=11 // pred_check
          %p483 = pneg %p289
        $region50: #{tpu_custom_call.1} parent=11 // pred_check_branch
          %485 = sbr.rel (%p483) target = $region52
        $region51: #{tpu_custom_call.1} parent=11 // pred_region
          _
        $region52: #{tpu_custom_call.1} parent=11 // pred_fallthru
          _
        // Predicated region
        $region53: #{tpu_custom_call.1} parent=11 // pred_check
          %p486 = pneg %p310
        $region54: #{tpu_custom_call.1} parent=11 // pred_check_branch
          %488 = sbr.rel (%p486) target = $region56
        $region55: #{tpu_custom_call.1} parent=11 // pred_region
          _
        $region56: #{tpu_custom_call.1} parent=11 // pred_fallthru
          _
        // Predicated region
        $region57: #{tpu_custom_call.1} parent=11 // pred_check
          %p489 = pneg %p331
        $region58: #{tpu_custom_call.1} parent=11 // pred_check_branch
          %491 = sbr.rel (%p489) target = $region60
        $region59: #{tpu_custom_call.1} parent=11 // pred_region
          _
        $region60: #{tpu_custom_call.1} parent=11 // pred_fallthru
          _
        // Predicated region
        $region61: #{tpu_custom_call.1} parent=11 // pred_check
          %p492 = pneg %p352
        $region62: #{tpu_custom_call.1} parent=11 // pred_check_branch
          %494 = sbr.rel (%p492) target = $region64
        $region63: #{tpu_custom_call.1} parent=11 // pred_region
          _
        $region64: #{tpu_custom_call.1} parent=11 // pred_fallthru
          _
        // Predicated region
        $region65: #{tpu_custom_call.1} parent=11 // pred_check
          %p495 = pneg %p373
        $region66: #{tpu_custom_call.1} parent=11 // pred_check_branch
          %497 = sbr.rel (%p495) target = $region68
        $region67: #{tpu_custom_call.1} parent=11 // pred_region
          _
        $region68: #{tpu_custom_call.1} parent=11 // pred_fallthru
          _
        // Predicated region
        $region69: #{tpu_custom_call.1} parent=11 // pred_check
          %p498 = pneg %p394
        $region70: #{tpu_custom_call.1} parent=11 // pred_check_branch
          %500 = sbr.rel (%p498) target = $region72
        $region71: #{tpu_custom_call.1} parent=11 // pred_region
          _
        $region72: #{tpu_custom_call.1} parent=11 // pred_fallthru
          _
        // Predicated region
        $region73: #{tpu_custom_call.1} parent=11 // pred_check
          %p501 = pneg %p415
        $region74: #{tpu_custom_call.1} parent=11 // pred_check_branch
          %503 = sbr.rel (%p501) target = $region76
        $region75: #{tpu_custom_call.1} parent=11 // pred_region
          _
        $region76: #{tpu_custom_call.1} parent=11 // pred_fallthru
          _
      $region12: #{tpu_custom_call.1} parent=5 // pred_fallthru
        _
      %p504 = scmp.lt.s32.totalorder %s27, 2
      // Predicated region
      $region77: #{tpu_custom_call.1} parent=5 // pred_check
        %p505 = pneg %p504
      $region78: #{tpu_custom_call.1} parent=5 // pred_check_branch
        %507 = sbr.rel (%p505) target = $region80
      $region79: #{tpu_custom_call.1} parent=5 // pred_region
        // Predicated region
        $region81: #{tpu_custom_call.1} parent=79 // pred_check
          %p508 = pneg %p47
        $region82: #{tpu_custom_call.1} parent=79 // pred_check_branch
          %510 = sbr.rel (%p508) target = $region84
        $region83: #{tpu_custom_call.1} parent=79 // pred_region
          %s511 = smul.u32 2, %s27
          %p512 = scmp.lt.s32.totalorder %s511, 3
          %s513 = scalar_select %p512, %s511, 3
          %s514 = smul.addr %s513, 2
          %s515 = smul.addr %s514, 8
          %s516 = scalar_lea.vmem %s0, %s515
          %s517 = smul.u32 2, %s27
        $region84: #{tpu_custom_call.1} parent=79 // pred_fallthru
          _
        // Predicated region
        $region85: #{tpu_custom_call.1} parent=79 // pred_check
          %p518 = pneg %p73
        $region86: #{tpu_custom_call.1} parent=79 // pred_check_branch
          %520 = sbr.rel (%p518) target = $region88
        $region87: #{tpu_custom_call.1} parent=79 // pred_region
          %s521 = smul.u32 2, %s27
          %p522 = scmp.lt.s32.totalorder %s521, 3
          %s523 = scalar_select %p522, %s521, 3
          %s524 = scalar_lea.vmem %s1, %s523
          %s525 = smul.u32 2, %s27
        $region88: #{tpu_custom_call.1} parent=79 // pred_fallthru
          _
      $region80: #{tpu_custom_call.1} parent=5 // pred_fallthru
        _
      %p526 = scmp.le.s32.totalorder 1, %s27
      %p527 = scmp.lt.s32.totalorder %s27, 3
      %p528 = pnand %p526, %p527
      %p529 = pneg %p528
      // Predicated region
      $region89: #{tpu_custom_call.1} parent=5 // pred_check
        _
      $region90: #{tpu_custom_call.1} parent=5 // pred_check_branch
        %531 = sbr.rel (%p528) target = $region92
      $region91: #{tpu_custom_call.1} parent=5 // pred_region
        %s532 = ssub.s32 %s27, 1
        %s533 = smul.u32 2, %s32
        %p534 = scmp.lt.s32.totalorder %s533, 3
        %s535 = scalar_select %p534, %s533, 3
        %s536 = smul.addr %s535, 2
        %s537 = smul.addr %s536, 8
        %s538 = scalar_lea.vmem %s0, %s537
        %p539 = pneg %p53
        %p540 = pneg %p50
        %s541 = smul.u32 2, %s32
        %p542 = scmp.lt.s32.totalorder %s541, 3
        %s543 = scalar_select %p542, %s541, 3
        %s544 = scalar_lea.vmem %s1, %s543
        %p545 = pneg %p79
        %p546 = pneg %p76
        %p547 = pneg %p100
        %p548 = pneg %p97
        %p549 = pneg %p121
        %p550 = pneg %p118
        %p551 = pneg %p142
        %p552 = pneg %p139
        %p553 = pneg %p163
        %p554 = pneg %p160
        %p555 = pneg %p184
        %p556 = pneg %p181
        %p557 = pneg %p205
        %p558 = pneg %p202
        %p559 = pneg %p226
        %p560 = pneg %p223
        %p561 = pneg %p247
        %p562 = pneg %p244
        %p563 = pneg %p268
        %p564 = pneg %p265
        %p565 = pneg %p289
        %p566 = pneg %p286
        %p567 = pneg %p310
        %p568 = pneg %p307
        %p569 = pneg %p331
        %p570 = pneg %p328
        %p571 = pneg %p352
        %p572 = pneg %p349
        %p573 = pneg %p373
        %p574 = pneg %p370
        %p575 = pneg %p394
        %p576 = pneg %p391
        %p577 = pneg %p415
        %p578 = pneg %p412
        %p579 = pneg %p441
        %p580 = pneg %p438
        %s581 = sand.u32 %s428, 1
        %s582 = scalar_lea.sflag [#allocation3], %s581
        %s583 = sand.u32 %s428, 1
        %s584 = smul.addr %s583, 32
        %s585 = scalar_lea.vmem [#allocation2], %s584
        %s586 = smul.u32 2, %s32
        %p587 = scmp.lt.s32.totalorder %s586, 3
        %s588 = scalar_select %p587, %s586, 3
        %s589 = smul.addr %s588, 2
        %s590 = smul.addr %s589, 8
        %s591 = scalar_lea.vmem %s0, %s590
        %s592 = smul.u32 2, %s32
        %s593 = smul.u32 2, %s32
        %p594 = scmp.lt.s32.totalorder %s593, 3
        %s595 = scalar_select %p594, %s593, 3
        %s596 = scalar_lea.vmem %s1, %s595
        %s597 = smul.u32 2, %s32
        %s598 = smul.u32 2, %s32
        %v600 = vld [vmem:[%s591] sm:$0xff]
        %v601 = vld [vmem:[%s591 + $0x8] sm:$0xff]
        %v602 = vld [vmem:[%s591 + $0x10] sm:$0xff]
        %v603 = vld [vmem:[%s591 + $0x18] sm:$0xff]
        %v604 = vld [vmem:[%s596] sm:$0x1]
        %v605 = vld [vmem:[%s596 + $0x1] sm:$0x1]
        %v608 = vperm.slane %v604, 0
        %v609 = vperm.slane %v605, 0
        %v612 = vpack.c.bf16 %v601, %v600
        %v613 = vpack.c.bf16 %v603, %v602
        %v614 = vld [vmem:[%s2] sm:$0xf]
        %v615 = vld [vmem:[%s2 + $0x4] sm:$0xf]
        %v616 = vld [vmem:[%s2 + $0x8] sm:$0xf]
        %v617 = vld [vmem:[%s2 + $0xc] sm:$0xf]
        %v618 = vld [vmem:[%s2 + $0x10] sm:$0xf]
        %v619 = vld [vmem:[%s2 + $0x14] sm:$0xf]
        %v620 = vld [vmem:[%s2 + $0x18] sm:$0xf]
        %v621 = vld [vmem:[%s2 + $0x1c] sm:$0xf]
        %v622 = vld [vmem:[%s2 + $0x20] sm:$0xf]
        %v623 = vld [vmem:[%s2 + $0x24] sm:$0xf]
        %v624 = vld [vmem:[%s2 + $0x28] sm:$0xf]
        %v625 = vld [vmem:[%s2 + $0x2c] sm:$0xf]
        %v626 = vld [vmem:[%s2 + $0x30] sm:$0xf]
        %v627 = vld [vmem:[%s2 + $0x34] sm:$0xf]
        %v628 = vld [vmem:[%s2 + $0x38] sm:$0xf]
        %v629 = vld [vmem:[%s2 + $0x3c] sm:$0xf]
        %v630 = vld [vmem:[%s5] sm:$0x1]
        %v632 = vperm.slane %v630, 0
        %v650 = vunpack.c.l.b16 %v614
        %v651 = vunpack.c.l.b16 %v615
        %v652 = vunpack.c.l.b16 %v616
        %v653 = vunpack.c.l.b16 %v617
        %v654 = vunpack.c.l.b16 %v618
        %v655 = vunpack.c.l.b16 %v619
        %v656 = vunpack.c.l.b16 %v620
        %v657 = vunpack.c.l.b16 %v621
        %v658 = vunpack.c.l.b16 %v622
        %v659 = vunpack.c.l.b16 %v623
        %v660 = vunpack.c.l.b16 %v624
        %v661 = vunpack.c.l.b16 %v625
        %v662 = vunpack.c.l.b16 %v626
        %v663 = vunpack.c.l.b16 %v627
        %v664 = vunpack.c.l.b16 %v628
        %v665 = vunpack.c.l.b16 %v629
        %v666 = vpack.c.b16 %v651, %v650
        %v667 = vpack.c.b16 %v653, %v652
        %v668 = vpack.c.b16 %v655, %v654
        %v669 = vpack.c.b16 %v657, %v656
        %v670 = vpack.c.b16 %v659, %v658
        %v671 = vpack.c.b16 %v661, %v660
        %v672 = vpack.c.b16 %v663, %v662
        %v673 = vpack.c.b16 %v665, %v664
        %682 = vmatpush.bf16.msra.mxu0 %v673
        %683 = vmatpush.bf16.msra.mxu0 %v672
        %684 = vmatpush.bf16.msra.mxu0 %v671
        %685 = vmatpush.bf16.msra.mxu0 %v670
        %686 = vmatpush.bf16.msra.mxu0 %v669
        %687 = vmatpush.bf16.msra.mxu0 %v668
        %688 = vmatpush.bf16.msra.mxu0 %v667
        %689 = vmatpush.bf16.msra.mxu0 %v666
        %690 = vmatmul.bf16.gmra.mxu0 %v612
        %v691 = vpop.f32.mrf.mxu0
        %v692 = vadd.f32 %v632, %v691
        %v693 = vpop.f32.mrf.mxu0
        %v694 = vadd.f32 %v632, %v693
        %695 = vmatmul.bf16.gmra.mxu0 %v613
        %v696 = vpop.f32.mrf.mxu0
        %v697 = vadd.f32 %v632, %v696
        %v698 = vpop.f32.mrf.mxu0
        %v699 = vadd.f32 %v632, %v698
        %700 = vdwg.mxu0
        %v701 = vld [vmem:[%s3] sm:$0xf]
        %v702 = vld [vmem:[%s3 + $0x4] sm:$0xf]
        %v703 = vld [vmem:[%s3 + $0x8] sm:$0xf]
        %v704 = vld [vmem:[%s3 + $0xc] sm:$0xf]
        %v705 = vld [vmem:[%s3 + $0x10] sm:$0xf]
        %v706 = vld [vmem:[%s3 + $0x14] sm:$0xf]
        %v707 = vld [vmem:[%s3 + $0x18] sm:$0xf]
        %v708 = vld [vmem:[%s3 + $0x1c] sm:$0xf]
        %v709 = vld [vmem:[%s3 + $0x20] sm:$0xf]
        %v710 = vld [vmem:[%s3 + $0x24] sm:$0xf]
        %v711 = vld [vmem:[%s3 + $0x28] sm:$0xf]
        %v712 = vld [vmem:[%s3 + $0x2c] sm:$0xf]
        %v713 = vld [vmem:[%s3 + $0x30] sm:$0xf]
        %v714 = vld [vmem:[%s3 + $0x34] sm:$0xf]
        %v715 = vld [vmem:[%s3 + $0x38] sm:$0xf]
        %v716 = vld [vmem:[%s3 + $0x3c] sm:$0xf]
        %v717 = vld [vmem:[%s6] sm:$0x1]
        %v719 = vperm.slane %v717, 0
        %v737 = vunpack.c.l.b16 %v701
        %v738 = vunpack.c.l.b16 %v702
        %v739 = vunpack.c.l.b16 %v703
        %v740 = vunpack.c.l.b16 %v704
        %v741 = vunpack.c.l.b16 %v705
        %v742 = vunpack.c.l.b16 %v706
        %v743 = vunpack.c.l.b16 %v707
        %v744 = vunpack.c.l.b16 %v708
        %v745 = vunpack.c.l.b16 %v709
        %v746 = vunpack.c.l.b16 %v710
        %v747 = vunpack.c.l.b16 %v711
        %v748 = vunpack.c.l.b16 %v712
        %v749 = vunpack.c.l.b16 %v713
        %v750 = vunpack.c.l.b16 %v714
        %v751 = vunpack.c.l.b16 %v715
        %v752 = vunpack.c.l.b16 %v716
        %v753 = vpack.c.b16 %v738, %v737
        %v754 = vpack.c.b16 %v740, %v739
        %v755 = vpack.c.b16 %v742, %v741
        %v756 = vpack.c.b16 %v744, %v743
        %v757 = vpack.c.b16 %v746, %v745
        %v758 = vpack.c.b16 %v748, %v747
        %v759 = vpack.c.b16 %v750, %v749
        %v760 = vpack.c.b16 %v752, %v751
        %769 = vmatpush.bf16.msra.mxu0 %v760
        %770 = vmatpush.bf16.msra.mxu0 %v759
        %771 = vmatpush.bf16.msra.mxu0 %v758
        %772 = vmatpush.bf16.msra.mxu0 %v757
        %773 = vmatpush.bf16.msra.mxu0 %v756
        %774 = vmatpush.bf16.msra.mxu0 %v755
        %775 = vmatpush.bf16.msra.mxu0 %v754
        %776 = vmatpush.bf16.msra.mxu0 %v753
        %777 = vmatmul.bf16.gmra.mxu0 %v612
        %v778 = vpop.f32.mrf.mxu0
        %v779 = vadd.f32 %v719, %v778
        %v780 = vpop.f32.mrf.mxu0
        %v781 = vadd.f32 %v719, %v780
        %782 = vmatmul.bf16.gmra.mxu0 %v613
        %v783 = vpop.f32.mrf.mxu0
        %v784 = vadd.f32 %v719, %v783
        %v785 = vpop.f32.mrf.mxu0
        %v786 = vadd.f32 %v719, %v785
        %787 = vdwg.mxu0
        %v788 = vld [vmem:[%s4] sm:$0xf]
        %v789 = vld [vmem:[%s4 + $0x4] sm:$0xf]
        %v790 = vld [vmem:[%s4 + $0x8] sm:$0xf]
        %v791 = vld [vmem:[%s4 + $0xc] sm:$0xf]
        %v792 = vld [vmem:[%s4 + $0x10] sm:$0xf]
        %v793 = vld [vmem:[%s4 + $0x14] sm:$0xf]
        %v794 = vld [vmem:[%s4 + $0x18] sm:$0xf]
        %v795 = vld [vmem:[%s4 + $0x1c] sm:$0xf]
        %v796 = vld [vmem:[%s4 + $0x20] sm:$0xf]
        %v797 = vld [vmem:[%s4 + $0x24] sm:$0xf]
        %v798 = vld [vmem:[%s4 + $0x28] sm:$0xf]
        %v799 = vld [vmem:[%s4 + $0x2c] sm:$0xf]
        %v800 = vld [vmem:[%s4 + $0x30] sm:$0xf]
        %v801 = vld [vmem:[%s4 + $0x34] sm:$0xf]
        %v802 = vld [vmem:[%s4 + $0x38] sm:$0xf]
        %v803 = vld [vmem:[%s4 + $0x3c] sm:$0xf]
        %v804 = vld [vmem:[%s7] sm:$0x1]
        %v806 = vperm.slane %v804, 0
        %v824 = vunpack.c.l.b16 %v788
        %v825 = vunpack.c.l.b16 %v789
        %v826 = vunpack.c.l.b16 %v790
        %v827 = vunpack.c.l.b16 %v791
        %v828 = vunpack.c.l.b16 %v792
        %v829 = vunpack.c.l.b16 %v793
        %v830 = vunpack.c.l.b16 %v794
        %v831 = vunpack.c.l.b16 %v795
        %v832 = vunpack.c.l.b16 %v796
        %v833 = vunpack.c.l.b16 %v797
        %v834 = vunpack.c.l.b16 %v798
        %v835 = vunpack.c.l.b16 %v799
        %v836 = vunpack.c.l.b16 %v800
        %v837 = vunpack.c.l.b16 %v801
        %v838 = vunpack.c.l.b16 %v802
        %v839 = vunpack.c.l.b16 %v803
        %v840 = vpack.c.b16 %v825, %v824
        %v841 = vpack.c.b16 %v827, %v826
        %v842 = vpack.c.b16 %v829, %v828
        %v843 = vpack.c.b16 %v831, %v830
        %v844 = vpack.c.b16 %v833, %v832
        %v845 = vpack.c.b16 %v835, %v834
        %v846 = vpack.c.b16 %v837, %v836
        %v847 = vpack.c.b16 %v839, %v838
        %856 = vmatpush.bf16.msra.mxu0 %v847
        %857 = vmatpush.bf16.msra.mxu0 %v846
        %858 = vmatpush.bf16.msra.mxu0 %v845
        %859 = vmatpush.bf16.msra.mxu0 %v844
        %860 = vmatpush.bf16.msra.mxu0 %v843
        %861 = vmatpush.bf16.msra.mxu0 %v842
        %862 = vmatpush.bf16.msra.mxu0 %v841
        %863 = vmatpush.bf16.msra.mxu0 %v840
        %864 = vmatmul.bf16.gmra.mxu0 %v612
        %v865 = vpop.f32.mrf.mxu0
        %v866 = vadd.f32 %v806, %v865
        %v867 = vpop.f32.mrf.mxu0
        %v868 = vadd.f32 %v806, %v867
        %869 = vmatmul.bf16.gmra.mxu0 %v613
        %v870 = vpop.f32.mrf.mxu0
        %v871 = vadd.f32 %v806, %v870
        %v872 = vpop.f32.mrf.mxu0
        %v873 = vadd.f32 %v806, %v872
        %874 = vdwg.mxu0
        %v875 = vpack.c.bf16 %v692, %v692
        %v876 = vpack.c.bf16 %v694, %v694
        %v877 = vpack.c.bf16 %v697, %v697
        %v878 = vpack.c.bf16 %v699, %v699
        %v879 = vpack.c.bf16 %v779, %v779
        %v880 = vpack.c.bf16 %v781, %v781
        %v881 = vpack.c.bf16 %v784, %v784
        %v882 = vpack.c.bf16 %v786, %v786
        %v883 = vpack.c.bf16 %v866, %v866
        %v884 = vpack.c.bf16 %v868, %v868
        %v885 = vpack.c.bf16 %v871, %v871
        %v886 = vpack.c.bf16 %v873, %v873
        %v889 = vunpack.c.l.b16 %v875
        %v890 = vunpack.c.l.b16 %v876
        %v891 = vpack.c.b16 %v890, %v889
        %v894 = vunpack.c.l.b16 %v879
        %v895 = vunpack.c.l.b16 %v880
        %v896 = vpack.c.b16 %v895, %v894
        %vm897 = vcmask 523264
        %v899 = vsel %vm897, %v891, 0
        %v902 = vsel %vm897, %v896, 0
        %904 = vmatpush.bf16.xpose.msra.mxu0 0
        %905 = vmatpush.bf16.xpose.msra.mxu0 0
        %906 = vmatpush.bf16.xpose.msra.mxu0 0
        %907 = vmatpush.bf16.xpose.msra.mxu0 0
        %908 = vmatpush.bf16.xpose.msra.mxu0 0
        %909 = vmatpush.bf16.xpose.msra.mxu0 0
        %910 = vmatpush.bf16.xpose.msra.mxu0 0
        %911 = vmatpush.bf16.xpose.msra.mxu0 %v902
        %912 = vmatmul.bf16.gmra.mxu0 %v899
        %v913 = vpop.f32.mrf.mxu0
        %v914 = vadd.f32 0.0, %v913
        %v915 = vpop.f32.mrf.mxu0
        %v916 = vadd.f32 0.0, %v915
        %917 = vdwg.mxu0
        %v920 = vunpack.c.l.b16 %v877
        %v921 = vunpack.c.l.b16 %v878
        %v922 = vpack.c.b16 %v921, %v920
        %v925 = vunpack.c.l.b16 %v881
        %v926 = vunpack.c.l.b16 %v882
        %v927 = vpack.c.b16 %v926, %v925
        %v929 = vsel %vm897, %v922, 0
        %v932 = vsel %vm897, %v927, 0
        %934 = vmatpush.bf16.xpose.msra.mxu0 0
        %935 = vmatpush.bf16.xpose.msra.mxu0 0
        %936 = vmatpush.bf16.xpose.msra.mxu0 0
        %937 = vmatpush.bf16.xpose.msra.mxu0 0
        %938 = vmatpush.bf16.xpose.msra.mxu0 0
        %939 = vmatpush.bf16.xpose.msra.mxu0 0
        %940 = vmatpush.bf16.xpose.msra.mxu0 0
        %941 = vmatpush.bf16.xpose.msra.mxu0 %v932
        %942 = vmatmul.bf16.gmra.mxu0 %v929
        %v943 = vpop.f32.mrf.mxu0
        %v944 = vadd.f32 0.0, %v943
        %v945 = vpop.f32.mrf.mxu0
        %v946 = vadd.f32 0.0, %v945
        %947 = vdwg.mxu0
        %v948 = vmul.f32 %v914, 0.125
        %v949 = vmul.f32 %v916, 0.125
        %v950 = vmul.f32 %v944, 0.125
        %v951 = vmul.f32 %v946, 0.125
        %v952 = vadd.f32 %v948, %v608
        %v953 = vadd.f32 %v949, %v608
        %v954 = vadd.f32 %v950, %v609
        %v955 = vadd.f32 %v951, %v609
        %vm956 = vcmask 130048
        %v957 = vsel %vm956, %v952, -inf
        %958 = vmax.xlane.f32.xlu0 %v957
        %v959 = vpop.xlane.xlu0 %958
        %v960 = vsel %vm956, %v953, -inf
        %961 = vmax.xlane.f32.xlu0 %v960
        %v962 = vpop.xlane.xlu0 %961
        %v963 = vsel %vm956, %v954, -inf
        %964 = vmax.xlane.f32.xlu0 %v963
        %v965 = vpop.xlane.xlu0 %964
        %v966 = vsel %vm956, %v955, -inf
        %967 = vmax.xlane.f32.xlu0 %v966
        %v968 = vpop.xlane.xlu0 %967
        %v969 = vsub.f32 %v952, %v959
        %v970 = vsub.f32 %v953, %v962
        %v971 = vsub.f32 %v954, %v965
        %v972 = vsub.f32 %v955, %v968
        %v973 = vmul.f32 %v969, 1.442695
        %v974 = vpow.pop %v973
        %v975 = vmul.f32 %v970, 1.442695
        %v976 = vpow.pop %v975
        %v977 = vmul.f32 %v971, 1.442695
        %v978 = vpow.pop %v977
        %v979 = vmul.f32 %v972, 1.442695
        %v980 = vpow.pop %v979
        %v981 = vsel %vm956, %v974, 0.0
        %982 = vadd.xlane.f32.xlu0 %v981
        %v983 = vpop.xlane.xlu0 %982
        %v984 = vsel %vm956, %v976, 0.0
        %985 = vadd.xlane.f32.xlu0 %v984
        %v986 = vpop.xlane.xlu0 %985
        %v987 = vsel %vm956, %v978, 0.0
        %988 = vadd.xlane.f32.xlu0 %v987
        %v989 = vpop.xlane.xlu0 %988
        %v990 = vsel %vm956, %v980, 0.0
        %991 = vadd.xlane.f32.xlu0 %v990
        %v992 = vpop.xlane.xlu0 %991
        %v993 = vrcp.pop %v983
        %v994 = vrcp.pop %v986
        %v995 = vrcp.pop %v989
        %v996 = vrcp.pop %v992
        %v997 = vmul.f32 %v974, %v993
        %v998 = vmul.f32 %v976, %v994
        %v999 = vmul.f32 %v978, %v995
        %v1000 = vmul.f32 %v980, %v996
        %v1001 = vpack.c.bf16 %v997, %v997
        %v1002 = vpack.c.bf16 %v998, %v998
        %v1003 = vpack.c.bf16 %v999, %v999
        %v1004 = vpack.c.bf16 %v1000, %v1000
        %v1007 = vunpack.c.l.b16 %v1001
        %v1008 = vunpack.c.l.b16 %v1002
        %v1009 = vpack.c.b16 %v1008, %v1007
        %v1012 = vunpack.c.l.b16 %v883
        %v1013 = vunpack.c.l.b16 %v884
        %v1014 = vpack.c.b16 %v1013, %v1012
        %v1017 = vsel %vm956, %v1009, 0
        %1019 = vmatpush.bf16.msra.mxu0 0
        %1020 = vmatpush.bf16.msra.mxu0 0
        %1021 = vmatpush.bf16.msra.mxu0 0
        %1022 = vmatpush.bf16.msra.mxu0 0
        %1023 = vmatpush.bf16.msra.mxu0 0
        %1024 = vmatpush.bf16.msra.mxu0 0
        %1025 = vmatpush.bf16.msra.mxu0 0
        %1026 = vmatpush.bf16.msra.mxu0 %v1014
        %1027 = vmatmul.bf16.gmra.mxu0 %v1017
        %v1028 = vpop.f32.mrf.mxu0
        %v1029 = vadd.f32 0.0, %v1028
        %v1030 = vpop.f32.mrf.mxu0
        %v1031 = vadd.f32 0.0, %v1030
        %1032 = vdwg.mxu0
        %v1035 = vunpack.c.l.b16 %v1003
        %v1036 = vunpack.c.l.b16 %v1004
        %v1037 = vpack.c.b16 %v1036, %v1035
        %v1040 = vunpack.c.l.b16 %v885
        %v1041 = vunpack.c.l.b16 %v886
        %v1042 = vpack.c.b16 %v1041, %v1040
        %v1045 = vsel %vm956, %v1037, 0
        %1047 = vmatpush.bf16.msra.mxu0 0
        %1048 = vmatpush.bf16.msra.mxu0 0
        %1049 = vmatpush.bf16.msra.mxu0 0
        %1050 = vmatpush.bf16.msra.mxu0 0
        %1051 = vmatpush.bf16.msra.mxu0 0
        %1052 = vmatpush.bf16.msra.mxu0 0
        %1053 = vmatpush.bf16.msra.mxu0 0
        %1054 = vmatpush.bf16.msra.mxu0 %v1042
        %1055 = vmatmul.bf16.gmra.mxu0 %v1045
        %v1056 = vpop.f32.mrf.mxu0
        %v1057 = vadd.f32 0.0, %v1056
        %v1058 = vpop.f32.mrf.mxu0
        %v1059 = vadd.f32 0.0, %v1058
        %1060 = vdwg.mxu0
        %v1061 = vpack.c.bf16 %v1031, %v1029
        %v1062 = vpack.c.bf16 %v1059, %v1057
        %v1063 = vld [vmem:[%s8] sm:$0xf]
        %v1064 = vld [vmem:[%s8 + $0x4] sm:$0xf]
        %v1065 = vld [vmem:[%s8 + $0x8] sm:$0xf]
        %v1066 = vld [vmem:[%s8 + $0xc] sm:$0xf]
        %v1067 = vld [vmem:[%s8 + $0x10] sm:$0xf]
        %v1068 = vld [vmem:[%s8 + $0x14] sm:$0xf]
        %v1069 = vld [vmem:[%s8 + $0x18] sm:$0xf]
        %v1070 = vld [vmem:[%s8 + $0x1c] sm:$0xf]
        %s1071 = scalar_lea.vmem %s2, 64
        %v1072 = vld [vmem:[%s1071] sm:$0xf]
        %v1073 = vld [vmem:[%s1071 + $0x4] sm:$0xf]
        %v1074 = vld [vmem:[%s1071 + $0x8] sm:$0xf]
        %v1075 = vld [vmem:[%s1071 + $0xc] sm:$0xf]
        %v1076 = vld [vmem:[%s1071 + $0x10] sm:$0xf]
        %v1077 = vld [vmem:[%s1071 + $0x14] sm:$0xf]
        %v1078 = vld [vmem:[%s1071 + $0x18] sm:$0xf]
        %v1079 = vld [vmem:[%s1071 + $0x1c] sm:$0xf]
        %v1080 = vld [vmem:[%s1071 + $0x20] sm:$0xf]
        %v1081 = vld [vmem:[%s1071 + $0x24] sm:$0xf]
        %v1082 = vld [vmem:[%s1071 + $0x28] sm:$0xf]
        %v1083 = vld [vmem:[%s1071 + $0x2c] sm:$0xf]
        %v1084 = vld [vmem:[%s1071 + $0x30] sm:$0xf]
        %v1085 = vld [vmem:[%s1071 + $0x34] sm:$0xf]
        %v1086 = vld [vmem:[%s1071 + $0x38] sm:$0xf]
        %v1087 = vld [vmem:[%s1071 + $0x3c] sm:$0xf]
        %s1088 = scalar_lea.vmem %s5, 1
        %v1089 = vld [vmem:[%s1088] sm:$0x1]
        %v1091 = vperm.slane %v1089, 0
        %v1109 = vunpack.c.l.b16 %v1072
        %v1110 = vunpack.c.l.b16 %v1073
        %v1111 = vunpack.c.l.b16 %v1074
        %v1112 = vunpack.c.l.b16 %v1075
        %v1113 = vunpack.c.l.b16 %v1076
        %v1114 = vunpack.c.l.b16 %v1077
        %v1115 = vunpack.c.l.b16 %v1078
        %v1116 = vunpack.c.l.b16 %v1079
        %v1117 = vunpack.c.l.b16 %v1080
        %v1118 = vunpack.c.l.b16 %v1081
        %v1119 = vunpack.c.l.b16 %v1082
        %v1120 = vunpack.c.l.b16 %v1083
        %v1121 = vunpack.c.l.b16 %v1084
        %v1122 = vunpack.c.l.b16 %v1085
        %v1123 = vunpack.c.l.b16 %v1086
        %v1124 = vunpack.c.l.b16 %v1087
        %v1125 = vpack.c.b16 %v1110, %v1109
        %v1126 = vpack.c.b16 %v1112, %v1111
        %v1127 = vpack.c.b16 %v1114, %v1113
        %v1128 = vpack.c.b16 %v1116, %v1115
        %v1129 = vpack.c.b16 %v1118, %v1117
        %v1130 = vpack.c.b16 %v1120, %v1119
        %v1131 = vpack.c.b16 %v1122, %v1121
        %v1132 = vpack.c.b16 %v1124, %v1123
        %1141 = vmatpush.bf16.msra.mxu0 %v1132
        %1142 = vmatpush.bf16.msra.mxu0 %v1131
        %1143 = vmatpush.bf16.msra.mxu0 %v1130
        %1144 = vmatpush.bf16.msra.mxu0 %v1129
        %1145 = vmatpush.bf16.msra.mxu0 %v1128
        %1146 = vmatpush.bf16.msra.mxu0 %v1127
        %1147 = vmatpush.bf16.msra.mxu0 %v1126
        %1148 = vmatpush.bf16.msra.mxu0 %v1125
        %1149 = vmatmul.bf16.gmra.mxu0 %v612
        %v1150 = vpop.f32.mrf.mxu0
        %v1151 = vadd.f32 %v1091, %v1150
        %v1152 = vpop.f32.mrf.mxu0
        %v1153 = vadd.f32 %v1091, %v1152
        %1154 = vmatmul.bf16.gmra.mxu0 %v613
        %v1155 = vpop.f32.mrf.mxu0
        %v1156 = vadd.f32 %v1091, %v1155
        %v1157 = vpop.f32.mrf.mxu0
        %v1158 = vadd.f32 %v1091, %v1157
        %1159 = vdwg.mxu0
        %s1160 = scalar_lea.vmem %s3, 64
        %v1161 = vld [vmem:[%s1160] sm:$0xf]
        %v1162 = vld [vmem:[%s1160 + $0x4] sm:$0xf]
        %v1163 = vld [vmem:[%s1160 + $0x8] sm:$0xf]
        %v1164 = vld [vmem:[%s1160 + $0xc] sm:$0xf]
        %v1165 = vld [vmem:[%s1160 + $0x10] sm:$0xf]
        %v1166 = vld [vmem:[%s1160 + $0x14] sm:$0xf]
        %v1167 = vld [vmem:[%s1160 + $0x18] sm:$0xf]
        %v1168 = vld [vmem:[%s1160 + $0x1c] sm:$0xf]
        %v1169 = vld [vmem:[%s1160 + $0x20] sm:$0xf]
        %v1170 = vld [vmem:[%s1160 + $0x24] sm:$0xf]
        %v1171 = vld [vmem:[%s1160 + $0x28] sm:$0xf]
        %v1172 = vld [vmem:[%s1160 + $0x2c] sm:$0xf]
        %v1173 = vld [vmem:[%s1160 + $0x30] sm:$0xf]
        %v1174 = vld [vmem:[%s1160 + $0x34] sm:$0xf]
        %v1175 = vld [vmem:[%s1160 + $0x38] sm:$0xf]
        %v1176 = vld [vmem:[%s1160 + $0x3c] sm:$0xf]
        %s1177 = scalar_lea.vmem %s6, 1
        %v1178 = vld [vmem:[%s1177] sm:$0x1]
        %v1180 = vperm.slane %v1178, 0
        %v1198 = vunpack.c.l.b16 %v1161
        %v1199 = vunpack.c.l.b16 %v1162
        %v1200 = vunpack.c.l.b16 %v1163
        %v1201 = vunpack.c.l.b16 %v1164
        %v1202 = vunpack.c.l.b16 %v1165
        %v1203 = vunpack.c.l.b16 %v1166
        %v1204 = vunpack.c.l.b16 %v1167
        %v1205 = vunpack.c.l.b16 %v1168
        %v1206 = vunpack.c.l.b16 %v1169
        %v1207 = vunpack.c.l.b16 %v1170
        %v1208 = vunpack.c.l.b16 %v1171
        %v1209 = vunpack.c.l.b16 %v1172
        %v1210 = vunpack.c.l.b16 %v1173
        %v1211 = vunpack.c.l.b16 %v1174
        %v1212 = vunpack.c.l.b16 %v1175
        %v1213 = vunpack.c.l.b16 %v1176
        %v1214 = vpack.c.b16 %v1199, %v1198
        %v1215 = vpack.c.b16 %v1201, %v1200
        %v1216 = vpack.c.b16 %v1203, %v1202
        %v1217 = vpack.c.b16 %v1205, %v1204
        %v1218 = vpack.c.b16 %v1207, %v1206
        %v1219 = vpack.c.b16 %v1209, %v1208
        %v1220 = vpack.c.b16 %v1211, %v1210
        %v1221 = vpack.c.b16 %v1213, %v1212
        %1230 = vmatpush.bf16.msra.mxu0 %v1221
        %1231 = vmatpush.bf16.msra.mxu0 %v1220
        %1232 = vmatpush.bf16.msra.mxu0 %v1219
        %1233 = vmatpush.bf16.msra.mxu0 %v1218
        %1234 = vmatpush.bf16.msra.mxu0 %v1217
        %1235 = vmatpush.bf16.msra.mxu0 %v1216
        %1236 = vmatpush.bf16.msra.mxu0 %v1215
        %1237 = vmatpush.bf16.msra.mxu0 %v1214
        %1238 = vmatmul.bf16.gmra.mxu0 %v612
        %v1239 = vpop.f32.mrf.mxu0
        %v1240 = vadd.f32 %v1180, %v1239
        %v1241 = vpop.f32.mrf.mxu0
        %v1242 = vadd.f32 %v1180, %v1241
        %1243 = vmatmul.bf16.gmra.mxu0 %v613
        %v1244 = vpop.f32.mrf.mxu0
        %v1245 = vadd.f32 %v1180, %v1244
        %v1246 = vpop.f32.mrf.mxu0
        %v1247 = vadd.f32 %v1180, %v1246
        %1248 = vdwg.mxu0
        %s1249 = scalar_lea.vmem %s4, 64
        %v1250 = vld [vmem:[%s1249] sm:$0xf]
        %v1251 = vld [vmem:[%s1249 + $0x4] sm:$0xf]
        %v1252 = vld [vmem:[%s1249 + $0x8] sm:$0xf]
        %v1253 = vld [vmem:[%s1249 + $0xc] sm:$0xf]
        %v1254 = vld [vmem:[%s1249 + $0x10] sm:$0xf]
        %v1255 = vld [vmem:[%s1249 + $0x14] sm:$0xf]
        %v1256 = vld [vmem:[%s1249 + $0x18] sm:$0xf]
        %v1257 = vld [vmem:[%s1249 + $0x1c] sm:$0xf]
        %v1258 = vld [vmem:[%s1249 + $0x20] sm:$0xf]
        %v1259 = vld [vmem:[%s1249 + $0x24] sm:$0xf]
        %v1260 = vld [vmem:[%s1249 + $0x28] sm:$0xf]
        %v1261 = vld [vmem:[%s1249 + $0x2c] sm:$0xf]
        %v1262 = vld [vmem:[%s1249 + $0x30] sm:$0xf]
        %v1263 = vld [vmem:[%s1249 + $0x34] sm:$0xf]
        %v1264 = vld [vmem:[%s1249 + $0x38] sm:$0xf]
        %v1265 = vld [vmem:[%s1249 + $0x3c] sm:$0xf]
        %s1266 = scalar_lea.vmem %s7, 1
        %v1267 = vld [vmem:[%s1266] sm:$0x1]
        %v1269 = vperm.slane %v1267, 0
        %v1287 = vunpack.c.l.b16 %v1250
        %v1288 = vunpack.c.l.b16 %v1251
        %v1289 = vunpack.c.l.b16 %v1252
        %v1290 = vunpack.c.l.b16 %v1253
        %v1291 = vunpack.c.l.b16 %v1254
        %v1292 = vunpack.c.l.b16 %v1255
        %v1293 = vunpack.c.l.b16 %v1256
        %v1294 = vunpack.c.l.b16 %v1257
        %v1295 = vunpack.c.l.b16 %v1258
        %v1296 = vunpack.c.l.b16 %v1259
        %v1297 = vunpack.c.l.b16 %v1260
        %v1298 = vunpack.c.l.b16 %v1261
        %v1299 = vunpack.c.l.b16 %v1262
        %v1300 = vunpack.c.l.b16 %v1263
        %v1301 = vunpack.c.l.b16 %v1264
        %v1302 = vunpack.c.l.b16 %v1265
        %v1303 = vpack.c.b16 %v1288, %v1287
        %v1304 = vpack.c.b16 %v1290, %v1289
        %v1305 = vpack.c.b16 %v1292, %v1291
        %v1306 = vpack.c.b16 %v1294, %v1293
        %v1307 = vpack.c.b16 %v1296, %v1295
        %v1308 = vpack.c.b16 %v1298, %v1297
        %v1309 = vpack.c.b16 %v1300, %v1299
        %v1310 = vpack.c.b16 %v1302, %v1301
        %1319 = vmatpush.bf16.msra.mxu0 %v1310
        %1320 = vmatpush.bf16.msra.mxu0 %v1309
        %1321 = vmatpush.bf16.msra.mxu0 %v1308
        %1322 = vmatpush.bf16.msra.mxu0 %v1307
        %1323 = vmatpush.bf16.msra.mxu0 %v1306
        %1324 = vmatpush.bf16.msra.mxu0 %v1305
        %1325 = vmatpush.bf16.msra.mxu0 %v1304
        %1326 = vmatpush.bf16.msra.mxu0 %v1303
        %1327 = vmatmul.bf16.gmra.mxu0 %v612
        %v1328 = vpop.f32.mrf.mxu0
        %v1329 = vadd.f32 %v1269, %v1328
        %v1330 = vpop.f32.mrf.mxu0
        %v1331 = vadd.f32 %v1269, %v1330
        %1332 = vmatmul.bf16.gmra.mxu0 %v613
        %v1333 = vpop.f32.mrf.mxu0
        %v1334 = vadd.f32 %v1269, %v1333
        %v1335 = vpop.f32.mrf.mxu0
        %v1336 = vadd.f32 %v1269, %v1335
        %1337 = vdwg.mxu0
        %v1338 = vpack.c.bf16 %v1151, %v1151
        %v1339 = vpack.c.bf16 %v1153, %v1153
        %v1340 = vpack.c.bf16 %v1156, %v1156
        %v1341 = vpack.c.bf16 %v1158, %v1158
        %v1342 = vpack.c.bf16 %v1240, %v1240
        %v1343 = vpack.c.bf16 %v1242, %v1242
        %v1344 = vpack.c.bf16 %v1245, %v1245
        %v1345 = vpack.c.bf16 %v1247, %v1247
        %v1346 = vpack.c.bf16 %v1329, %v1329
        %v1347 = vpack.c.bf16 %v1331, %v1331
        %v1348 = vpack.c.bf16 %v1334, %v1334
        %v1349 = vpack.c.bf16 %v1336, %v1336
        %v1352 = vunpack.c.l.b16 %v1338
        %v1353 = vunpack.c.l.b16 %v1339
        %v1354 = vpack.c.b16 %v1353, %v1352
        %v1357 = vunpack.c.l.b16 %v1342
        %v1358 = vunpack.c.l.b16 %v1343
        %v1359 = vpack.c.b16 %v1358, %v1357
        %v1361 = vsel %vm897, %v1354, 0
        %v1364 = vsel %vm897, %v1359, 0
        %1366 = vmatpush.bf16.xpose.msra.mxu0 0
        %1367 = vmatpush.bf16.xpose.msra.mxu0 0
        %1368 = vmatpush.bf16.xpose.msra.mxu0 0
        %1369 = vmatpush.bf16.xpose.msra.mxu0 0
        %1370 = vmatpush.bf16.xpose.msra.mxu0 0
        %1371 = vmatpush.bf16.xpose.msra.mxu0 0
        %1372 = vmatpush.bf16.xpose.msra.mxu0 0
        %1373 = vmatpush.bf16.xpose.msra.mxu0 %v1364
        %1374 = vmatmul.bf16.gmra.mxu0 %v1361
        %v1375 = vpop.f32.mrf.mxu0
        %v1376 = vadd.f32 0.0, %v1375
        %v1377 = vpop.f32.mrf.mxu0
        %v1378 = vadd.f32 0.0, %v1377
        %1379 = vdwg.mxu0
        %v1382 = vunpack.c.l.b16 %v1340
        %v1383 = vunpack.c.l.b16 %v1341
        %v1384 = vpack.c.b16 %v1383, %v1382
        %v1387 = vunpack.c.l.b16 %v1344
        %v1388 = vunpack.c.l.b16 %v1345
        %v1389 = vpack.c.b16 %v1388, %v1387
        %v1391 = vsel %vm897, %v1384, 0
        %v1394 = vsel %vm897, %v1389, 0
        %1396 = vmatpush.bf16.xpose.msra.mxu0 0
        %1397 = vmatpush.bf16.xpose.msra.mxu0 0
        %1398 = vmatpush.bf16.xpose.msra.mxu0 0
        %1399 = vmatpush.bf16.xpose.msra.mxu0 0
        %1400 = vmatpush.bf16.xpose.msra.mxu0 0
        %1401 = vmatpush.bf16.xpose.msra.mxu0 0
        %1402 = vmatpush.bf16.xpose.msra.mxu0 0
        %1403 = vmatpush.bf16.xpose.msra.mxu0 %v1394
        %1404 = vmatmul.bf16.gmra.mxu0 %v1391
        %v1405 = vpop.f32.mrf.mxu0
        %v1406 = vadd.f32 0.0, %v1405
        %v1407 = vpop.f32.mrf.mxu0
        %v1408 = vadd.f32 0.0, %v1407
        %1409 = vdwg.mxu0
        %v1410 = vmul.f32 %v1376, 0.125
        %v1411 = vmul.f32 %v1378, 0.125
        %v1412 = vmul.f32 %v1406, 0.125
        %v1413 = vmul.f32 %v1408, 0.125
        %v1414 = vadd.f32 %v1410, %v608
        %v1415 = vadd.f32 %v1411, %v608
        %v1416 = vadd.f32 %v1412, %v609
        %v1417 = vadd.f32 %v1413, %v609
        %v1418 = vsel %vm956, %v1414, -inf
        %1419 = vmax.xlane.f32.xlu0 %v1418
        %v1420 = vpop.xlane.xlu0 %1419
        %v1421 = vsel %vm956, %v1415, -inf
        %1422 = vmax.xlane.f32.xlu0 %v1421
        %v1423 = vpop.xlane.xlu0 %1422
        %v1424 = vsel %vm956, %v1416, -inf
        %1425 = vmax.xlane.f32.xlu0 %v1424
        %v1426 = vpop.xlane.xlu0 %1425
        %v1427 = vsel %vm956, %v1417, -inf
        %1428 = vmax.xlane.f32.xlu0 %v1427
        %v1429 = vpop.xlane.xlu0 %1428
        %v1430 = vsub.f32 %v1414, %v1420
        %v1431 = vsub.f32 %v1415, %v1423
        %v1432 = vsub.f32 %v1416, %v1426
        %v1433 = vsub.f32 %v1417, %v1429
        %v1434 = vmul.f32 %v1430, 1.442695
        %v1435 = vpow.pop %v1434
        %v1436 = vmul.f32 %v1431, 1.442695
        %v1437 = vpow.pop %v1436
        %v1438 = vmul.f32 %v1432, 1.442695
        %v1439 = vpow.pop %v1438
        %v1440 = vmul.f32 %v1433, 1.442695
        %v1441 = vpow.pop %v1440
        %v1442 = vsel %vm956, %v1435, 0.0
        %1443 = vadd.xlane.f32.xlu0 %v1442
        %v1444 = vpop.xlane.xlu0 %1443
        %v1445 = vsel %vm956, %v1437, 0.0
        %1446 = vadd.xlane.f32.xlu0 %v1445
        %v1447 = vpop.xlane.xlu0 %1446
        %v1448 = vsel %vm956, %v1439, 0.0
        %1449 = vadd.xlane.f32.xlu0 %v1448
        %v1450 = vpop.xlane.xlu0 %1449
        %v1451 = vsel %vm956, %v1441, 0.0
        %1452 = vadd.xlane.f32.xlu0 %v1451
        %v1453 = vpop.xlane.xlu0 %1452
        %v1454 = vrcp.pop %v1444
        %v1455 = vrcp.pop %v1447
        %v1456 = vrcp.pop %v1450
        %v1457 = vrcp.pop %v1453
        %v1458 = vmul.f32 %v1435, %v1454
        %v1459 = vmul.f32 %v1437, %v1455
        %v1460 = vmul.f32 %v1439, %v1456
        %v1461 = vmul.f32 %v1441, %v1457
        %v1462 = vpack.c.bf16 %v1458, %v1458
        %v1463 = vpack.c.bf16 %v1459, %v1459
        %v1464 = vpack.c.bf16 %v1460, %v1460
        %v1465 = vpack.c.bf16 %v1461, %v1461
        %v1468 = vunpack.c.l.b16 %v1462
        %v1469 = vunpack.c.l.b16 %v1463
        %v1470 = vpack.c.b16 %v1469, %v1468
        %v1473 = vunpack.c.l.b16 %v1346
        %v1474 = vunpack.c.l.b16 %v1347
        %v1475 = vpack.c.b16 %v1474, %v1473
        %v1478 = vsel %vm956, %v1470, 0
        %1480 = vmatpush.bf16.msra.mxu0 0
        %1481 = vmatpush.bf16.msra.mxu0 0
        %1482 = vmatpush.bf16.msra.mxu0 0
        %1483 = vmatpush.bf16.msra.mxu0 0
        %1484 = vmatpush.bf16.msra.mxu0 0
        %1485 = vmatpush.bf16.msra.mxu0 0
        %1486 = vmatpush.bf16.msra.mxu0 0
        %1487 = vmatpush.bf16.msra.mxu0 %v1475
        %1488 = vmatmul.bf16.gmra.mxu0 %v1478
        %v1489 = vpop.f32.mrf.mxu0
        %v1490 = vadd.f32 0.0, %v1489
        %v1491 = vpop.f32.mrf.mxu0
        %v1492 = vadd.f32 0.0, %v1491
        %1493 = vdwg.mxu0
        %v1496 = vunpack.c.l.b16 %v1464
        %v1497 = vunpack.c.l.b16 %v1465
        %v1498 = vpack.c.b16 %v1497, %v1496
        %v1501 = vunpack.c.l.b16 %v1348
        %v1502 = vunpack.c.l.b16 %v1349
        %v1503 = vpack.c.b16 %v1502, %v1501
        %v1506 = vsel %vm956, %v1498, 0
        %1508 = vmatpush.bf16.msra.mxu0 0
        %1509 = vmatpush.bf16.msra.mxu0 0
        %1510 = vmatpush.bf16.msra.mxu0 0
        %1511 = vmatpush.bf16.msra.mxu0 0
        %1512 = vmatpush.bf16.msra.mxu0 0
        %1513 = vmatpush.bf16.msra.mxu0 0
        %1514 = vmatpush.bf16.msra.mxu0 0
        %1515 = vmatpush.bf16.msra.mxu0 %v1503
        %1516 = vmatmul.bf16.gmra.mxu0 %v1506
        %v1517 = vpop.f32.mrf.mxu0
        %v1518 = vadd.f32 0.0, %v1517
        %v1519 = vpop.f32.mrf.mxu0
        %v1520 = vadd.f32 0.0, %v1519
        %1521 = vdwg.mxu0
        %v1522 = vpack.c.bf16 %v1492, %v1490
        %v1523 = vpack.c.bf16 %v1520, %v1518
        %s1524 = scalar_lea.vmem %s8, 32
        %v1525 = vld [vmem:[%s1524] sm:$0xf]
        %v1526 = vld [vmem:[%s1524 + $0x4] sm:$0xf]
        %v1527 = vld [vmem:[%s1524 + $0x8] sm:$0xf]
        %v1528 = vld [vmem:[%s1524 + $0xc] sm:$0xf]
        %v1529 = vld [vmem:[%s1524 + $0x10] sm:$0xf]
        %v1530 = vld [vmem:[%s1524 + $0x14] sm:$0xf]
        %v1531 = vld [vmem:[%s1524 + $0x18] sm:$0xf]
        %v1532 = vld [vmem:[%s1524 + $0x1c] sm:$0xf]
        %v1541 = vunpack.c.l.b16 %v1525
        %v1542 = vunpack.c.l.b16 %v1526
        %v1543 = vunpack.c.l.b16 %v1527
        %v1544 = vunpack.c.l.b16 %v1528
        %v1545 = vunpack.c.l.b16 %v1529
        %v1546 = vunpack.c.l.b16 %v1530
        %v1547 = vunpack.c.l.b16 %v1531
        %v1548 = vunpack.c.l.b16 %v1532
        %v1549 = vpack.c.b16 %v1542, %v1541
        %v1550 = vpack.c.b16 %v1544, %v1543
        %v1551 = vpack.c.b16 %v1546, %v1545
        %v1552 = vpack.c.b16 %v1548, %v1547
        %v1558 = vsel %vm897, %v1522, 0
        %v1561 = vsel %vm897, %v1523, 0
        %1563 = vmatpush.bf16.msra.mxu0 0
        %1564 = vmatpush.bf16.msra.mxu0 0
        %1565 = vmatpush.bf16.msra.mxu0 0
        %1566 = vmatpush.bf16.msra.mxu0 0
        %1567 = vmatpush.bf16.msra.mxu0 %v1552
        %1568 = vmatpush.bf16.msra.mxu0 %v1551
        %1569 = vmatpush.bf16.msra.mxu0 %v1550
        %1570 = vmatpush.bf16.msra.mxu0 %v1549
        %1571 = vmatmul.bf16.gmra.mxu0 %v1558
        %v1572 = vpop.f32.mrf.mxu0
        %v1573 = vadd.f32 0.0, %v1572
        %v1574 = vpop.f32.mrf.mxu0
        %v1575 = vadd.f32 0.0, %v1574
        %1576 = vmatmul.bf16.gmra.mxu0 %v1561
        %v1577 = vpop.f32.mrf.mxu0
        %v1578 = vadd.f32 0.0, %v1577
        %v1579 = vpop.f32.mrf.mxu0
        %v1580 = vadd.f32 0.0, %v1579
        %1581 = vdwg.mxu0
        %v1590 = vunpack.c.l.b16 %v1063
        %v1591 = vunpack.c.l.b16 %v1064
        %v1592 = vunpack.c.l.b16 %v1065
        %v1593 = vunpack.c.l.b16 %v1066
        %v1594 = vunpack.c.l.b16 %v1067
        %v1595 = vunpack.c.l.b16 %v1068
        %v1596 = vunpack.c.l.b16 %v1069
        %v1597 = vunpack.c.l.b16 %v1070
        %v1598 = vpack.c.b16 %v1591, %v1590
        %v1599 = vpack.c.b16 %v1593, %v1592
        %v1600 = vpack.c.b16 %v1595, %v1594
        %v1601 = vpack.c.b16 %v1597, %v1596
        %v1607 = vsel %vm897, %v1061, 0
        %v1610 = vsel %vm897, %v1062, 0
        %1612 = vmatpush.bf16.msra.mxu0 0
        %1613 = vmatpush.bf16.msra.mxu0 0
        %1614 = vmatpush.bf16.msra.mxu0 0
        %1615 = vmatpush.bf16.msra.mxu0 0
        %1616 = vmatpush.bf16.msra.mxu0 %v1601
        %1617 = vmatpush.bf16.msra.mxu0 %v1600
        %1618 = vmatpush.bf16.msra.mxu0 %v1599
        %1619 = vmatpush.bf16.msra.mxu0 %v1598
        %1620 = vmatmul.bf16.gmra.mxu0 %v1607
        %v1621 = vpop.f32.mrf.mxu0
        %v1622 = vadd.f32 %v1573, %v1621
        %v1623 = vpop.f32.mrf.mxu0
        %v1624 = vadd.f32 %v1575, %v1623
        %1625 = vmatmul.bf16.gmra.mxu0 %v1610
        %v1626 = vpop.f32.mrf.mxu0
        %v1627 = vadd.f32 %v1578, %v1626
        %v1628 = vpop.f32.mrf.mxu0
        %v1629 = vadd.f32 %v1580, %v1628
        %1630 = vdwg.mxu0
        %v1631 = vld [vmem:[%s9] sm:$0x1]
        %v1633 = vperm.slane %v1631, 0
        %v1635 = vadd.f32 %v1622, %v1633
        %v1636 = vadd.f32 %v1624, %v1633
        %v1637 = vadd.f32 %v1627, %v1633
        %v1638 = vadd.f32 %v1629, %v1633
        %v1639 = vadd.f32 %v600, %v1635
        %v1640 = vadd.f32 %v601, %v1636
        %v1641 = vadd.f32 %v602, %v1637
        %v1642 = vadd.f32 %v603, %v1638
        %v1643 = vld [vmem:[%s10] sm:$0x1]
        %v1644 = vld [vmem:[%s11] sm:$0x1]
        %1645 = vadd.xlane.f32.xlu0 %v1639
        %v1646 = vpop.xlane.xlu0 %1645
        %1647 = vadd.xlane.f32.xlu0 %v1640
        %v1648 = vpop.xlane.xlu0 %1647
        %1649 = vadd.xlane.f32.xlu0 %v1641
        %v1650 = vpop.xlane.xlu0 %1649
        %1651 = vadd.xlane.f32.xlu0 %v1642
        %v1652 = vpop.xlane.xlu0 %1651
        %v1653 = vrcp.pop 128.0
        %v1654 = vmul.f32 128.0, %v1653
        %v1655 = vsub.f32 1.0, %v1654
        %v1656 = vmul.f32 %v1653, %v1655
        %v1657 = vadd.f32 %v1653, %v1656
        %vm1658 = vweird.f32 %v1653
        %v1659 = vsel %vm1658, %v1653, %v1657
        %v1660 = vmul.f32 %v1646, %v1659
        %v1661 = vmul.f32 %v1648, %v1659
        %v1662 = vmul.f32 %v1650, %v1659
        %v1663 = vmul.f32 %v1652, %v1659
        %v1664 = vsub.f32 %v1639, %v1660
        %v1665 = vsub.f32 %v1640, %v1661
        %v1666 = vsub.f32 %v1641, %v1662
        %v1667 = vsub.f32 %v1642, %v1663
        %v1668 = vmul.f32 %v1664, %v1664
        %v1669 = vmul.f32 %v1665, %v1665
        %v1670 = vmul.f32 %v1666, %v1666
        %v1671 = vmul.f32 %v1667, %v1667
        %1672 = vadd.xlane.f32.xlu0 %v1668
        %v1673 = vpop.xlane.xlu0 %1672
        %1674 = vadd.xlane.f32.xlu0 %v1669
        %v1675 = vpop.xlane.xlu0 %1674
        %1676 = vadd.xlane.f32.xlu0 %v1670
        %v1677 = vpop.xlane.xlu0 %1676
        %1678 = vadd.xlane.f32.xlu0 %v1671
        %v1679 = vpop.xlane.xlu0 %1678
        %v1680 = vmul.f32 %v1673, %v1659
        %v1681 = vmul.f32 %v1675, %v1659
        %v1682 = vmul.f32 %v1677, %v1659
        %v1683 = vmul.f32 %v1679, %v1659
        %v1684 = vadd.f32 %v1680, 1e-05
        %v1685 = vadd.f32 %v1681, 1e-05
        %v1686 = vadd.f32 %v1682, 1e-05
        %v1687 = vadd.f32 %v1683, 1e-05
        %v1688 = vrsqrt.pop %v1684
        %v1689 = vmul.f32 %v1688, %v1684
        %v1690 = vmul.f32 %v1689, %v1688
        %v1691 = vmul.f32 0.5, %v1690
        %v1692 = vsub.f32 1.5, %v1691
        %v1693 = vmul.f32 %v1688, %v1692
        %vm1694 = vweird.f32 %v1684
        %vm1695 = vweird.f32 %v1688
        %vm1696 = vmor %vm1694, %vm1695
        %v1697 = vsel %vm1696, %v1688, %v1693
        %v1698 = vrsqrt.pop %v1685
        %v1699 = vmul.f32 %v1698, %v1685
        %v1700 = vmul.f32 %v1699, %v1698
        %v1701 = vmul.f32 0.5, %v1700
        %v1702 = vsub.f32 1.5, %v1701
        %v1703 = vmul.f32 %v1698, %v1702
        %vm1704 = vweird.f32 %v1685
        %vm1705 = vweird.f32 %v1698
        %vm1706 = vmor %vm1704, %vm1705
        %v1707 = vsel %vm1706, %v1698, %v1703
        %v1708 = vrsqrt.pop %v1686
        %v1709 = vmul.f32 %v1708, %v1686
        %v1710 = vmul.f32 %v1709, %v1708
        %v1711 = vmul.f32 0.5, %v1710
        %v1712 = vsub.f32 1.5, %v1711
        %v1713 = vmul.f32 %v1708, %v1712
        %vm1714 = vweird.f32 %v1686
        %vm1715 = vweird.f32 %v1708
        %vm1716 = vmor %vm1714, %vm1715
        %v1717 = vsel %vm1716, %v1708, %v1713
        %v1718 = vrsqrt.pop %v1687
        %v1719 = vmul.f32 %v1718, %v1687
        %v1720 = vmul.f32 %v1719, %v1718
        %v1721 = vmul.f32 0.5, %v1720
        %v1722 = vsub.f32 1.5, %v1721
        %v1723 = vmul.f32 %v1718, %v1722
        %vm1724 = vweird.f32 %v1687
        %vm1725 = vweird.f32 %v1718
        %vm1726 = vmor %vm1724, %vm1725
        %v1727 = vsel %vm1726, %v1718, %v1723
        %v1728 = vmul.f32 %v1664, %v1697
        %v1729 = vmul.f32 %v1665, %v1707
        %v1730 = vmul.f32 %v1666, %v1717
        %v1731 = vmul.f32 %v1667, %v1727
        %v1733 = vperm.slane %v1643, 0
        %v1735 = vmul.f32 %v1728, %v1733
        %v1736 = vmul.f32 %v1729, %v1733
        %v1737 = vmul.f32 %v1730, %v1733
        %v1738 = vmul.f32 %v1731, %v1733
        %v1740 = vperm.slane %v1644, 0
        %v1742 = vadd.f32 %v1735, %v1740
        %v1743 = vadd.f32 %v1736, %v1740
        %v1744 = vadd.f32 %v1737, %v1740
        %v1745 = vadd.f32 %v1738, %v1740
        %v1746 = vpack.c.bf16 %v1743, %v1742
        %v1747 = vpack.c.bf16 %v1745, %v1744
        %v1748 = vld [vmem:[%s12] sm:$0xff]
        %v1749 = vld [vmem:[%s12 + $0x8] sm:$0xff]
        %v1750 = vld [vmem:[%s12 + $0x10] sm:$0xff]
        %v1751 = vld [vmem:[%s12 + $0x18] sm:$0xff]
        %v1752 = vld [vmem:[%s12 + $0x20] sm:$0xff]
        %v1753 = vld [vmem:[%s12 + $0x28] sm:$0xff]
        %v1754 = vld [vmem:[%s12 + $0x30] sm:$0xff]
        %v1755 = vld [vmem:[%s12 + $0x38] sm:$0xff]
        %v1756 = vld [vmem:[%s12 + $0x40] sm:$0xff]
        %v1757 = vld [vmem:[%s12 + $0x48] sm:$0xff]
        %v1758 = vld [vmem:[%s12 + $0x50] sm:$0xff]
        %v1759 = vld [vmem:[%s12 + $0x58] sm:$0xff]
        %v1760 = vld [vmem:[%s12 + $0x60] sm:$0xff]
        %v1761 = vld [vmem:[%s12 + $0x68] sm:$0xff]
        %v1762 = vld [vmem:[%s12 + $0x70] sm:$0xff]
        %v1763 = vld [vmem:[%s12 + $0x78] sm:$0xff]
        %v1764 = vld [vmem:[%s13] sm:$0x3]
        %v1766 = vperm.slane %v1764, 0
        %v1767 = vperm.slane %v1764, 1
        %v1786 = vunpack.c.l.b16 %v1748
        %v1787 = vunpack.c.h.b16 %v1748
        %v1788 = vunpack.c.l.b16 %v1749
        %v1789 = vunpack.c.h.b16 %v1749
        %v1790 = vunpack.c.l.b16 %v1750
        %v1791 = vunpack.c.h.b16 %v1750
        %v1792 = vunpack.c.l.b16 %v1751
        %v1793 = vunpack.c.h.b16 %v1751
        %v1794 = vunpack.c.l.b16 %v1752
        %v1795 = vunpack.c.h.b16 %v1752
        %v1796 = vunpack.c.l.b16 %v1753
        %v1797 = vunpack.c.h.b16 %v1753
        %v1798 = vunpack.c.l.b16 %v1754
        %v1799 = vunpack.c.h.b16 %v1754
        %v1800 = vunpack.c.l.b16 %v1755
        %v1801 = vunpack.c.h.b16 %v1755
        %v1802 = vunpack.c.l.b16 %v1756
        %v1803 = vunpack.c.h.b16 %v1756
        %v1804 = vunpack.c.l.b16 %v1757
        %v1805 = vunpack.c.h.b16 %v1757
        %v1806 = vunpack.c.l.b16 %v1758
        %v1807 = vunpack.c.h.b16 %v1758
        %v1808 = vunpack.c.l.b16 %v1759
        %v1809 = vunpack.c.h.b16 %v1759
        %v1810 = vunpack.c.l.b16 %v1760
        %v1811 = vunpack.c.h.b16 %v1760
        %v1812 = vunpack.c.l.b16 %v1761
        %v1813 = vunpack.c.h.b16 %v1761
        %v1814 = vunpack.c.l.b16 %v1762
        %v1815 = vunpack.c.h.b16 %v1762
        %v1816 = vunpack.c.l.b16 %v1763
        %v1817 = vunpack.c.h.b16 %v1763
        %v1818 = vpack.c.b16 %v1788, %v1786
        %v1819 = vpack.c.b16 %v1789, %v1787
        %v1820 = vpack.c.b16 %v1792, %v1790
        %v1821 = vpack.c.b16 %v1793, %v1791
        %v1822 = vpack.c.b16 %v1796, %v1794
        %v1823 = vpack.c.b16 %v1797, %v1795
        %v1824 = vpack.c.b16 %v1800, %v1798
        %v1825 = vpack.c.b16 %v1801, %v1799
        %v1826 = vpack.c.b16 %v1804, %v1802
        %v1827 = vpack.c.b16 %v1805, %v1803
        %v1828 = vpack.c.b16 %v1808, %v1806
        %v1829 = vpack.c.b16 %v1809, %v1807
        %v1830 = vpack.c.b16 %v1812, %v1810
        %v1831 = vpack.c.b16 %v1813, %v1811
        %v1832 = vpack.c.b16 %v1816, %v1814
        %v1833 = vpack.c.b16 %v1817, %v1815
        %1850 = vmatpush.bf16.msra.mxu0 %v1832
        %1851 = vmatpush.bf16.msra.mxu0 %v1830
        %1852 = vmatpush.bf16.msra.mxu0 %v1828
        %1853 = vmatpush.bf16.msra.mxu0 %v1826
        %1854 = vmatpush.bf16.msra.mxu0 %v1824
        %1855 = vmatpush.bf16.msra.mxu0 %v1822
        %1856 = vmatpush.bf16.msra.mxu0 %v1820
        %1857 = vmatpush.bf16.msra.mxu0 %v1818
        %1858 = vmatmul.bf16.gmra.mxu0 %v1746
        %v1859 = vpop.f32.mrf.mxu0
        %v1860 = vadd.f32 %v1766, %v1859
        %v1861 = vpop.f32.mrf.mxu0
        %v1862 = vadd.f32 %v1766, %v1861
        %1863 = vmatmul.bf16.gmra.mxu0 %v1747
        %v1864 = vpop.f32.mrf.mxu0
        %v1865 = vadd.f32 %v1766, %v1864
        %v1866 = vpop.f32.mrf.mxu0
        %v1867 = vadd.f32 %v1766, %v1866
        %1868 = vdwg.mxu0
        %1869 = vmatpush.bf16.msra.mxu0 %v1833
        %1870 = vmatpush.bf16.msra.mxu0 %v1831
        %1871 = vmatpush.bf16.msra.mxu0 %v1829
        %1872 = vmatpush.bf16.msra.mxu0 %v1827
        %1873 = vmatpush.bf16.msra.mxu0 %v1825
        %1874 = vmatpush.bf16.msra.mxu0 %v1823
        %1875 = vmatpush.bf16.msra.mxu0 %v1821
        %1876 = vmatpush.bf16.msra.mxu0 %v1819
        %1877 = vmatmul.bf16.gmra.mxu0 %v1746
        %v1878 = vpop.f32.mrf.mxu0
        %v1879 = vadd.f32 %v1767, %v1878
        %v1880 = vpop.f32.mrf.mxu0
        %v1881 = vadd.f32 %v1767, %v1880
        %1882 = vmatmul.bf16.gmra.mxu0 %v1747
        %v1883 = vpop.f32.mrf.mxu0
        %v1884 = vadd.f32 %v1767, %v1883
        %v1885 = vpop.f32.mrf.mxu0
        %v1886 = vadd.f32 %v1767, %v1885
        %1887 = vdwg.mxu0
        %v1888 = vmul.f32 %v1860, %v1860
        %v1889 = vmul.f32 %v1879, %v1879
        %v1890 = vmul.f32 %v1862, %v1862
        %v1891 = vmul.f32 %v1881, %v1881
        %v1892 = vmul.f32 %v1865, %v1865
        %v1893 = vmul.f32 %v1884, %v1884
        %v1894 = vmul.f32 %v1867, %v1867
        %v1895 = vmul.f32 %v1886, %v1886
        %v1896 = vmul.f32 %v1860, %v1888
        %v1897 = vmul.f32 %v1879, %v1889
        %v1898 = vmul.f32 %v1862, %v1890
        %v1899 = vmul.f32 %v1881, %v1891
        %v1900 = vmul.f32 %v1865, %v1892
        %v1901 = vmul.f32 %v1884, %v1893
        %v1902 = vmul.f32 %v1867, %v1894
        %v1903 = vmul.f32 %v1886, %v1895
        %v1904 = vmul.f32 %v1896, 0.044715
        %v1905 = vmul.f32 %v1897, 0.044715
        %v1906 = vmul.f32 %v1898, 0.044715
        %v1907 = vmul.f32 %v1899, 0.044715
        %v1908 = vmul.f32 %v1900, 0.044715
        %v1909 = vmul.f32 %v1901, 0.044715
        %v1910 = vmul.f32 %v1902, 0.044715
        %v1911 = vmul.f32 %v1903, 0.044715
        %v1912 = vadd.f32 %v1860, %v1904
        %v1913 = vadd.f32 %v1879, %v1905
        %v1914 = vadd.f32 %v1862, %v1906
        %v1915 = vadd.f32 %v1881, %v1907
        %v1916 = vadd.f32 %v1865, %v1908
        %v1917 = vadd.f32 %v1884, %v1909
        %v1918 = vadd.f32 %v1867, %v1910
        %v1919 = vadd.f32 %v1886, %v1911
        %v1920 = vmul.f32 %v1912, 0.7978846
        %v1921 = vmul.f32 %v1913, 0.7978846
        %v1922 = vmul.f32 %v1914, 0.7978846
        %v1923 = vmul.f32 %v1915, 0.7978846
        %v1924 = vmul.f32 %v1916, 0.7978846
        %v1925 = vmul.f32 %v1917, 0.7978846
        %v1926 = vmul.f32 %v1918, 0.7978846
        %v1927 = vmul.f32 %v1919, 0.7978846
        %v1928 = vtanh.pop %v1920
        %v1929 = vtanh.pop %v1921
        %v1930 = vtanh.pop %v1922
        %v1931 = vtanh.pop %v1923
        %v1932 = vtanh.pop %v1924
        %v1933 = vtanh.pop %v1925
        %v1934 = vtanh.pop %v1926
        %v1935 = vtanh.pop %v1927
        %v1936 = vadd.f32 %v1928, 1.0
        %v1937 = vadd.f32 %v1929, 1.0
        %v1938 = vadd.f32 %v1930, 1.0
        %v1939 = vadd.f32 %v1931, 1.0
        %v1940 = vadd.f32 %v1932, 1.0
        %v1941 = vadd.f32 %v1933, 1.0
        %v1942 = vadd.f32 %v1934, 1.0
        %v1943 = vadd.f32 %v1935, 1.0
        %v1944 = vmul.f32 %v1936, 0.5
        %v1945 = vmul.f32 %v1937, 0.5
        %v1946 = vmul.f32 %v1938, 0.5
        %v1947 = vmul.f32 %v1939, 0.5
        %v1948 = vmul.f32 %v1940, 0.5
        %v1949 = vmul.f32 %v1941, 0.5
        %v1950 = vmul.f32 %v1942, 0.5
        %v1951 = vmul.f32 %v1943, 0.5
        %v1952 = vmul.f32 %v1860, %v1944
        %v1953 = vmul.f32 %v1879, %v1945
        %v1954 = vmul.f32 %v1862, %v1946
        %v1955 = vmul.f32 %v1881, %v1947
        %v1956 = vmul.f32 %v1865, %v1948
        %v1957 = vmul.f32 %v1884, %v1949
        %v1958 = vmul.f32 %v1867, %v1950
        %v1959 = vmul.f32 %v1886, %v1951
        %v1960 = vpack.c.bf16 %v1954, %v1952
        %v1961 = vpack.c.bf16 %v1955, %v1953
        %v1962 = vpack.c.bf16 %v1958, %v1956
        %v1963 = vpack.c.bf16 %v1959, %v1957
        %v1964 = vld [vmem:[%s14] sm:$0xf]
        %v1965 = vld [vmem:[%s14 + $0x4] sm:$0xf]
        %v1966 = vld [vmem:[%s14 + $0x8] sm:$0xf]
        %v1967 = vld [vmem:[%s14 + $0xc] sm:$0xf]
        %v1968 = vld [vmem:[%s14 + $0x10] sm:$0xf]
        %v1969 = vld [vmem:[%s14 + $0x14] sm:$0xf]
        %v1970 = vld [vmem:[%s14 + $0x18] sm:$0xf]
        %v1971 = vld [vmem:[%s14 + $0x1c] sm:$0xf]
        %v1972 = vld [vmem:[%s14 + $0x20] sm:$0xf]
        %v1973 = vld [vmem:[%s14 + $0x24] sm:$0xf]
        %v1974 = vld [vmem:[%s14 + $0x28] sm:$0xf]
        %v1975 = vld [vmem:[%s14 + $0x2c] sm:$0xf]
        %v1976 = vld [vmem:[%s14 + $0x30] sm:$0xf]
        %v1977 = vld [vmem:[%s14 + $0x34] sm:$0xf]
        %v1978 = vld [vmem:[%s14 + $0x38] sm:$0xf]
        %v1979 = vld [vmem:[%s14 + $0x3c] sm:$0xf]
        %v1980 = vld [vmem:[%s14 + $0x40] sm:$0xf]
        %v1981 = vld [vmem:[%s14 + $0x44] sm:$0xf]
        %v1982 = vld [vmem:[%s14 + $0x48] sm:$0xf]
        %v1983 = vld [vmem:[%s14 + $0x4c] sm:$0xf]
        %v1984 = vld [vmem:[%s14 + $0x50] sm:$0xf]
        %v1985 = vld [vmem:[%s14 + $0x54] sm:$0xf]
        %v1986 = vld [vmem:[%s14 + $0x58] sm:$0xf]
        %v1987 = vld [vmem:[%s14 + $0x5c] sm:$0xf]
        %v1988 = vld [vmem:[%s14 + $0x60] sm:$0xf]
        %v1989 = vld [vmem:[%s14 + $0x64] sm:$0xf]
        %v1990 = vld [vmem:[%s14 + $0x68] sm:$0xf]
        %v1991 = vld [vmem:[%s14 + $0x6c] sm:$0xf]
        %v1992 = vld [vmem:[%s14 + $0x70] sm:$0xf]
        %v1993 = vld [vmem:[%s14 + $0x74] sm:$0xf]
        %v1994 = vld [vmem:[%s14 + $0x78] sm:$0xf]
        %v1995 = vld [vmem:[%s14 + $0x7c] sm:$0xf]
        %v1996 = vld [vmem:[%s15] sm:$0x1]
        %v1998 = vperm.slane %v1996, 0
        %v2032 = vunpack.c.l.b16 %v1964
        %v2033 = vunpack.c.l.b16 %v1965
        %v2034 = vunpack.c.l.b16 %v1966
        %v2035 = vunpack.c.l.b16 %v1967
        %v2036 = vunpack.c.l.b16 %v1968
        %v2037 = vunpack.c.l.b16 %v1969
        %v2038 = vunpack.c.l.b16 %v1970
        %v2039 = vunpack.c.l.b16 %v1971
        %v2040 = vunpack.c.l.b16 %v1972
        %v2041 = vunpack.c.l.b16 %v1973
        %v2042 = vunpack.c.l.b16 %v1974
        %v2043 = vunpack.c.l.b16 %v1975
        %v2044 = vunpack.c.l.b16 %v1976
        %v2045 = vunpack.c.l.b16 %v1977
        %v2046 = vunpack.c.l.b16 %v1978
        %v2047 = vunpack.c.l.b16 %v1979
        %v2048 = vunpack.c.l.b16 %v1980
        %v2049 = vunpack.c.l.b16 %v1981
        %v2050 = vunpack.c.l.b16 %v1982
        %v2051 = vunpack.c.l.b16 %v1983
        %v2052 = vunpack.c.l.b16 %v1984
        %v2053 = vunpack.c.l.b16 %v1985
        %v2054 = vunpack.c.l.b16 %v1986
        %v2055 = vunpack.c.l.b16 %v1987
        %v2056 = vunpack.c.l.b16 %v1988
        %v2057 = vunpack.c.l.b16 %v1989
        %v2058 = vunpack.c.l.b16 %v1990
        %v2059 = vunpack.c.l.b16 %v1991
        %v2060 = vunpack.c.l.b16 %v1992
        %v2061 = vunpack.c.l.b16 %v1993
        %v2062 = vunpack.c.l.b16 %v1994
        %v2063 = vunpack.c.l.b16 %v1995
        %v2064 = vpack.c.b16 %v2033, %v2032
        %v2065 = vpack.c.b16 %v2035, %v2034
        %v2066 = vpack.c.b16 %v2037, %v2036
        %v2067 = vpack.c.b16 %v2039, %v2038
        %v2068 = vpack.c.b16 %v2041, %v2040
        %v2069 = vpack.c.b16 %v2043, %v2042
        %v2070 = vpack.c.b16 %v2045, %v2044
        %v2071 = vpack.c.b16 %v2047, %v2046
        %v2072 = vpack.c.b16 %v2049, %v2048
        %v2073 = vpack.c.b16 %v2051, %v2050
        %v2074 = vpack.c.b16 %v2053, %v2052
        %v2075 = vpack.c.b16 %v2055, %v2054
        %v2076 = vpack.c.b16 %v2057, %v2056
        %v2077 = vpack.c.b16 %v2059, %v2058
        %v2078 = vpack.c.b16 %v2061, %v2060
        %v2079 = vpack.c.b16 %v2063, %v2062
        %2096 = vmatpush.bf16.msra.mxu0 %v2071
        %2097 = vmatpush.bf16.msra.mxu0 %v2070
        %2098 = vmatpush.bf16.msra.mxu0 %v2069
        %2099 = vmatpush.bf16.msra.mxu0 %v2068
        %2100 = vmatpush.bf16.msra.mxu0 %v2067
        %2101 = vmatpush.bf16.msra.mxu0 %v2066
        %2102 = vmatpush.bf16.msra.mxu0 %v2065
        %2103 = vmatpush.bf16.msra.mxu0 %v2064
        %2104 = vmatmul.bf16.gmra.mxu0 %v1960
        %v2105 = vpop.f32.mrf.mxu0
        %v2106 = vadd.f32 %v1998, %v2105
        %v2107 = vpop.f32.mrf.mxu0
        %v2108 = vadd.f32 %v1998, %v2107
        %2109 = vmatmul.bf16.gmra.mxu0 %v1962
        %v2110 = vpop.f32.mrf.mxu0
        %v2111 = vadd.f32 %v1998, %v2110
        %v2112 = vpop.f32.mrf.mxu0
        %v2113 = vadd.f32 %v1998, %v2112
        %2114 = vdwg.mxu0
        %2115 = vmatpush.bf16.msra.mxu0 %v2079
        %2116 = vmatpush.bf16.msra.mxu0 %v2078
        %2117 = vmatpush.bf16.msra.mxu0 %v2077
        %2118 = vmatpush.bf16.msra.mxu0 %v2076
        %2119 = vmatpush.bf16.msra.mxu0 %v2075
        %2120 = vmatpush.bf16.msra.mxu0 %v2074
        %2121 = vmatpush.bf16.msra.mxu0 %v2073
        %2122 = vmatpush.bf16.msra.mxu0 %v2072
        %2123 = vmatmul.bf16.gmra.mxu0 %v1961
        %v2124 = vpop.f32.mrf.mxu0
        %v2125 = vadd.f32 %v2106, %v2124
        %v2126 = vpop.f32.mrf.mxu0
        %v2127 = vadd.f32 %v2108, %v2126
        %2128 = vmatmul.bf16.gmra.mxu0 %v1963
        %v2129 = vpop.f32.mrf.mxu0
        %v2130 = vadd.f32 %v2111, %v2129
        %v2131 = vpop.f32.mrf.mxu0
        %v2132 = vadd.f32 %v2113, %v2131
        %2133 = vdwg.mxu0
        %v2134 = vadd.f32 %v1742, %v2125
        %v2135 = vadd.f32 %v1743, %v2127
        %v2136 = vadd.f32 %v1744, %v2130
        %v2137 = vadd.f32 %v1745, %v2132
        %v2138 = vld [vmem:[%s16] sm:$0x1]
        %v2139 = vld [vmem:[%s17] sm:$0x1]
        %2140 = vadd.xlane.f32.xlu0 %v2134
        %v2141 = vpop.xlane.xlu0 %2140
        %2142 = vadd.xlane.f32.xlu0 %v2135
        %v2143 = vpop.xlane.xlu0 %2142
        %2144 = vadd.xlane.f32.xlu0 %v2136
        %v2145 = vpop.xlane.xlu0 %2144
        %2146 = vadd.xlane.f32.xlu0 %v2137
        %v2147 = vpop.xlane.xlu0 %2146
        %v2148 = vmul.f32 %v2141, %v1659
        %v2149 = vmul.f32 %v2143, %v1659
        %v2150 = vmul.f32 %v2145, %v1659
        %v2151 = vmul.f32 %v2147, %v1659
        %v2152 = vsub.f32 %v2134, %v2148
        %v2153 = vsub.f32 %v2135, %v2149
        %v2154 = vsub.f32 %v2136, %v2150
        %v2155 = vsub.f32 %v2137, %v2151
        %v2156 = vmul.f32 %v2152, %v2152
        %v2157 = vmul.f32 %v2153, %v2153
        %v2158 = vmul.f32 %v2154, %v2154
        %v2159 = vmul.f32 %v2155, %v2155
        %2160 = vadd.xlane.f32.xlu0 %v2156
        %v2161 = vpop.xlane.xlu0 %2160
        %2162 = vadd.xlane.f32.xlu0 %v2157
        %v2163 = vpop.xlane.xlu0 %2162
        %2164 = vadd.xlane.f32.xlu0 %v2158
        %v2165 = vpop.xlane.xlu0 %2164
        %2166 = vadd.xlane.f32.xlu0 %v2159
        %v2167 = vpop.xlane.xlu0 %2166
        %v2168 = vmul.f32 %v2161, %v1659
        %v2169 = vmul.f32 %v2163, %v1659
        %v2170 = vmul.f32 %v2165, %v1659
        %v2171 = vmul.f32 %v2167, %v1659
        %v2172 = vadd.f32 %v2168, 1e-05
        %v2173 = vadd.f32 %v2169, 1e-05
        %v2174 = vadd.f32 %v2170, 1e-05
        %v2175 = vadd.f32 %v2171, 1e-05
        %v2176 = vrsqrt.pop %v2172
        %v2177 = vmul.f32 %v2176, %v2172
        %v2178 = vmul.f32 %v2177, %v2176
        %v2179 = vmul.f32 0.5, %v2178
        %v2180 = vsub.f32 1.5, %v2179
        %v2181 = vmul.f32 %v2176, %v2180
        %vm2182 = vweird.f32 %v2172
        %vm2183 = vweird.f32 %v2176
        %vm2184 = vmor %vm2182, %vm2183
        %v2185 = vsel %vm2184, %v2176, %v2181
        %v2186 = vrsqrt.pop %v2173
        %v2187 = vmul.f32 %v2186, %v2173
        %v2188 = vmul.f32 %v2187, %v2186
        %v2189 = vmul.f32 0.5, %v2188
        %v2190 = vsub.f32 1.5, %v2189
        %v2191 = vmul.f32 %v2186, %v2190
        %vm2192 = vweird.f32 %v2173
        %vm2193 = vweird.f32 %v2186
        %vm2194 = vmor %vm2192, %vm2193
        %v2195 = vsel %vm2194, %v2186, %v2191
        %v2196 = vrsqrt.pop %v2174
        %v2197 = vmul.f32 %v2196, %v2174
        %v2198 = vmul.f32 %v2197, %v2196
        %v2199 = vmul.f32 0.5, %v2198
        %v2200 = vsub.f32 1.5, %v2199
        %v2201 = vmul.f32 %v2196, %v2200
        %vm2202 = vweird.f32 %v2174
        %vm2203 = vweird.f32 %v2196
        %vm2204 = vmor %vm2202, %vm2203
        %v2205 = vsel %vm2204, %v2196, %v2201
        %v2206 = vrsqrt.pop %v2175
        %v2207 = vmul.f32 %v2206, %v2175
        %v2208 = vmul.f32 %v2207, %v2206
        %v2209 = vmul.f32 0.5, %v2208
        %v2210 = vsub.f32 1.5, %v2209
        %v2211 = vmul.f32 %v2206, %v2210
        %vm2212 = vweird.f32 %v2175
        %vm2213 = vweird.f32 %v2206
        %vm2214 = vmor %vm2212, %vm2213
        %v2215 = vsel %vm2214, %v2206, %v2211
        %v2216 = vmul.f32 %v2152, %v2185
        %v2217 = vmul.f32 %v2153, %v2195
        %v2218 = vmul.f32 %v2154, %v2205
        %v2219 = vmul.f32 %v2155, %v2215
        %v2221 = vperm.slane %v2138, 0
        %v2223 = vmul.f32 %v2216, %v2221
        %v2224 = vmul.f32 %v2217, %v2221
        %v2225 = vmul.f32 %v2218, %v2221
        %v2226 = vmul.f32 %v2219, %v2221
        %v2228 = vperm.slane %v2139, 0
        %v2230 = vadd.f32 %v2223, %v2228
        %v2231 = vadd.f32 %v2224, %v2228
        %v2232 = vadd.f32 %v2225, %v2228
        %v2233 = vadd.f32 %v2226, %v2228
        %v2234 = vpack.c.bf16 %v2231, %v2230
        %v2235 = vpack.c.bf16 %v2233, %v2232
        %s2236 = scalar_lea.vmem %s2, 128
        %v2237 = vld [vmem:[%s2236] sm:$0xf]
        %v2238 = vld [vmem:[%s2236 + $0x4] sm:$0xf]
        %v2239 = vld [vmem:[%s2236 + $0x8] sm:$0xf]
        %v2240 = vld [vmem:[%s2236 + $0xc] sm:$0xf]
        %v2241 = vld [vmem:[%s2236 + $0x10] sm:$0xf]
        %v2242 = vld [vmem:[%s2236 + $0x14] sm:$0xf]
        %v2243 = vld [vmem:[%s2236 + $0x18] sm:$0xf]
        %v2244 = vld [vmem:[%s2236 + $0x1c] sm:$0xf]
        %v2245 = vld [vmem:[%s2236 + $0x20] sm:$0xf]
        %v2246 = vld [vmem:[%s2236 + $0x24] sm:$0xf]
        %v2247 = vld [vmem:[%s2236 + $0x28] sm:$0xf]
        %v2248 = vld [vmem:[%s2236 + $0x2c] sm:$0xf]
        %v2249 = vld [vmem:[%s2236 + $0x30] sm:$0xf]
        %v2250 = vld [vmem:[%s2236 + $0x34] sm:$0xf]
        %v2251 = vld [vmem:[%s2236 + $0x38] sm:$0xf]
        %v2252 = vld [vmem:[%s2236 + $0x3c] sm:$0xf]
        %s2253 = scalar_lea.vmem %s5, 2
        %v2254 = vld [vmem:[%s2253] sm:$0x1]
        %v2256 = vperm.slane %v2254, 0
        %v2274 = vunpack.c.l.b16 %v2237
        %v2275 = vunpack.c.l.b16 %v2238
        %v2276 = vunpack.c.l.b16 %v2239
        %v2277 = vunpack.c.l.b16 %v2240
        %v2278 = vunpack.c.l.b16 %v2241
        %v2279 = vunpack.c.l.b16 %v2242
        %v2280 = vunpack.c.l.b16 %v2243
        %v2281 = vunpack.c.l.b16 %v2244
        %v2282 = vunpack.c.l.b16 %v2245
        %v2283 = vunpack.c.l.b16 %v2246
        %v2284 = vunpack.c.l.b16 %v2247
        %v2285 = vunpack.c.l.b16 %v2248
        %v2286 = vunpack.c.l.b16 %v2249
        %v2287 = vunpack.c.l.b16 %v2250
        %v2288 = vunpack.c.l.b16 %v2251
        %v2289 = vunpack.c.l.b16 %v2252
        %v2290 = vpack.c.b16 %v2275, %v2274
        %v2291 = vpack.c.b16 %v2277, %v2276
        %v2292 = vpack.c.b16 %v2279, %v2278
        %v2293 = vpack.c.b16 %v2281, %v2280
        %v2294 = vpack.c.b16 %v2283, %v2282
        %v2295 = vpack.c.b16 %v2285, %v2284
        %v2296 = vpack.c.b16 %v2287, %v2286
        %v2297 = vpack.c.b16 %v2289, %v2288
        %2306 = vmatpush.bf16.msra.mxu0 %v2297
        %2307 = vmatpush.bf16.msra.mxu0 %v2296
        %2308 = vmatpush.bf16.msra.mxu0 %v2295
        %2309 = vmatpush.bf16.msra.mxu0 %v2294
        %2310 = vmatpush.bf16.msra.mxu0 %v2293
        %2311 = vmatpush.bf16.msra.mxu0 %v2292
        %2312 = vmatpush.bf16.msra.mxu0 %v2291
        %2313 = vmatpush.bf16.msra.mxu0 %v2290
        %2314 = vmatmul.bf16.gmra.mxu0 %v2234
        %v2315 = vpop.f32.mrf.mxu0
        %v2316 = vadd.f32 %v2256, %v2315
        %v2317 = vpop.f32.mrf.mxu0
        %v2318 = vadd.f32 %v2256, %v2317
        %2319 = vmatmul.bf16.gmra.mxu0 %v2235
        %v2320 = vpop.f32.mrf.mxu0
        %v2321 = vadd.f32 %v2256, %v2320
        %v2322 = vpop.f32.mrf.mxu0
        %v2323 = vadd.f32 %v2256, %v2322
        %2324 = vdwg.mxu0
        %s2325 = scalar_lea.vmem %s3, 128
        %v2326 = vld [vmem:[%s2325] sm:$0xf]
        %v2327 = vld [vmem:[%s2325 + $0x4] sm:$0xf]
        %v2328 = vld [vmem:[%s2325 + $0x8] sm:$0xf]
        %v2329 = vld [vmem:[%s2325 + $0xc] sm:$0xf]
        %v2330 = vld [vmem:[%s2325 + $0x10] sm:$0xf]
        %v2331 = vld [vmem:[%s2325 + $0x14] sm:$0xf]
        %v2332 = vld [vmem:[%s2325 + $0x18] sm:$0xf]
        %v2333 = vld [vmem:[%s2325 + $0x1c] sm:$0xf]
        %v2334 = vld [vmem:[%s2325 + $0x20] sm:$0xf]
        %v2335 = vld [vmem:[%s2325 + $0x24] sm:$0xf]
        %v2336 = vld [vmem:[%s2325 + $0x28] sm:$0xf]
        %v2337 = vld [vmem:[%s2325 + $0x2c] sm:$0xf]
        %v2338 = vld [vmem:[%s2325 + $0x30] sm:$0xf]
        %v2339 = vld [vmem:[%s2325 + $0x34] sm:$0xf]
        %v2340 = vld [vmem:[%s2325 + $0x38] sm:$0xf]
        %v2341 = vld [vmem:[%s2325 + $0x3c] sm:$0xf]
        %s2342 = scalar_lea.vmem %s6, 2
        %v2343 = vld [vmem:[%s2342] sm:$0x1]
        %v2345 = vperm.slane %v2343, 0
        %v2363 = vunpack.c.l.b16 %v2326
        %v2364 = vunpack.c.l.b16 %v2327
        %v2365 = vunpack.c.l.b16 %v2328
        %v2366 = vunpack.c.l.b16 %v2329
        %v2367 = vunpack.c.l.b16 %v2330
        %v2368 = vunpack.c.l.b16 %v2331
        %v2369 = vunpack.c.l.b16 %v2332
        %v2370 = vunpack.c.l.b16 %v2333
        %v2371 = vunpack.c.l.b16 %v2334
        %v2372 = vunpack.c.l.b16 %v2335
        %v2373 = vunpack.c.l.b16 %v2336
        %v2374 = vunpack.c.l.b16 %v2337
        %v2375 = vunpack.c.l.b16 %v2338
        %v2376 = vunpack.c.l.b16 %v2339
        %v2377 = vunpack.c.l.b16 %v2340
        %v2378 = vunpack.c.l.b16 %v2341
        %v2379 = vpack.c.b16 %v2364, %v2363
        %v2380 = vpack.c.b16 %v2366, %v2365
        %v2381 = vpack.c.b16 %v2368, %v2367
        %v2382 = vpack.c.b16 %v2370, %v2369
        %v2383 = vpack.c.b16 %v2372, %v2371
        %v2384 = vpack.c.b16 %v2374, %v2373
        %v2385 = vpack.c.b16 %v2376, %v2375
        %v2386 = vpack.c.b16 %v2378, %v2377
        %2395 = vmatpush.bf16.msra.mxu0 %v2386
        %2396 = vmatpush.bf16.msra.mxu0 %v2385
        %2397 = vmatpush.bf16.msra.mxu0 %v2384
        %2398 = vmatpush.bf16.msra.mxu0 %v2383
        %2399 = vmatpush.bf16.msra.mxu0 %v2382
        %2400 = vmatpush.bf16.msra.mxu0 %v2381
        %2401 = vmatpush.bf16.msra.mxu0 %v2380
        %2402 = vmatpush.bf16.msra.mxu0 %v2379
        %2403 = vmatmul.bf16.gmra.mxu0 %v2234
        %v2404 = vpop.f32.mrf.mxu0
        %v2405 = vadd.f32 %v2345, %v2404
        %v2406 = vpop.f32.mrf.mxu0
        %v2407 = vadd.f32 %v2345, %v2406
        %2408 = vmatmul.bf16.gmra.mxu0 %v2235
        %v2409 = vpop.f32.mrf.mxu0
        %v2410 = vadd.f32 %v2345, %v2409
        %v2411 = vpop.f32.mrf.mxu0
        %v2412 = vadd.f32 %v2345, %v2411
        %2413 = vdwg.mxu0
        %s2414 = scalar_lea.vmem %s4, 128
        %v2415 = vld [vmem:[%s2414] sm:$0xf]
        %v2416 = vld [vmem:[%s2414 + $0x4] sm:$0xf]
        %v2417 = vld [vmem:[%s2414 + $0x8] sm:$0xf]
        %v2418 = vld [vmem:[%s2414 + $0xc] sm:$0xf]
        %v2419 = vld [vmem:[%s2414 + $0x10] sm:$0xf]
        %v2420 = vld [vmem:[%s2414 + $0x14] sm:$0xf]
        %v2421 = vld [vmem:[%s2414 + $0x18] sm:$0xf]
        %v2422 = vld [vmem:[%s2414 + $0x1c] sm:$0xf]
        %v2423 = vld [vmem:[%s2414 + $0x20] sm:$0xf]
        %v2424 = vld [vmem:[%s2414 + $0x24] sm:$0xf]
        %v2425 = vld [vmem:[%s2414 + $0x28] sm:$0xf]
        %v2426 = vld [vmem:[%s2414 + $0x2c] sm:$0xf]
        %v2427 = vld [vmem:[%s2414 + $0x30] sm:$0xf]
        %v2428 = vld [vmem:[%s2414 + $0x34] sm:$0xf]
        %v2429 = vld [vmem:[%s2414 + $0x38] sm:$0xf]
        %v2430 = vld [vmem:[%s2414 + $0x3c] sm:$0xf]
        %s2431 = scalar_lea.vmem %s7, 2
        %v2432 = vld [vmem:[%s2431] sm:$0x1]
        %v2434 = vperm.slane %v2432, 0
        %v2452 = vunpack.c.l.b16 %v2415
        %v2453 = vunpack.c.l.b16 %v2416
        %v2454 = vunpack.c.l.b16 %v2417
        %v2455 = vunpack.c.l.b16 %v2418
        %v2456 = vunpack.c.l.b16 %v2419
        %v2457 = vunpack.c.l.b16 %v2420
        %v2458 = vunpack.c.l.b16 %v2421
        %v2459 = vunpack.c.l.b16 %v2422
        %v2460 = vunpack.c.l.b16 %v2423
        %v2461 = vunpack.c.l.b16 %v2424
        %v2462 = vunpack.c.l.b16 %v2425
        %v2463 = vunpack.c.l.b16 %v2426
        %v2464 = vunpack.c.l.b16 %v2427
        %v2465 = vunpack.c.l.b16 %v2428
        %v2466 = vunpack.c.l.b16 %v2429
        %v2467 = vunpack.c.l.b16 %v2430
        %v2468 = vpack.c.b16 %v2453, %v2452
        %v2469 = vpack.c.b16 %v2455, %v2454
        %v2470 = vpack.c.b16 %v2457, %v2456
        %v2471 = vpack.c.b16 %v2459, %v2458
        %v2472 = vpack.c.b16 %v2461, %v2460
        %v2473 = vpack.c.b16 %v2463, %v2462
        %v2474 = vpack.c.b16 %v2465, %v2464
        %v2475 = vpack.c.b16 %v2467, %v2466
        %2484 = vmatpush.bf16.msra.mxu0 %v2475
        %2485 = vmatpush.bf16.msra.mxu0 %v2474
        %2486 = vmatpush.bf16.msra.mxu0 %v2473
        %2487 = vmatpush.bf16.msra.mxu0 %v2472
        %2488 = vmatpush.bf16.msra.mxu0 %v2471
        %2489 = vmatpush.bf16.msra.mxu0 %v2470
        %2490 = vmatpush.bf16.msra.mxu0 %v2469
        %2491 = vmatpush.bf16.msra.mxu0 %v2468
        %2492 = vmatmul.bf16.gmra.mxu0 %v2234
        %v2493 = vpop.f32.mrf.mxu0
        %v2494 = vadd.f32 %v2434, %v2493
        %v2495 = vpop.f32.mrf.mxu0
        %v2496 = vadd.f32 %v2434, %v2495
        %2497 = vmatmul.bf16.gmra.mxu0 %v2235
        %v2498 = vpop.f32.mrf.mxu0
        %v2499 = vadd.f32 %v2434, %v2498
        %v2500 = vpop.f32.mrf.mxu0
        %v2501 = vadd.f32 %v2434, %v2500
        %2502 = vdwg.mxu0
        %v2503 = vpack.c.bf16 %v2316, %v2316
        %v2504 = vpack.c.bf16 %v2318, %v2318
        %v2505 = vpack.c.bf16 %v2321, %v2321
        %v2506 = vpack.c.bf16 %v2323, %v2323
        %v2507 = vpack.c.bf16 %v2405, %v2405
        %v2508 = vpack.c.bf16 %v2407, %v2407
        %v2509 = vpack.c.bf16 %v2410, %v2410
        %v2510 = vpack.c.bf16 %v2412, %v2412
        %v2511 = vpack.c.bf16 %v2494, %v2494
        %v2512 = vpack.c.bf16 %v2496, %v2496
        %v2513 = vpack.c.bf16 %v2499, %v2499
        %v2514 = vpack.c.bf16 %v2501, %v2501
        %v2517 = vunpack.c.l.b16 %v2503
        %v2518 = vunpack.c.l.b16 %v2504
        %v2519 = vpack.c.b16 %v2518, %v2517
        %v2522 = vunpack.c.l.b16 %v2507
        %v2523 = vunpack.c.l.b16 %v2508
        %v2524 = vpack.c.b16 %v2523, %v2522
        %v2526 = vsel %vm897, %v2519, 0
        %v2529 = vsel %vm897, %v2524, 0
        %2531 = vmatpush.bf16.xpose.msra.mxu0 0
        %2532 = vmatpush.bf16.xpose.msra.mxu0 0
        %2533 = vmatpush.bf16.xpose.msra.mxu0 0
        %2534 = vmatpush.bf16.xpose.msra.mxu0 0
        %2535 = vmatpush.bf16.xpose.msra.mxu0 0
        %2536 = vmatpush.bf16.xpose.msra.mxu0 0
        %2537 = vmatpush.bf16.xpose.msra.mxu0 0
        %2538 = vmatpush.bf16.xpose.msra.mxu0 %v2529
        %2539 = vmatmul.bf16.gmra.mxu0 %v2526
        %v2540 = vpop.f32.mrf.mxu0
        %v2541 = vadd.f32 0.0, %v2540
        %v2542 = vpop.f32.mrf.mxu0
        %v2543 = vadd.f32 0.0, %v2542
        %2544 = vdwg.mxu0
        %v2547 = vunpack.c.l.b16 %v2505
        %v2548 = vunpack.c.l.b16 %v2506
        %v2549 = vpack.c.b16 %v2548, %v2547
        %v2552 = vunpack.c.l.b16 %v2509
        %v2553 = vunpack.c.l.b16 %v2510
        %v2554 = vpack.c.b16 %v2553, %v2552
        %v2556 = vsel %vm897, %v2549, 0
        %v2559 = vsel %vm897, %v2554, 0
        %2561 = vmatpush.bf16.xpose.msra.mxu0 0
        %2562 = vmatpush.bf16.xpose.msra.mxu0 0
        %2563 = vmatpush.bf16.xpose.msra.mxu0 0
        %2564 = vmatpush.bf16.xpose.msra.mxu0 0
        %2565 = vmatpush.bf16.xpose.msra.mxu0 0
        %2566 = vmatpush.bf16.xpose.msra.mxu0 0
        %2567 = vmatpush.bf16.xpose.msra.mxu0 0
        %2568 = vmatpush.bf16.xpose.msra.mxu0 %v2559
        %2569 = vmatmul.bf16.gmra.mxu0 %v2556
        %v2570 = vpop.f32.mrf.mxu0
        %v2571 = vadd.f32 0.0, %v2570
        %v2572 = vpop.f32.mrf.mxu0
        %v2573 = vadd.f32 0.0, %v2572
        %2574 = vdwg.mxu0
        %v2575 = vmul.f32 %v2541, 0.125
        %v2576 = vmul.f32 %v2543, 0.125
        %v2577 = vmul.f32 %v2571, 0.125
        %v2578 = vmul.f32 %v2573, 0.125
        %v2579 = vadd.f32 %v2575, %v608
        %v2580 = vadd.f32 %v2576, %v608
        %v2581 = vadd.f32 %v2577, %v609
        %v2582 = vadd.f32 %v2578, %v609
        %v2583 = vsel %vm956, %v2579, -inf
        %2584 = vmax.xlane.f32.xlu0 %v2583
        %v2585 = vpop.xlane.xlu0 %2584
        %v2586 = vsel %vm956, %v2580, -inf
        %2587 = vmax.xlane.f32.xlu0 %v2586
        %v2588 = vpop.xlane.xlu0 %2587
        %v2589 = vsel %vm956, %v2581, -inf
        %2590 = vmax.xlane.f32.xlu0 %v2589
        %v2591 = vpop.xlane.xlu0 %2590
        %v2592 = vsel %vm956, %v2582, -inf
        %2593 = vmax.xlane.f32.xlu0 %v2592
        %v2594 = vpop.xlane.xlu0 %2593
        %v2595 = vsub.f32 %v2579, %v2585
        %v2596 = vsub.f32 %v2580, %v2588
        %v2597 = vsub.f32 %v2581, %v2591
        %v2598 = vsub.f32 %v2582, %v2594
        %v2599 = vmul.f32 %v2595, 1.442695
        %v2600 = vpow.pop %v2599
        %v2601 = vmul.f32 %v2596, 1.442695
        %v2602 = vpow.pop %v2601
        %v2603 = vmul.f32 %v2597, 1.442695
        %v2604 = vpow.pop %v2603
        %v2605 = vmul.f32 %v2598, 1.442695
        %v2606 = vpow.pop %v2605
        %v2607 = vsel %vm956, %v2600, 0.0
        %2608 = vadd.xlane.f32.xlu0 %v2607
        %v2609 = vpop.xlane.xlu0 %2608
        %v2610 = vsel %vm956, %v2602, 0.0
        %2611 = vadd.xlane.f32.xlu0 %v2610
        %v2612 = vpop.xlane.xlu0 %2611
        %v2613 = vsel %vm956, %v2604, 0.0
        %2614 = vadd.xlane.f32.xlu0 %v2613
        %v2615 = vpop.xlane.xlu0 %2614
        %v2616 = vsel %vm956, %v2606, 0.0
        %2617 = vadd.xlane.f32.xlu0 %v2616
        %v2618 = vpop.xlane.xlu0 %2617
        %v2619 = vrcp.pop %v2609
        %v2620 = vrcp.pop %v2612
        %v2621 = vrcp.pop %v2615
        %v2622 = vrcp.pop %v2618
        %v2623 = vmul.f32 %v2600, %v2619
        %v2624 = vmul.f32 %v2602, %v2620
        %v2625 = vmul.f32 %v2604, %v2621
        %v2626 = vmul.f32 %v2606, %v2622
        %v2627 = vpack.c.bf16 %v2623, %v2623
        %v2628 = vpack.c.bf16 %v2624, %v2624
        %v2629 = vpack.c.bf16 %v2625, %v2625
        %v2630 = vpack.c.bf16 %v2626, %v2626
        %v2633 = vunpack.c.l.b16 %v2627
        %v2634 = vunpack.c.l.b16 %v2628
        %v2635 = vpack.c.b16 %v2634, %v2633
        %v2638 = vunpack.c.l.b16 %v2511
        %v2639 = vunpack.c.l.b16 %v2512
        %v2640 = vpack.c.b16 %v2639, %v2638
        %v2643 = vsel %vm956, %v2635, 0
        %2645 = vmatpush.bf16.msra.mxu0 0
        %2646 = vmatpush.bf16.msra.mxu0 0
        %2647 = vmatpush.bf16.msra.mxu0 0
        %2648 = vmatpush.bf16.msra.mxu0 0
        %2649 = vmatpush.bf16.msra.mxu0 0
        %2650 = vmatpush.bf16.msra.mxu0 0
        %2651 = vmatpush.bf16.msra.mxu0 0
        %2652 = vmatpush.bf16.msra.mxu0 %v2640
        %2653 = vmatmul.bf16.gmra.mxu0 %v2643
        %v2654 = vpop.f32.mrf.mxu0
        %v2655 = vadd.f32 0.0, %v2654
        %v2656 = vpop.f32.mrf.mxu0
        %v2657 = vadd.f32 0.0, %v2656
        %2658 = vdwg.mxu0
        %v2661 = vunpack.c.l.b16 %v2629
        %v2662 = vunpack.c.l.b16 %v2630
        %v2663 = vpack.c.b16 %v2662, %v2661
        %v2666 = vunpack.c.l.b16 %v2513
        %v2667 = vunpack.c.l.b16 %v2514
        %v2668 = vpack.c.b16 %v2667, %v2666
        %v2671 = vsel %vm956, %v2663, 0
        %2673 = vmatpush.bf16.msra.mxu0 0
        %2674 = vmatpush.bf16.msra.mxu0 0
        %2675 = vmatpush.bf16.msra.mxu0 0
        %2676 = vmatpush.bf16.msra.mxu0 0
        %2677 = vmatpush.bf16.msra.mxu0 0
        %2678 = vmatpush.bf16.msra.mxu0 0
        %2679 = vmatpush.bf16.msra.mxu0 0
        %2680 = vmatpush.bf16.msra.mxu0 %v2668
        %2681 = vmatmul.bf16.gmra.mxu0 %v2671
        %v2682 = vpop.f32.mrf.mxu0
        %v2683 = vadd.f32 0.0, %v2682
        %v2684 = vpop.f32.mrf.mxu0
        %v2685 = vadd.f32 0.0, %v2684
        %2686 = vdwg.mxu0
        %v2687 = vpack.c.bf16 %v2657, %v2655
        %v2688 = vpack.c.bf16 %v2685, %v2683
        %s2689 = scalar_lea.vmem %s8, 64
        %v2690 = vld [vmem:[%s2689] sm:$0xf]
        %v2691 = vld [vmem:[%s2689 + $0x4] sm:$0xf]
        %v2692 = vld [vmem:[%s2689 + $0x8] sm:$0xf]
        %v2693 = vld [vmem:[%s2689 + $0xc] sm:$0xf]
        %v2694 = vld [vmem:[%s2689 + $0x10] sm:$0xf]
        %v2695 = vld [vmem:[%s2689 + $0x14] sm:$0xf]
        %v2696 = vld [vmem:[%s2689 + $0x18] sm:$0xf]
        %v2697 = vld [vmem:[%s2689 + $0x1c] sm:$0xf]
        %s2698 = scalar_lea.vmem %s2, 192
        %v2699 = vld [vmem:[%s2698] sm:$0xf]
        %v2700 = vld [vmem:[%s2698 + $0x4] sm:$0xf]
        %v2701 = vld [vmem:[%s2698 + $0x8] sm:$0xf]
        %v2702 = vld [vmem:[%s2698 + $0xc] sm:$0xf]
        %v2703 = vld [vmem:[%s2698 + $0x10] sm:$0xf]
        %v2704 = vld [vmem:[%s2698 + $0x14] sm:$0xf]
        %v2705 = vld [vmem:[%s2698 + $0x18] sm:$0xf]
        %v2706 = vld [vmem:[%s2698 + $0x1c] sm:$0xf]
        %v2707 = vld [vmem:[%s2698 + $0x20] sm:$0xf]
        %v2708 = vld [vmem:[%s2698 + $0x24] sm:$0xf]
        %v2709 = vld [vmem:[%s2698 + $0x28] sm:$0xf]
        %v2710 = vld [vmem:[%s2698 + $0x2c] sm:$0xf]
        %v2711 = vld [vmem:[%s2698 + $0x30] sm:$0xf]
        %v2712 = vld [vmem:[%s2698 + $0x34] sm:$0xf]
        %v2713 = vld [vmem:[%s2698 + $0x38] sm:$0xf]
        %v2714 = vld [vmem:[%s2698 + $0x3c] sm:$0xf]
        %s2715 = scalar_lea.vmem %s5, 3
        %v2716 = vld [vmem:[%s2715] sm:$0x1]
        %v2718 = vperm.slane %v2716, 0
        %v2736 = vunpack.c.l.b16 %v2699
        %v2737 = vunpack.c.l.b16 %v2700
        %v2738 = vunpack.c.l.b16 %v2701
        %v2739 = vunpack.c.l.b16 %v2702
        %v2740 = vunpack.c.l.b16 %v2703
        %v2741 = vunpack.c.l.b16 %v2704
        %v2742 = vunpack.c.l.b16 %v2705
        %v2743 = vunpack.c.l.b16 %v2706
        %v2744 = vunpack.c.l.b16 %v2707
        %v2745 = vunpack.c.l.b16 %v2708
        %v2746 = vunpack.c.l.b16 %v2709
        %v2747 = vunpack.c.l.b16 %v2710
        %v2748 = vunpack.c.l.b16 %v2711
        %v2749 = vunpack.c.l.b16 %v2712
        %v2750 = vunpack.c.l.b16 %v2713
        %v2751 = vunpack.c.l.b16 %v2714
        %v2752 = vpack.c.b16 %v2737, %v2736
        %v2753 = vpack.c.b16 %v2739, %v2738
        %v2754 = vpack.c.b16 %v2741, %v2740
        %v2755 = vpack.c.b16 %v2743, %v2742
        %v2756 = vpack.c.b16 %v2745, %v2744
        %v2757 = vpack.c.b16 %v2747, %v2746
        %v2758 = vpack.c.b16 %v2749, %v2748
        %v2759 = vpack.c.b16 %v2751, %v2750
        %2768 = vmatpush.bf16.msra.mxu0 %v2759
        %2769 = vmatpush.bf16.msra.mxu0 %v2758
        %2770 = vmatpush.bf16.msra.mxu0 %v2757
        %2771 = vmatpush.bf16.msra.mxu0 %v2756
        %2772 = vmatpush.bf16.msra.mxu0 %v2755
        %2773 = vmatpush.bf16.msra.mxu0 %v2754
        %2774 = vmatpush.bf16.msra.mxu0 %v2753
        %2775 = vmatpush.bf16.msra.mxu0 %v2752
        %2776 = vmatmul.bf16.gmra.mxu0 %v2234
        %v2777 = vpop.f32.mrf.mxu0
        %v2778 = vadd.f32 %v2718, %v2777
        %v2779 = vpop.f32.mrf.mxu0
        %v2780 = vadd.f32 %v2718, %v2779
        %2781 = vmatmul.bf16.gmra.mxu0 %v2235
        %v2782 = vpop.f32.mrf.mxu0
        %v2783 = vadd.f32 %v2718, %v2782
        %v2784 = vpop.f32.mrf.mxu0
        %v2785 = vadd.f32 %v2718, %v2784
        %2786 = vdwg.mxu0
        %s2787 = scalar_lea.vmem %s3, 192
        %v2788 = vld [vmem:[%s2787] sm:$0xf]
        %v2789 = vld [vmem:[%s2787 + $0x4] sm:$0xf]
        %v2790 = vld [vmem:[%s2787 + $0x8] sm:$0xf]
        %v2791 = vld [vmem:[%s2787 + $0xc] sm:$0xf]
        %v2792 = vld [vmem:[%s2787 + $0x10] sm:$0xf]
        %v2793 = vld [vmem:[%s2787 + $0x14] sm:$0xf]
        %v2794 = vld [vmem:[%s2787 + $0x18] sm:$0xf]
        %v2795 = vld [vmem:[%s2787 + $0x1c] sm:$0xf]
        %v2796 = vld [vmem:[%s2787 + $0x20] sm:$0xf]
        %v2797 = vld [vmem:[%s2787 + $0x24] sm:$0xf]
        %v2798 = vld [vmem:[%s2787 + $0x28] sm:$0xf]
        %v2799 = vld [vmem:[%s2787 + $0x2c] sm:$0xf]
        %v2800 = vld [vmem:[%s2787 + $0x30] sm:$0xf]
        %v2801 = vld [vmem:[%s2787 + $0x34] sm:$0xf]
        %v2802 = vld [vmem:[%s2787 + $0x38] sm:$0xf]
        %v2803 = vld [vmem:[%s2787 + $0x3c] sm:$0xf]
        %s2804 = scalar_lea.vmem %s6, 3
        %v2805 = vld [vmem:[%s2804] sm:$0x1]
        %v2807 = vperm.slane %v2805, 0
        %v2825 = vunpack.c.l.b16 %v2788
        %v2826 = vunpack.c.l.b16 %v2789
        %v2827 = vunpack.c.l.b16 %v2790
        %v2828 = vunpack.c.l.b16 %v2791
        %v2829 = vunpack.c.l.b16 %v2792
        %v2830 = vunpack.c.l.b16 %v2793
        %v2831 = vunpack.c.l.b16 %v2794
        %v2832 = vunpack.c.l.b16 %v2795
        %v2833 = vunpack.c.l.b16 %v2796
        %v2834 = vunpack.c.l.b16 %v2797
        %v2835 = vunpack.c.l.b16 %v2798
        %v2836 = vunpack.c.l.b16 %v2799
        %v2837 = vunpack.c.l.b16 %v2800
        %v2838 = vunpack.c.l.b16 %v2801
        %v2839 = vunpack.c.l.b16 %v2802
        %v2840 = vunpack.c.l.b16 %v2803
        %v2841 = vpack.c.b16 %v2826, %v2825
        %v2842 = vpack.c.b16 %v2828, %v2827
        %v2843 = vpack.c.b16 %v2830, %v2829
        %v2844 = vpack.c.b16 %v2832, %v2831
        %v2845 = vpack.c.b16 %v2834, %v2833
        %v2846 = vpack.c.b16 %v2836, %v2835
        %v2847 = vpack.c.b16 %v2838, %v2837
        %v2848 = vpack.c.b16 %v2840, %v2839
        %2857 = vmatpush.bf16.msra.mxu0 %v2848
        %2858 = vmatpush.bf16.msra.mxu0 %v2847
        %2859 = vmatpush.bf16.msra.mxu0 %v2846
        %2860 = vmatpush.bf16.msra.mxu0 %v2845
        %2861 = vmatpush.bf16.msra.mxu0 %v2844
        %2862 = vmatpush.bf16.msra.mxu0 %v2843
        %2863 = vmatpush.bf16.msra.mxu0 %v2842
        %2864 = vmatpush.bf16.msra.mxu0 %v2841
        %2865 = vmatmul.bf16.gmra.mxu0 %v2234
        %v2866 = vpop.f32.mrf.mxu0
        %v2867 = vadd.f32 %v2807, %v2866
        %v2868 = vpop.f32.mrf.mxu0
        %v2869 = vadd.f32 %v2807, %v2868
        %2870 = vmatmul.bf16.gmra.mxu0 %v2235
        %v2871 = vpop.f32.mrf.mxu0
        %v2872 = vadd.f32 %v2807, %v2871
        %v2873 = vpop.f32.mrf.mxu0
        %v2874 = vadd.f32 %v2807, %v2873
        %2875 = vdwg.mxu0
        %s2876 = scalar_lea.vmem %s4, 192
        %v2877 = vld [vmem:[%s2876] sm:$0xf]
        %v2878 = vld [vmem:[%s2876 + $0x4] sm:$0xf]
        %v2879 = vld [vmem:[%s2876 + $0x8] sm:$0xf]
        %v2880 = vld [vmem:[%s2876 + $0xc] sm:$0xf]
        %v2881 = vld [vmem:[%s2876 + $0x10] sm:$0xf]
        %v2882 = vld [vmem:[%s2876 + $0x14] sm:$0xf]
        %v2883 = vld [vmem:[%s2876 + $0x18] sm:$0xf]
        %v2884 = vld [vmem:[%s2876 + $0x1c] sm:$0xf]
        %v2885 = vld [vmem:[%s2876 + $0x20] sm:$0xf]
        %v2886 = vld [vmem:[%s2876 + $0x24] sm:$0xf]
        %v2887 = vld [vmem:[%s2876 + $0x28] sm:$0xf]
        %v2888 = vld [vmem:[%s2876 + $0x2c] sm:$0xf]
        %v2889 = vld [vmem:[%s2876 + $0x30] sm:$0xf]
        %v2890 = vld [vmem:[%s2876 + $0x34] sm:$0xf]
        %v2891 = vld [vmem:[%s2876 + $0x38] sm:$0xf]
        %v2892 = vld [vmem:[%s2876 + $0x3c] sm:$0xf]
        %s2893 = scalar_lea.vmem %s7, 3
        %v2894 = vld [vmem:[%s2893] sm:$0x1]
        %v2896 = vperm.slane %v2894, 0
        %v2914 = vunpack.c.l.b16 %v2877
        %v2915 = vunpack.c.l.b16 %v2878
        %v2916 = vunpack.c.l.b16 %v2879
        %v2917 = vunpack.c.l.b16 %v2880
        %v2918 = vunpack.c.l.b16 %v2881
        %v2919 = vunpack.c.l.b16 %v2882
        %v2920 = vunpack.c.l.b16 %v2883
        %v2921 = vunpack.c.l.b16 %v2884
        %v2922 = vunpack.c.l.b16 %v2885
        %v2923 = vunpack.c.l.b16 %v2886
        %v2924 = vunpack.c.l.b16 %v2887
        %v2925 = vunpack.c.l.b16 %v2888
        %v2926 = vunpack.c.l.b16 %v2889
        %v2927 = vunpack.c.l.b16 %v2890
        %v2928 = vunpack.c.l.b16 %v2891
        %v2929 = vunpack.c.l.b16 %v2892
        %v2930 = vpack.c.b16 %v2915, %v2914
        %v2931 = vpack.c.b16 %v2917, %v2916
        %v2932 = vpack.c.b16 %v2919, %v2918
        %v2933 = vpack.c.b16 %v2921, %v2920
        %v2934 = vpack.c.b16 %v2923, %v2922
        %v2935 = vpack.c.b16 %v2925, %v2924
        %v2936 = vpack.c.b16 %v2927, %v2926
        %v2937 = vpack.c.b16 %v2929, %v2928
        %2946 = vmatpush.bf16.msra.mxu0 %v2937
        %2947 = vmatpush.bf16.msra.mxu0 %v2936
        %2948 = vmatpush.bf16.msra.mxu0 %v2935
        %2949 = vmatpush.bf16.msra.mxu0 %v2934
        %2950 = vmatpush.bf16.msra.mxu0 %v2933
        %2951 = vmatpush.bf16.msra.mxu0 %v2932
        %2952 = vmatpush.bf16.msra.mxu0 %v2931
        %2953 = vmatpush.bf16.msra.mxu0 %v2930
        %2954 = vmatmul.bf16.gmra.mxu0 %v2234
        %v2955 = vpop.f32.mrf.mxu0
        %v2956 = vadd.f32 %v2896, %v2955
        %v2957 = vpop.f32.mrf.mxu0
        %v2958 = vadd.f32 %v2896, %v2957
        %2959 = vmatmul.bf16.gmra.mxu0 %v2235
        %v2960 = vpop.f32.mrf.mxu0
        %v2961 = vadd.f32 %v2896, %v2960
        %v2962 = vpop.f32.mrf.mxu0
        %v2963 = vadd.f32 %v2896, %v2962
        %2964 = vdwg.mxu0
        %v2965 = vpack.c.bf16 %v2778, %v2778
        %v2966 = vpack.c.bf16 %v2780, %v2780
        %v2967 = vpack.c.bf16 %v2783, %v2783
        %v2968 = vpack.c.bf16 %v2785, %v2785
        %v2969 = vpack.c.bf16 %v2867, %v2867
        %v2970 = vpack.c.bf16 %v2869, %v2869
        %v2971 = vpack.c.bf16 %v2872, %v2872
        %v2972 = vpack.c.bf16 %v2874, %v2874
        %v2973 = vpack.c.bf16 %v2956, %v2956
        %v2974 = vpack.c.bf16 %v2958, %v2958
        %v2975 = vpack.c.bf16 %v2961, %v2961
        %v2976 = vpack.c.bf16 %v2963, %v2963
        %v2979 = vunpack.c.l.b16 %v2965
        %v2980 = vunpack.c.l.b16 %v2966
        %v2981 = vpack.c.b16 %v2980, %v2979
        %v2984 = vunpack.c.l.b16 %v2969
        %v2985 = vunpack.c.l.b16 %v2970
        %v2986 = vpack.c.b16 %v2985, %v2984
        %v2988 = vsel %vm897, %v2981, 0
        %v2991 = vsel %vm897, %v2986, 0
        %2993 = vmatpush.bf16.xpose.msra.mxu0 0
        %2994 = vmatpush.bf16.xpose.msra.mxu0 0
        %2995 = vmatpush.bf16.xpose.msra.mxu0 0
        %2996 = vmatpush.bf16.xpose.msra.mxu0 0
        %2997 = vmatpush.bf16.xpose.msra.mxu0 0
        %2998 = vmatpush.bf16.xpose.msra.mxu0 0
        %2999 = vmatpush.bf16.xpose.msra.mxu0 0
        %3000 = vmatpush.bf16.xpose.msra.mxu0 %v2991
        %3001 = vmatmul.bf16.gmra.mxu0 %v2988
        %v3002 = vpop.f32.mrf.mxu0
        %v3003 = vadd.f32 0.0, %v3002
        %v3004 = vpop.f32.mrf.mxu0
        %v3005 = vadd.f32 0.0, %v3004
        %3006 = vdwg.mxu0
        %v3009 = vunpack.c.l.b16 %v2967
        %v3010 = vunpack.c.l.b16 %v2968
        %v3011 = vpack.c.b16 %v3010, %v3009
        %v3014 = vunpack.c.l.b16 %v2971
        %v3015 = vunpack.c.l.b16 %v2972
        %v3016 = vpack.c.b16 %v3015, %v3014
        %v3018 = vsel %vm897, %v3011, 0
        %v3021 = vsel %vm897, %v3016, 0
        %3023 = vmatpush.bf16.xpose.msra.mxu0 0
        %3024 = vmatpush.bf16.xpose.msra.mxu0 0
        %3025 = vmatpush.bf16.xpose.msra.mxu0 0
        %3026 = vmatpush.bf16.xpose.msra.mxu0 0
        %3027 = vmatpush.bf16.xpose.msra.mxu0 0
        %3028 = vmatpush.bf16.xpose.msra.mxu0 0
        %3029 = vmatpush.bf16.xpose.msra.mxu0 0
        %3030 = vmatpush.bf16.xpose.msra.mxu0 %v3021
        %3031 = vmatmul.bf16.gmra.mxu0 %v3018
        %v3032 = vpop.f32.mrf.mxu0
        %v3033 = vadd.f32 0.0, %v3032
        %v3034 = vpop.f32.mrf.mxu0
        %v3035 = vadd.f32 0.0, %v3034
        %3036 = vdwg.mxu0
        %v3037 = vmul.f32 %v3003, 0.125
        %v3038 = vmul.f32 %v3005, 0.125
        %v3039 = vmul.f32 %v3033, 0.125
        %v3040 = vmul.f32 %v3035, 0.125
        %v3041 = vadd.f32 %v3037, %v608
        %v3042 = vadd.f32 %v3038, %v608
        %v3043 = vadd.f32 %v3039, %v609
        %v3044 = vadd.f32 %v3040, %v609
        %v3045 = vsel %vm956, %v3041, -inf
        %3046 = vmax.xlane.f32.xlu0 %v3045
        %v3047 = vpop.xlane.xlu0 %3046
        %v3048 = vsel %vm956, %v3042, -inf
        %3049 = vmax.xlane.f32.xlu0 %v3048
        %v3050 = vpop.xlane.xlu0 %3049
        %v3051 = vsel %vm956, %v3043, -inf
        %3052 = vmax.xlane.f32.xlu0 %v3051
        %v3053 = vpop.xlane.xlu0 %3052
        %v3054 = vsel %vm956, %v3044, -inf
        %3055 = vmax.xlane.f32.xlu0 %v3054
        %v3056 = vpop.xlane.xlu0 %3055
        %v3057 = vsub.f32 %v3041, %v3047
        %v3058 = vsub.f32 %v3042, %v3050
        %v3059 = vsub.f32 %v3043, %v3053
        %v3060 = vsub.f32 %v3044, %v3056
        %v3061 = vmul.f32 %v3057, 1.442695
        %v3062 = vpow.pop %v3061
        %v3063 = vmul.f32 %v3058, 1.442695
        %v3064 = vpow.pop %v3063
        %v3065 = vmul.f32 %v3059, 1.442695
        %v3066 = vpow.pop %v3065
        %v3067 = vmul.f32 %v3060, 1.442695
        %v3068 = vpow.pop %v3067
        %v3069 = vsel %vm956, %v3062, 0.0
        %3070 = vadd.xlane.f32.xlu0 %v3069
        %v3071 = vpop.xlane.xlu0 %3070
        %v3072 = vsel %vm956, %v3064, 0.0
        %3073 = vadd.xlane.f32.xlu0 %v3072
        %v3074 = vpop.xlane.xlu0 %3073
        %v3075 = vsel %vm956, %v3066, 0.0
        %3076 = vadd.xlane.f32.xlu0 %v3075
        %v3077 = vpop.xlane.xlu0 %3076
        %v3078 = vsel %vm956, %v3068, 0.0
        %3079 = vadd.xlane.f32.xlu0 %v3078
        %v3080 = vpop.xlane.xlu0 %3079
        %v3081 = vrcp.pop %v3071
        %v3082 = vrcp.pop %v3074
        %v3083 = vrcp.pop %v3077
        %v3084 = vrcp.pop %v3080
        %v3085 = vmul.f32 %v3062, %v3081
        %v3086 = vmul.f32 %v3064, %v3082
        %v3087 = vmul.f32 %v3066, %v3083
        %v3088 = vmul.f32 %v3068, %v3084
        %v3089 = vpack.c.bf16 %v3085, %v3085
        %v3090 = vpack.c.bf16 %v3086, %v3086
        %v3091 = vpack.c.bf16 %v3087, %v3087
        %v3092 = vpack.c.bf16 %v3088, %v3088
        %v3095 = vunpack.c.l.b16 %v3089
        %v3096 = vunpack.c.l.b16 %v3090
        %v3097 = vpack.c.b16 %v3096, %v3095
        %v3100 = vunpack.c.l.b16 %v2973
        %v3101 = vunpack.c.l.b16 %v2974
        %v3102 = vpack.c.b16 %v3101, %v3100
        %v3105 = vsel %vm956, %v3097, 0
        %3107 = vmatpush.bf16.msra.mxu0 0
        %3108 = vmatpush.bf16.msra.mxu0 0
        %3109 = vmatpush.bf16.msra.mxu0 0
        %3110 = vmatpush.bf16.msra.mxu0 0
        %3111 = vmatpush.bf16.msra.mxu0 0
        %3112 = vmatpush.bf16.msra.mxu0 0
        %3113 = vmatpush.bf16.msra.mxu0 0
        %3114 = vmatpush.bf16.msra.mxu0 %v3102
        %3115 = vmatmul.bf16.gmra.mxu0 %v3105
        %v3116 = vpop.f32.mrf.mxu0
        %v3117 = vadd.f32 0.0, %v3116
        %v3118 = vpop.f32.mrf.mxu0
        %v3119 = vadd.f32 0.0, %v3118
        %3120 = vdwg.mxu0
        %v3123 = vunpack.c.l.b16 %v3091
        %v3124 = vunpack.c.l.b16 %v3092
        %v3125 = vpack.c.b16 %v3124, %v3123
        %v3128 = vunpack.c.l.b16 %v2975
        %v3129 = vunpack.c.l.b16 %v2976
        %v3130 = vpack.c.b16 %v3129, %v3128
        %v3133 = vsel %vm956, %v3125, 0
        %3135 = vmatpush.bf16.msra.mxu0 0
        %3136 = vmatpush.bf16.msra.mxu0 0
        %3137 = vmatpush.bf16.msra.mxu0 0
        %3138 = vmatpush.bf16.msra.mxu0 0
        %3139 = vmatpush.bf16.msra.mxu0 0
        %3140 = vmatpush.bf16.msra.mxu0 0
        %3141 = vmatpush.bf16.msra.mxu0 0
        %3142 = vmatpush.bf16.msra.mxu0 %v3130
        %3143 = vmatmul.bf16.gmra.mxu0 %v3133
        %v3144 = vpop.f32.mrf.mxu0
        %v3145 = vadd.f32 0.0, %v3144
        %v3146 = vpop.f32.mrf.mxu0
        %v3147 = vadd.f32 0.0, %v3146
        %3148 = vdwg.mxu0
        %v3149 = vpack.c.bf16 %v3119, %v3117
        %v3150 = vpack.c.bf16 %v3147, %v3145
        %s3151 = scalar_lea.vmem %s8, 96
        %v3152 = vld [vmem:[%s3151] sm:$0xf]
        %v3153 = vld [vmem:[%s3151 + $0x4] sm:$0xf]
        %v3154 = vld [vmem:[%s3151 + $0x8] sm:$0xf]
        %v3155 = vld [vmem:[%s3151 + $0xc] sm:$0xf]
        %v3156 = vld [vmem:[%s3151 + $0x10] sm:$0xf]
        %v3157 = vld [vmem:[%s3151 + $0x14] sm:$0xf]
        %v3158 = vld [vmem:[%s3151 + $0x18] sm:$0xf]
        %v3159 = vld [vmem:[%s3151 + $0x1c] sm:$0xf]
        %v3168 = vunpack.c.l.b16 %v3152
        %v3169 = vunpack.c.l.b16 %v3153
        %v3170 = vunpack.c.l.b16 %v3154
        %v3171 = vunpack.c.l.b16 %v3155
        %v3172 = vunpack.c.l.b16 %v3156
        %v3173 = vunpack.c.l.b16 %v3157
        %v3174 = vunpack.c.l.b16 %v3158
        %v3175 = vunpack.c.l.b16 %v3159
        %v3176 = vpack.c.b16 %v3169, %v3168
        %v3177 = vpack.c.b16 %v3171, %v3170
        %v3178 = vpack.c.b16 %v3173, %v3172
        %v3179 = vpack.c.b16 %v3175, %v3174
        %v3185 = vsel %vm897, %v3149, 0
        %v3188 = vsel %vm897, %v3150, 0
        %3190 = vmatpush.bf16.msra.mxu0 0
        %3191 = vmatpush.bf16.msra.mxu0 0
        %3192 = vmatpush.bf16.msra.mxu0 0
        %3193 = vmatpush.bf16.msra.mxu0 0
        %3194 = vmatpush.bf16.msra.mxu0 %v3179
        %3195 = vmatpush.bf16.msra.mxu0 %v3178
        %3196 = vmatpush.bf16.msra.mxu0 %v3177
        %3197 = vmatpush.bf16.msra.mxu0 %v3176
        %3198 = vmatmul.bf16.gmra.mxu0 %v3185
        %v3199 = vpop.f32.mrf.mxu0
        %v3200 = vadd.f32 0.0, %v3199
        %v3201 = vpop.f32.mrf.mxu0
        %v3202 = vadd.f32 0.0, %v3201
        %3203 = vmatmul.bf16.gmra.mxu0 %v3188
        %v3204 = vpop.f32.mrf.mxu0
        %v3205 = vadd.f32 0.0, %v3204
        %v3206 = vpop.f32.mrf.mxu0
        %v3207 = vadd.f32 0.0, %v3206
        %3208 = vdwg.mxu0
        %v3217 = vunpack.c.l.b16 %v2690
        %v3218 = vunpack.c.l.b16 %v2691
        %v3219 = vunpack.c.l.b16 %v2692
        %v3220 = vunpack.c.l.b16 %v2693
        %v3221 = vunpack.c.l.b16 %v2694
        %v3222 = vunpack.c.l.b16 %v2695
        %v3223 = vunpack.c.l.b16 %v2696
        %v3224 = vunpack.c.l.b16 %v2697
        %v3225 = vpack.c.b16 %v3218, %v3217
        %v3226 = vpack.c.b16 %v3220, %v3219
        %v3227 = vpack.c.b16 %v3222, %v3221
        %v3228 = vpack.c.b16 %v3224, %v3223
        %v3234 = vsel %vm897, %v2687, 0
        %v3237 = vsel %vm897, %v2688, 0
        %3239 = vmatpush.bf16.msra.mxu0 0
        %3240 = vmatpush.bf16.msra.mxu0 0
        %3241 = vmatpush.bf16.msra.mxu0 0
        %3242 = vmatpush.bf16.msra.mxu0 0
        %3243 = vmatpush.bf16.msra.mxu0 %v3228
        %3244 = vmatpush.bf16.msra.mxu0 %v3227
        %3245 = vmatpush.bf16.msra.mxu0 %v3226
        %3246 = vmatpush.bf16.msra.mxu0 %v3225
        %3247 = vmatmul.bf16.gmra.mxu0 %v3234
        %v3248 = vpop.f32.mrf.mxu0
        %v3249 = vadd.f32 %v3200, %v3248
        %v3250 = vpop.f32.mrf.mxu0
        %v3251 = vadd.f32 %v3202, %v3250
        %3252 = vmatmul.bf16.gmra.mxu0 %v3237
        %v3253 = vpop.f32.mrf.mxu0
        %v3254 = vadd.f32 %v3205, %v3253
        %v3255 = vpop.f32.mrf.mxu0
        %v3256 = vadd.f32 %v3207, %v3255
        %3257 = vdwg.mxu0
        %s3258 = scalar_lea.vmem %s9, 1
        %v3259 = vld [vmem:[%s3258] sm:$0x1]
        %v3261 = vperm.slane %v3259, 0
        %v3263 = vadd.f32 %v3249, %v3261
        %v3264 = vadd.f32 %v3251, %v3261
        %v3265 = vadd.f32 %v3254, %v3261
        %v3266 = vadd.f32 %v3256, %v3261
        %v3267 = vadd.f32 %v2230, %v3263
        %v3268 = vadd.f32 %v2231, %v3264
        %v3269 = vadd.f32 %v2232, %v3265
        %v3270 = vadd.f32 %v2233, %v3266
        %s3271 = scalar_lea.vmem %s10, 1
        %v3272 = vld [vmem:[%s3271] sm:$0x1]
        %s3273 = scalar_lea.vmem %s11, 1
        %v3274 = vld [vmem:[%s3273] sm:$0x1]
        %3275 = vadd.xlane.f32.xlu0 %v3267
        %v3276 = vpop.xlane.xlu0 %3275
        %3277 = vadd.xlane.f32.xlu0 %v3268
        %v3278 = vpop.xlane.xlu0 %3277
        %3279 = vadd.xlane.f32.xlu0 %v3269
        %v3280 = vpop.xlane.xlu0 %3279
        %3281 = vadd.xlane.f32.xlu0 %v3270
        %v3282 = vpop.xlane.xlu0 %3281
        %v3283 = vmul.f32 %v3276, %v1659
        %v3284 = vmul.f32 %v3278, %v1659
        %v3285 = vmul.f32 %v3280, %v1659
        %v3286 = vmul.f32 %v3282, %v1659
        %v3287 = vsub.f32 %v3267, %v3283
        %v3288 = vsub.f32 %v3268, %v3284
        %v3289 = vsub.f32 %v3269, %v3285
        %v3290 = vsub.f32 %v3270, %v3286
        %v3291 = vmul.f32 %v3287, %v3287
        %v3292 = vmul.f32 %v3288, %v3288
        %v3293 = vmul.f32 %v3289, %v3289
        %v3294 = vmul.f32 %v3290, %v3290
        %3295 = vadd.xlane.f32.xlu0 %v3291
        %v3296 = vpop.xlane.xlu0 %3295
        %3297 = vadd.xlane.f32.xlu0 %v3292
        %v3298 = vpop.xlane.xlu0 %3297
        %3299 = vadd.xlane.f32.xlu0 %v3293
        %v3300 = vpop.xlane.xlu0 %3299
        %3301 = vadd.xlane.f32.xlu0 %v3294
        %v3302 = vpop.xlane.xlu0 %3301
        %v3303 = vmul.f32 %v3296, %v1659
        %v3304 = vmul.f32 %v3298, %v1659
        %v3305 = vmul.f32 %v3300, %v1659
        %v3306 = vmul.f32 %v3302, %v1659
        %v3307 = vadd.f32 %v3303, 1e-05
        %v3308 = vadd.f32 %v3304, 1e-05
        %v3309 = vadd.f32 %v3305, 1e-05
        %v3310 = vadd.f32 %v3306, 1e-05
        %v3311 = vrsqrt.pop %v3307
        %v3312 = vmul.f32 %v3311, %v3307
        %v3313 = vmul.f32 %v3312, %v3311
        %v3314 = vmul.f32 0.5, %v3313
        %v3315 = vsub.f32 1.5, %v3314
        %v3316 = vmul.f32 %v3311, %v3315
        %vm3317 = vweird.f32 %v3307
        %vm3318 = vweird.f32 %v3311
        %vm3319 = vmor %vm3317, %vm3318
        %v3320 = vsel %vm3319, %v3311, %v3316
        %v3321 = vrsqrt.pop %v3308
        %v3322 = vmul.f32 %v3321, %v3308
        %v3323 = vmul.f32 %v3322, %v3321
        %v3324 = vmul.f32 0.5, %v3323
        %v3325 = vsub.f32 1.5, %v3324
        %v3326 = vmul.f32 %v3321, %v3325
        %vm3327 = vweird.f32 %v3308
        %vm3328 = vweird.f32 %v3321
        %vm3329 = vmor %vm3327, %vm3328
        %v3330 = vsel %vm3329, %v3321, %v3326
        %v3331 = vrsqrt.pop %v3309
        %v3332 = vmul.f32 %v3331, %v3309
        %v3333 = vmul.f32 %v3332, %v3331
        %v3334 = vmul.f32 0.5, %v3333
        %v3335 = vsub.f32 1.5, %v3334
        %v3336 = vmul.f32 %v3331, %v3335
        %vm3337 = vweird.f32 %v3309
        %vm3338 = vweird.f32 %v3331
        %vm3339 = vmor %vm3337, %vm3338
        %v3340 = vsel %vm3339, %v3331, %v3336
        %v3341 = vrsqrt.pop %v3310
        %v3342 = vmul.f32 %v3341, %v3310
        %v3343 = vmul.f32 %v3342, %v3341
        %v3344 = vmul.f32 0.5, %v3343
        %v3345 = vsub.f32 1.5, %v3344
        %v3346 = vmul.f32 %v3341, %v3345
        %vm3347 = vweird.f32 %v3310
        %vm3348 = vweird.f32 %v3341
        %vm3349 = vmor %vm3347, %vm3348
        %v3350 = vsel %vm3349, %v3341, %v3346
        %v3351 = vmul.f32 %v3287, %v3320
        %v3352 = vmul.f32 %v3288, %v3330
        %v3353 = vmul.f32 %v3289, %v3340
        %v3354 = vmul.f32 %v3290, %v3350
        %v3356 = vperm.slane %v3272, 0
        %v3358 = vmul.f32 %v3351, %v3356
        %v3359 = vmul.f32 %v3352, %v3356
        %v3360 = vmul.f32 %v3353, %v3356
        %v3361 = vmul.f32 %v3354, %v3356
        %v3363 = vperm.slane %v3274, 0
        %v3365 = vadd.f32 %v3358, %v3363
        %v3366 = vadd.f32 %v3359, %v3363
        %v3367 = vadd.f32 %v3360, %v3363
        %v3368 = vadd.f32 %v3361, %v3363
        %v3369 = vpack.c.bf16 %v3366, %v3365
        %v3370 = vpack.c.bf16 %v3368, %v3367
        %s3371 = scalar_lea.vmem %s12, 128
        %v3372 = vld [vmem:[%s3371] sm:$0xff]
        %v3373 = vld [vmem:[%s3371 + $0x8] sm:$0xff]
        %v3374 = vld [vmem:[%s3371 + $0x10] sm:$0xff]
        %v3375 = vld [vmem:[%s3371 + $0x18] sm:$0xff]
        %v3376 = vld [vmem:[%s3371 + $0x20] sm:$0xff]
        %v3377 = vld [vmem:[%s3371 + $0x28] sm:$0xff]
        %v3378 = vld [vmem:[%s3371 + $0x30] sm:$0xff]
        %v3379 = vld [vmem:[%s3371 + $0x38] sm:$0xff]
        %v3380 = vld [vmem:[%s3371 + $0x40] sm:$0xff]
        %v3381 = vld [vmem:[%s3371 + $0x48] sm:$0xff]
        %v3382 = vld [vmem:[%s3371 + $0x50] sm:$0xff]
        %v3383 = vld [vmem:[%s3371 + $0x58] sm:$0xff]
        %v3384 = vld [vmem:[%s3371 + $0x60] sm:$0xff]
        %v3385 = vld [vmem:[%s3371 + $0x68] sm:$0xff]
        %v3386 = vld [vmem:[%s3371 + $0x70] sm:$0xff]
        %v3387 = vld [vmem:[%s3371 + $0x78] sm:$0xff]
        %s3388 = scalar_lea.vmem %s13, 2
        %v3389 = vld [vmem:[%s3388] sm:$0x3]
        %v3391 = vperm.slane %v3389, 0
        %v3392 = vperm.slane %v3389, 1
        %v3411 = vunpack.c.l.b16 %v3372
        %v3412 = vunpack.c.h.b16 %v3372
        %v3413 = vunpack.c.l.b16 %v3373
        %v3414 = vunpack.c.h.b16 %v3373
        %v3415 = vunpack.c.l.b16 %v3374
        %v3416 = vunpack.c.h.b16 %v3374
        %v3417 = vunpack.c.l.b16 %v3375
        %v3418 = vunpack.c.h.b16 %v3375
        %v3419 = vunpack.c.l.b16 %v3376
        %v3420 = vunpack.c.h.b16 %v3376
        %v3421 = vunpack.c.l.b16 %v3377
        %v3422 = vunpack.c.h.b16 %v3377
        %v3423 = vunpack.c.l.b16 %v3378
        %v3424 = vunpack.c.h.b16 %v3378
        %v3425 = vunpack.c.l.b16 %v3379
        %v3426 = vunpack.c.h.b16 %v3379
        %v3427 = vunpack.c.l.b16 %v3380
        %v3428 = vunpack.c.h.b16 %v3380
        %v3429 = vunpack.c.l.b16 %v3381
        %v3430 = vunpack.c.h.b16 %v3381
        %v3431 = vunpack.c.l.b16 %v3382
        %v3432 = vunpack.c.h.b16 %v3382
        %v3433 = vunpack.c.l.b16 %v3383
        %v3434 = vunpack.c.h.b16 %v3383
        %v3435 = vunpack.c.l.b16 %v3384
        %v3436 = vunpack.c.h.b16 %v3384
        %v3437 = vunpack.c.l.b16 %v3385
        %v3438 = vunpack.c.h.b16 %v3385
        %v3439 = vunpack.c.l.b16 %v3386
        %v3440 = vunpack.c.h.b16 %v3386
        %v3441 = vunpack.c.l.b16 %v3387
        %v3442 = vunpack.c.h.b16 %v3387
        %v3443 = vpack.c.b16 %v3413, %v3411
        %v3444 = vpack.c.b16 %v3414, %v3412
        %v3445 = vpack.c.b16 %v3417, %v3415
        %v3446 = vpack.c.b16 %v3418, %v3416
        %v3447 = vpack.c.b16 %v3421, %v3419
        %v3448 = vpack.c.b16 %v3422, %v3420
        %v3449 = vpack.c.b16 %v3425, %v3423
        %v3450 = vpack.c.b16 %v3426, %v3424
        %v3451 = vpack.c.b16 %v3429, %v3427
        %v3452 = vpack.c.b16 %v3430, %v3428
        %v3453 = vpack.c.b16 %v3433, %v3431
        %v3454 = vpack.c.b16 %v3434, %v3432
        %v3455 = vpack.c.b16 %v3437, %v3435
        %v3456 = vpack.c.b16 %v3438, %v3436
        %v3457 = vpack.c.b16 %v3441, %v3439
        %v3458 = vpack.c.b16 %v3442, %v3440
        %3475 = vmatpush.bf16.msra.mxu0 %v3457
        %3476 = vmatpush.bf16.msra.mxu0 %v3455
        %3477 = vmatpush.bf16.msra.mxu0 %v3453
        %3478 = vmatpush.bf16.msra.mxu0 %v3451
        %3479 = vmatpush.bf16.msra.mxu0 %v3449
        %3480 = vmatpush.bf16.msra.mxu0 %v3447
        %3481 = vmatpush.bf16.msra.mxu0 %v3445
        %3482 = vmatpush.bf16.msra.mxu0 %v3443
        %3483 = vmatmul.bf16.gmra.mxu0 %v3369
        %v3484 = vpop.f32.mrf.mxu0
        %v3485 = vadd.f32 %v3391, %v3484
        %v3486 = vpop.f32.mrf.mxu0
        %v3487 = vadd.f32 %v3391, %v3486
        %3488 = vmatmul.bf16.gmra.mxu0 %v3370
        %v3489 = vpop.f32.mrf.mxu0
        %v3490 = vadd.f32 %v3391, %v3489
        %v3491 = vpop.f32.mrf.mxu0
        %v3492 = vadd.f32 %v3391, %v3491
        %3493 = vdwg.mxu0
        %3494 = vmatpush.bf16.msra.mxu0 %v3458
        %3495 = vmatpush.bf16.msra.mxu0 %v3456
        %3496 = vmatpush.bf16.msra.mxu0 %v3454
        %3497 = vmatpush.bf16.msra.mxu0 %v3452
        %3498 = vmatpush.bf16.msra.mxu0 %v3450
        %3499 = vmatpush.bf16.msra.mxu0 %v3448
        %3500 = vmatpush.bf16.msra.mxu0 %v3446
        %3501 = vmatpush.bf16.msra.mxu0 %v3444
        %3502 = vmatmul.bf16.gmra.mxu0 %v3369
        %v3503 = vpop.f32.mrf.mxu0
        %v3504 = vadd.f32 %v3392, %v3503
        %v3505 = vpop.f32.mrf.mxu0
        %v3506 = vadd.f32 %v3392, %v3505
        %3507 = vmatmul.bf16.gmra.mxu0 %v3370
        %v3508 = vpop.f32.mrf.mxu0
        %v3509 = vadd.f32 %v3392, %v3508
        %v3510 = vpop.f32.mrf.mxu0
        %v3511 = vadd.f32 %v3392, %v3510
        %3512 = vdwg.mxu0
        %v3513 = vmul.f32 %v3485, %v3485
        %v3514 = vmul.f32 %v3504, %v3504
        %v3515 = vmul.f32 %v3487, %v3487
        %v3516 = vmul.f32 %v3506, %v3506
        %v3517 = vmul.f32 %v3490, %v3490
        %v3518 = vmul.f32 %v3509, %v3509
        %v3519 = vmul.f32 %v3492, %v3492
        %v3520 = vmul.f32 %v3511, %v3511
        %v3521 = vmul.f32 %v3485, %v3513
        %v3522 = vmul.f32 %v3504, %v3514
        %v3523 = vmul.f32 %v3487, %v3515
        %v3524 = vmul.f32 %v3506, %v3516
        %v3525 = vmul.f32 %v3490, %v3517
        %v3526 = vmul.f32 %v3509, %v3518
        %v3527 = vmul.f32 %v3492, %v3519
        %v3528 = vmul.f32 %v3511, %v3520
        %v3529 = vmul.f32 %v3521, 0.044715
        %v3530 = vmul.f32 %v3522, 0.044715
        %v3531 = vmul.f32 %v3523, 0.044715
        %v3532 = vmul.f32 %v3524, 0.044715
        %v3533 = vmul.f32 %v3525, 0.044715
        %v3534 = vmul.f32 %v3526, 0.044715
        %v3535 = vmul.f32 %v3527, 0.044715
        %v3536 = vmul.f32 %v3528, 0.044715
        %v3537 = vadd.f32 %v3485, %v3529
        %v3538 = vadd.f32 %v3504, %v3530
        %v3539 = vadd.f32 %v3487, %v3531
        %v3540 = vadd.f32 %v3506, %v3532
        %v3541 = vadd.f32 %v3490, %v3533
        %v3542 = vadd.f32 %v3509, %v3534
        %v3543 = vadd.f32 %v3492, %v3535
        %v3544 = vadd.f32 %v3511, %v3536
        %v3545 = vmul.f32 %v3537, 0.7978846
        %v3546 = vmul.f32 %v3538, 0.7978846
        %v3547 = vmul.f32 %v3539, 0.7978846
        %v3548 = vmul.f32 %v3540, 0.7978846
        %v3549 = vmul.f32 %v3541, 0.7978846
        %v3550 = vmul.f32 %v3542, 0.7978846
        %v3551 = vmul.f32 %v3543, 0.7978846
        %v3552 = vmul.f32 %v3544, 0.7978846
        %v3553 = vtanh.pop %v3545
        %v3554 = vtanh.pop %v3546
        %v3555 = vtanh.pop %v3547
        %v3556 = vtanh.pop %v3548
        %v3557 = vtanh.pop %v3549
        %v3558 = vtanh.pop %v3550
        %v3559 = vtanh.pop %v3551
        %v3560 = vtanh.pop %v3552
        %v3561 = vadd.f32 %v3553, 1.0
        %v3562 = vadd.f32 %v3554, 1.0
        %v3563 = vadd.f32 %v3555, 1.0
        %v3564 = vadd.f32 %v3556, 1.0
        %v3565 = vadd.f32 %v3557, 1.0
        %v3566 = vadd.f32 %v3558, 1.0
        %v3567 = vadd.f32 %v3559, 1.0
        %v3568 = vadd.f32 %v3560, 1.0
        %v3569 = vmul.f32 %v3561, 0.5
        %v3570 = vmul.f32 %v3562, 0.5
        %v3571 = vmul.f32 %v3563, 0.5
        %v3572 = vmul.f32 %v3564, 0.5
        %v3573 = vmul.f32 %v3565, 0.5
        %v3574 = vmul.f32 %v3566, 0.5
        %v3575 = vmul.f32 %v3567, 0.5
        %v3576 = vmul.f32 %v3568, 0.5
        %v3577 = vmul.f32 %v3485, %v3569
        %v3578 = vmul.f32 %v3504, %v3570
        %v3579 = vmul.f32 %v3487, %v3571
        %v3580 = vmul.f32 %v3506, %v3572
        %v3581 = vmul.f32 %v3490, %v3573
        %v3582 = vmul.f32 %v3509, %v3574
        %v3583 = vmul.f32 %v3492, %v3575
        %v3584 = vmul.f32 %v3511, %v3576
        %v3585 = vpack.c.bf16 %v3579, %v3577
        %v3586 = vpack.c.bf16 %v3580, %v3578
        %v3587 = vpack.c.bf16 %v3583, %v3581
        %v3588 = vpack.c.bf16 %v3584, %v3582
        %s3589 = scalar_lea.vmem %s14, 128
        %v3590 = vld [vmem:[%s3589] sm:$0xf]
        %v3591 = vld [vmem:[%s3589 + $0x4] sm:$0xf]
        %v3592 = vld [vmem:[%s3589 + $0x8] sm:$0xf]
        %v3593 = vld [vmem:[%s3589 + $0xc] sm:$0xf]
        %v3594 = vld [vmem:[%s3589 + $0x10] sm:$0xf]
        %v3595 = vld [vmem:[%s3589 + $0x14] sm:$0xf]
        %v3596 = vld [vmem:[%s3589 + $0x18] sm:$0xf]
        %v3597 = vld [vmem:[%s3589 + $0x1c] sm:$0xf]
        %v3598 = vld [vmem:[%s3589 + $0x20] sm:$0xf]
        %v3599 = vld [vmem:[%s3589 + $0x24] sm:$0xf]
        %v3600 = vld [vmem:[%s3589 + $0x28] sm:$0xf]
        %v3601 = vld [vmem:[%s3589 + $0x2c] sm:$0xf]
        %v3602 = vld [vmem:[%s3589 + $0x30] sm:$0xf]
        %v3603 = vld [vmem:[%s3589 + $0x34] sm:$0xf]
        %v3604 = vld [vmem:[%s3589 + $0x38] sm:$0xf]
        %v3605 = vld [vmem:[%s3589 + $0x3c] sm:$0xf]
        %v3606 = vld [vmem:[%s3589 + $0x40] sm:$0xf]
        %v3607 = vld [vmem:[%s3589 + $0x44] sm:$0xf]
        %v3608 = vld [vmem:[%s3589 + $0x48] sm:$0xf]
        %v3609 = vld [vmem:[%s3589 + $0x4c] sm:$0xf]
        %v3610 = vld [vmem:[%s3589 + $0x50] sm:$0xf]
        %v3611 = vld [vmem:[%s3589 + $0x54] sm:$0xf]
        %v3612 = vld [vmem:[%s3589 + $0x58] sm:$0xf]
        %v3613 = vld [vmem:[%s3589 + $0x5c] sm:$0xf]
        %v3614 = vld [vmem:[%s3589 + $0x60] sm:$0xf]
        %v3615 = vld [vmem:[%s3589 + $0x64] sm:$0xf]
        %v3616 = vld [vmem:[%s3589 + $0x68] sm:$0xf]
        %v3617 = vld [vmem:[%s3589 + $0x6c] sm:$0xf]
        %v3618 = vld [vmem:[%s3589 + $0x70] sm:$0xf]
        %v3619 = vld [vmem:[%s3589 + $0x74] sm:$0xf]
        %v3620 = vld [vmem:[%s3589 + $0x78] sm:$0xf]
        %v3621 = vld [vmem:[%s3589 + $0x7c] sm:$0xf]
        %s3622 = scalar_lea.vmem %s15, 1
        %v3623 = vld [vmem:[%s3622] sm:$0x1]
        %v3625 = vperm.slane %v3623, 0
        %v3659 = vunpack.c.l.b16 %v3590
        %v3660 = vunpack.c.l.b16 %v3591
        %v3661 = vunpack.c.l.b16 %v3592
        %v3662 = vunpack.c.l.b16 %v3593
        %v3663 = vunpack.c.l.b16 %v3594
        %v3664 = vunpack.c.l.b16 %v3595
        %v3665 = vunpack.c.l.b16 %v3596
        %v3666 = vunpack.c.l.b16 %v3597
        %v3667 = vunpack.c.l.b16 %v3598
        %v3668 = vunpack.c.l.b16 %v3599
        %v3669 = vunpack.c.l.b16 %v3600
        %v3670 = vunpack.c.l.b16 %v3601
        %v3671 = vunpack.c.l.b16 %v3602
        %v3672 = vunpack.c.l.b16 %v3603
        %v3673 = vunpack.c.l.b16 %v3604
        %v3674 = vunpack.c.l.b16 %v3605
        %v3675 = vunpack.c.l.b16 %v3606
        %v3676 = vunpack.c.l.b16 %v3607
        %v3677 = vunpack.c.l.b16 %v3608
        %v3678 = vunpack.c.l.b16 %v3609
        %v3679 = vunpack.c.l.b16 %v3610
        %v3680 = vunpack.c.l.b16 %v3611
        %v3681 = vunpack.c.l.b16 %v3612
        %v3682 = vunpack.c.l.b16 %v3613
        %v3683 = vunpack.c.l.b16 %v3614
        %v3684 = vunpack.c.l.b16 %v3615
        %v3685 = vunpack.c.l.b16 %v3616
        %v3686 = vunpack.c.l.b16 %v3617
        %v3687 = vunpack.c.l.b16 %v3618
        %v3688 = vunpack.c.l.b16 %v3619
        %v3689 = vunpack.c.l.b16 %v3620
        %v3690 = vunpack.c.l.b16 %v3621
        %v3691 = vpack.c.b16 %v3660, %v3659
        %v3692 = vpack.c.b16 %v3662, %v3661
        %v3693 = vpack.c.b16 %v3664, %v3663
        %v3694 = vpack.c.b16 %v3666, %v3665
        %v3695 = vpack.c.b16 %v3668, %v3667
        %v3696 = vpack.c.b16 %v3670, %v3669
        %v3697 = vpack.c.b16 %v3672, %v3671
        %v3698 = vpack.c.b16 %v3674, %v3673
        %v3699 = vpack.c.b16 %v3676, %v3675
        %v3700 = vpack.c.b16 %v3678, %v3677
        %v3701 = vpack.c.b16 %v3680, %v3679
        %v3702 = vpack.c.b16 %v3682, %v3681
        %v3703 = vpack.c.b16 %v3684, %v3683
        %v3704 = vpack.c.b16 %v3686, %v3685
        %v3705 = vpack.c.b16 %v3688, %v3687
        %v3706 = vpack.c.b16 %v3690, %v3689
        %3723 = vmatpush.bf16.msra.mxu0 %v3698
        %3724 = vmatpush.bf16.msra.mxu0 %v3697
        %3725 = vmatpush.bf16.msra.mxu0 %v3696
        %3726 = vmatpush.bf16.msra.mxu0 %v3695
        %3727 = vmatpush.bf16.msra.mxu0 %v3694
        %3728 = vmatpush.bf16.msra.mxu0 %v3693
        %3729 = vmatpush.bf16.msra.mxu0 %v3692
        %3730 = vmatpush.bf16.msra.mxu0 %v3691
        %3731 = vmatmul.bf16.gmra.mxu0 %v3585
        %v3732 = vpop.f32.mrf.mxu0
        %v3733 = vadd.f32 %v3625, %v3732
        %v3734 = vpop.f32.mrf.mxu0
        %v3735 = vadd.f32 %v3625, %v3734
        %3736 = vmatmul.bf16.gmra.mxu0 %v3587
        %v3737 = vpop.f32.mrf.mxu0
        %v3738 = vadd.f32 %v3625, %v3737
        %v3739 = vpop.f32.mrf.mxu0
        %v3740 = vadd.f32 %v3625, %v3739
        %3741 = vdwg.mxu0
        %3742 = vmatpush.bf16.msra.mxu0 %v3706
        %3743 = vmatpush.bf16.msra.mxu0 %v3705
        %3744 = vmatpush.bf16.msra.mxu0 %v3704
        %3745 = vmatpush.bf16.msra.mxu0 %v3703
        %3746 = vmatpush.bf16.msra.mxu0 %v3702
        %3747 = vmatpush.bf16.msra.mxu0 %v3701
        %3748 = vmatpush.bf16.msra.mxu0 %v3700
        %3749 = vmatpush.bf16.msra.mxu0 %v3699
        %3750 = vmatmul.bf16.gmra.mxu0 %v3586
        %v3751 = vpop.f32.mrf.mxu0
        %v3752 = vadd.f32 %v3733, %v3751
        %v3753 = vpop.f32.mrf.mxu0
        %v3754 = vadd.f32 %v3735, %v3753
        %3755 = vmatmul.bf16.gmra.mxu0 %v3588
        %v3756 = vpop.f32.mrf.mxu0
        %v3757 = vadd.f32 %v3738, %v3756
        %v3758 = vpop.f32.mrf.mxu0
        %v3759 = vadd.f32 %v3740, %v3758
        %3760 = vdwg.mxu0
        %v3761 = vadd.f32 %v3365, %v3752
        %v3762 = vadd.f32 %v3366, %v3754
        %v3763 = vadd.f32 %v3367, %v3757
        %v3764 = vadd.f32 %v3368, %v3759
        %s3765 = scalar_lea.vmem %s16, 1
        %v3766 = vld [vmem:[%s3765] sm:$0x1]
        %s3767 = scalar_lea.vmem %s17, 1
        %v3768 = vld [vmem:[%s3767] sm:$0x1]
        %3769 = vadd.xlane.f32.xlu0 %v3761
        %v3770 = vpop.xlane.xlu0 %3769
        %3771 = vadd.xlane.f32.xlu0 %v3762
        %v3772 = vpop.xlane.xlu0 %3771
        %3773 = vadd.xlane.f32.xlu0 %v3763
        %v3774 = vpop.xlane.xlu0 %3773
        %3775 = vadd.xlane.f32.xlu0 %v3764
        %v3776 = vpop.xlane.xlu0 %3775
        %v3777 = vmul.f32 %v3770, %v1659
        %v3778 = vmul.f32 %v3772, %v1659
        %v3779 = vmul.f32 %v3774, %v1659
        %v3780 = vmul.f32 %v3776, %v1659
        %v3781 = vsub.f32 %v3761, %v3777
        %v3782 = vsub.f32 %v3762, %v3778
        %v3783 = vsub.f32 %v3763, %v3779
        %v3784 = vsub.f32 %v3764, %v3780
        %v3785 = vmul.f32 %v3781, %v3781
        %v3786 = vmul.f32 %v3782, %v3782
        %v3787 = vmul.f32 %v3783, %v3783
        %v3788 = vmul.f32 %v3784, %v3784
        %3789 = vadd.xlane.f32.xlu0 %v3785
        %v3790 = vpop.xlane.xlu0 %3789
        %3791 = vadd.xlane.f32.xlu0 %v3786
        %v3792 = vpop.xlane.xlu0 %3791
        %3793 = vadd.xlane.f32.xlu0 %v3787
        %v3794 = vpop.xlane.xlu0 %3793
        %3795 = vadd.xlane.f32.xlu0 %v3788
        %v3796 = vpop.xlane.xlu0 %3795
        %v3797 = vmul.f32 %v3790, %v1659
        %v3798 = vmul.f32 %v3792, %v1659
        %v3799 = vmul.f32 %v3794, %v1659
        %v3800 = vmul.f32 %v3796, %v1659
        %v3801 = vadd.f32 %v3797, 1e-05
        %v3802 = vadd.f32 %v3798, 1e-05
        %v3803 = vadd.f32 %v3799, 1e-05
        %v3804 = vadd.f32 %v3800, 1e-05
        %v3805 = vrsqrt.pop %v3801
        %v3806 = vmul.f32 %v3805, %v3801
        %v3807 = vmul.f32 %v3806, %v3805
        %v3808 = vmul.f32 0.5, %v3807
        %v3809 = vsub.f32 1.5, %v3808
        %v3810 = vmul.f32 %v3805, %v3809
        %vm3811 = vweird.f32 %v3801
        %vm3812 = vweird.f32 %v3805
        %vm3813 = vmor %vm3811, %vm3812
        %v3814 = vsel %vm3813, %v3805, %v3810
        %v3815 = vrsqrt.pop %v3802
        %v3816 = vmul.f32 %v3815, %v3802
        %v3817 = vmul.f32 %v3816, %v3815
        %v3818 = vmul.f32 0.5, %v3817
        %v3819 = vsub.f32 1.5, %v3818
        %v3820 = vmul.f32 %v3815, %v3819
        %vm3821 = vweird.f32 %v3802
        %vm3822 = vweird.f32 %v3815
        %vm3823 = vmor %vm3821, %vm3822
        %v3824 = vsel %vm3823, %v3815, %v3820
        %v3825 = vrsqrt.pop %v3803
        %v3826 = vmul.f32 %v3825, %v3803
        %v3827 = vmul.f32 %v3826, %v3825
        %v3828 = vmul.f32 0.5, %v3827
        %v3829 = vsub.f32 1.5, %v3828
        %v3830 = vmul.f32 %v3825, %v3829
        %vm3831 = vweird.f32 %v3803
        %vm3832 = vweird.f32 %v3825
        %vm3833 = vmor %vm3831, %vm3832
        %v3834 = vsel %vm3833, %v3825, %v3830
        %v3835 = vrsqrt.pop %v3804
        %v3836 = vmul.f32 %v3835, %v3804
        %v3837 = vmul.f32 %v3836, %v3835
        %v3838 = vmul.f32 0.5, %v3837
        %v3839 = vsub.f32 1.5, %v3838
        %v3840 = vmul.f32 %v3835, %v3839
        %vm3841 = vweird.f32 %v3804
        %vm3842 = vweird.f32 %v3835
        %vm3843 = vmor %vm3841, %vm3842
        %v3844 = vsel %vm3843, %v3835, %v3840
        %v3845 = vmul.f32 %v3781, %v3814
        %v3846 = vmul.f32 %v3782, %v3824
        %v3847 = vmul.f32 %v3783, %v3834
        %v3848 = vmul.f32 %v3784, %v3844
        %v3850 = vperm.slane %v3766, 0
        %v3852 = vmul.f32 %v3845, %v3850
        %v3853 = vmul.f32 %v3846, %v3850
        %v3854 = vmul.f32 %v3847, %v3850
        %v3855 = vmul.f32 %v3848, %v3850
        %v3857 = vperm.slane %v3768, 0
        %v3859 = vadd.f32 %v3852, %v3857
        %v3860 = vadd.f32 %v3853, %v3857
        %v3861 = vadd.f32 %v3854, %v3857
        %v3862 = vadd.f32 %v3855, %v3857
        %3863 = vst [vmem:[%s585] sm:$0xff] %v3859
        %3864 = vst [vmem:[%s585 + $0x8] sm:$0xff] %v3860
        %3865 = vst [vmem:[%s585 + $0x10] sm:$0xff] %v3861
        %3866 = vst [vmem:[%s585 + $0x18] sm:$0xff] %v3862
        %s3867 = sand.u32 %s428, 1
        %s3868 = scalar_lea.sflag [#allocation3], %s3867
        %s3869 = sand.u32 %s428, 1
        %s3870 = smul.addr %s3869, 32
        %s3871 = scalar_lea.vmem [#allocation2], %s3870
        // Predicated region
        $region93: #{tpu_custom_call.1} parent=91 // pred_check
          %p3872 = pneg %p438
        $region94: #{tpu_custom_call.1} parent=91 // pred_check_branch
          %3874 = sbr.rel (%p3872) target = $region96
        $region95: #{tpu_custom_call.1} parent=91 // pred_region
          %s3875 = smul.u32 2, %s32
          %3877 = vsyncadd %s3868, 0
          %s3878 = smul.addr %s3875, 2
          %s3879 = smul.addr %s3878, 8
          %s3880 = scalar_lea.hbm %s18, %s3879
          %s3881 = sshll.u32 %s3871, 4
          %s3882 = int_to_ptr.vmem [resolvable:$true] %s3881
          %s3883 = sshll.u32 %s3880, 4
          %s3884 = int_to_ptr.hbm [resolvable:$true] %s3883
          %3889 = dma.vmem_to_hbm [thread:$0]  %s3882, 512, %s3884, %s3868, 128, 128, 8
        $region96: #{tpu_custom_call.1} parent=91 // pred_fallthru
          _
      $region92: #{tpu_custom_call.1} parent=5 // pred_fallthru
        _
      %p3890 = scmp.le.s32.totalorder 2, %s27
      // Predicated region
      $region97: #{tpu_custom_call.1} parent=5 // pred_check
        %p3891 = pneg %p3890
      $region98: #{tpu_custom_call.1} parent=5 // pred_check_branch
        %3893 = sbr.rel (%p3891) target = $region100
      $region99: #{tpu_custom_call.1} parent=5 // pred_region
        %s3894 = ssub.s32 %s27, 2
        // Predicated region
        $region101: #{tpu_custom_call.1} parent=99 // pred_check
          %p3895 = pneg %p444
        $region102: #{tpu_custom_call.1} parent=99 // pred_check_branch
          %3897 = sbr.rel (%p3895) target = $region104
        $region103: #{tpu_custom_call.1} parent=99 // pred_region
          %s3898 = sand.u32 %s429, 1
          %s3899 = scalar_lea.sflag [#allocation3], %s3898
          %s3900 = sand.u32 %s429, 1
          %s3901 = smul.addr %s3900, 32
          %s3902 = scalar_lea.vmem [#allocation2], %s3901
          %3904 = dma.done %s3899, 512
        $region104: #{tpu_custom_call.1} parent=99 // pred_fallthru
          _
      $region100: #{tpu_custom_call.1} parent=5 // pred_fallthru
        _
    $region6: #{tpu_custom_call.1} parent=1 // loop_footer
      %s31 = sadd.s32 1, %s27
    $region7: #{tpu_custom_call.1} parent=1 // loop_footer_branch
      %26 = sbr.rel target = $region3
    $region8: #{tpu_custom_call.1} parent=1 // loop_exit
      _
    %3905 = vsyncpa [#allocation3], 1
    %s3906 = scalar_lea.sflag [#allocation3], 1
    %3907 = vsyncpa %s3906, 1

</llo_original>
